<compile_context>
chip_gen: v7x
topology: tpu7x:2x2x1
jax: 0.10.0
libtpu: 0.0.40
codegen_flags: <defaults>
</compile_context>

<pallas_src>
import math

import jax
import jax.numpy as jnp
from jax.experimental import pallas as pl
from jax.experimental.pallas import tpu as pltpu

# ----------------------------- model dims (small, synthetic, lane-dense) -----------------------------
B = 2                 # batch
S = 8                 # sequence length   (module uses 512; scaled down)
H = 128               # hidden size       (module uses 768; scaled down, multiple of 128)
NUM_HEADS = 4
HEAD_DIM = H // NUM_HEADS
INTER = 4 * H         # FFN intermediate (512)
NUM_LAYERS = 2
VOCAB = 64
NUM_LABELS = 2
LPAD = 128            # classifier logits padded to a full lane width; sliced after the call
LN_EPS = 1e-5
BS = B * S

ACC_DT = jnp.float32  # accumulation / elementwise dtype
MM_DT = jnp.bfloat16  # MXU input dtype


# ----------------------------- in-kernel helpers -----------------------------
def _layernorm(x, g, b, eps=LN_EPS):
    mu = jnp.mean(x, axis=-1, keepdims=True)
    var = jnp.mean((x - mu) ** 2, axis=-1, keepdims=True)
    return (x - mu) * jax.lax.rsqrt(var + eps) * g + b


# ----------------------------- fused encoder kernel -----------------------------
def encoder_kernel(x_ref, mask_ref, eg_ref, eb_ref,
                   wq_ref, bq_ref, wk_ref, bk_ref, wv_ref, bv_ref,
                   wo_ref, bo_ref, l1g_ref, l1b_ref,
                   w1_ref, b1_ref, w2_ref, b2_ref, l2g_ref, l2b_ref,
                   wp_ref, bp_ref, wc_ref, bc_ref,
                   pooled_ref, logits_ref, x_vmem):
    l = pl.program_id(0)

    # --- layer 0 prologue: embedding layernorm into the resident activation ---
    @pl.when(l == 0)
    def _():
        x_vmem[...] = _layernorm(x_ref[...], eg_ref[...], eb_ref[...])
        # embedding dropout: identity in eval mode

    x = x_vmem[...]                       # (BS, H) f32, resident across layers
    xb = x.astype(MM_DT)

    # --- self attention: fused QKV projections over the whole (B*S, H) slab ---
    q = jnp.dot(xb, wq_ref[0], preferred_element_type=ACC_DT) + bq_ref[0]
    k = jnp.dot(xb, wk_ref[0], preferred_element_type=ACC_DT) + bk_ref[0]
    v = jnp.dot(xb, wv_ref[0], preferred_element_type=ACC_DT) + bv_ref[0]

    q3 = q.reshape(B, S, H)
    k3 = k.reshape(B, S, H)
    v3 = v.reshape(B, S, H)
    mask_bias = mask_ref[...][:, None, :]              # (B, 1, S) additive bias
    scale = 1.0 / math.sqrt(HEAD_DIM)

    ctx_heads = []
    for h in range(NUM_HEADS):                         # small static unroll over heads
        sl = slice(h * HEAD_DIM, (h + 1) * HEAD_DIM)
        qh = q3[:, :, sl].astype(MM_DT)                # (B, S, dh)
        kh = k3[:, :, sl].astype(MM_DT)
        vh = v3[:, :, sl].astype(MM_DT)
        # batched over B, no in-loop transpose of k
        s = jnp.einsum('bqd,bkd->bqk', qh, kh,
                       preferred_element_type=ACC_DT) * scale + mask_bias
        m = jnp.max(s, axis=-1, keepdims=True)
        e = jnp.exp(s - m)
        p = e * pl.reciprocal(jnp.sum(e, axis=-1, keepdims=True), approx=True)
        ctx_heads.append(jnp.einsum('bqk,bkd->bqd', p.astype(MM_DT), vh,
                                    preferred_element_type=ACC_DT))
    ctx = jnp.concatenate(ctx_heads, axis=-1).reshape(BS, H)   # concat heads → one Wo matmul

    attn = jnp.dot(ctx.astype(MM_DT), wo_ref[0],
                   preferred_element_type=ACC_DT) + bo_ref[0]
    h1 = _layernorm(x + attn, l1g_ref[0], l1b_ref[0])

    # --- feed-forward ---
    ff = jnp.dot(h1.astype(MM_DT), w1_ref[0], preferred_element_type=ACC_DT) + b1_ref[0]
    # TODO(synk): HF RoBERTa uses exact erf GELU; tanh approximation used here for Mosaic safety.
    ff = jax.nn.gelu(ff, approximate=True)
    ff = jnp.dot(ff.astype(MM_DT), w2_ref[0], preferred_element_type=ACC_DT) + b2_ref[0]
    out = _layernorm(h1 + ff, l2g_ref[0], l2b_ref[0])

    x_vmem[...] = out                                   # stays in VMEM for the next layer

    # --- last layer epilogue: pooler + classifier (dropout identity in eval) ---
    @pl.when(l == NUM_LAYERS - 1)
    def _():
        cls = out.reshape(B, S, H)[:, 0, :]             # [CLS] rows, (B, H)
        pooled = jnp.tanh(jnp.dot(cls.astype(MM_DT), wp_ref[...],
                                  preferred_element_type=ACC_DT) + bp_ref[...])
        pooled_ref[...] = pooled
        logits_ref[...] = jnp.dot(pooled.astype(MM_DT), wc_ref[...],
                                  preferred_element_type=ACC_DT) + bc_ref[...]


# ----------------------------- pallas_call wrapper -----------------------------
def _const_spec(shape):
    n = len(shape)
    return pl.BlockSpec(shape, lambda l, n=n: (0,) * n)


def _layer_spec(shape):
    rest = tuple(shape[1:])
    n = len(rest)
    return pl.BlockSpec((1,) + rest, lambda l, n=n: (l,) + (0,) * n)


_LAYER_NAMES = ("wq", "bq", "wk", "bk", "wv", "bv", "wo", "bo",
                "ln1_g", "ln1_b", "w1", "b1", "w2", "b2", "ln2_g", "ln2_b")


def encoder_forward(emb2d, mask_bias, p):
    ins = [emb2d, mask_bias, p["emb_ln_g"], p["emb_ln_b"]]
    ins += [p[name] for name in _LAYER_NAMES]
    ins += [p["pooler_w"], p["pooler_b"], p["cls_w"], p["cls_b"]]

    in_specs = [_const_spec(emb2d.shape), _const_spec(mask_bias.shape),
                _const_spec(p["emb_ln_g"].shape), _const_spec(p["emb_ln_b"].shape)]
    in_specs += [_layer_spec(p[name].shape) for name in _LAYER_NAMES]
    in_specs += [_const_spec(p["pooler_w"].shape), _const_spec(p["pooler_b"].shape),
                 _const_spec(p["cls_w"].shape), _const_spec(p["cls_b"].shape)]

    # NOTE: grid axis = layer index (sequential dependency through x_vmem) → "arbitrary".
    # At real RoBERTa scale, add a parallel batch/S-tile axis for v7x's 2 TensorCores
    # and K-tile the FFN weights + set vmem_limit_bytes.
    pooled, logits_pad = pl.pallas_call(
        encoder_kernel,
        out_shape=(jax.ShapeDtypeStruct((B, H), ACC_DT),
                   jax.ShapeDtypeStruct((B, LPAD), ACC_DT)),
        grid=(NUM_LAYERS,),
        in_specs=in_specs,
        out_specs=(pl.BlockSpec((B, H), lambda l: (0, 0)),
                   pl.BlockSpec((B, LPAD), lambda l: (0, 0))),
        scratch_shapes=[pltpu.VMEM((BS, H), ACC_DT)],
        compiler_params=pltpu.CompilerParams(dimension_semantics=("arbitrary",)),
    )(*ins)
    return pooled, logits_pad


# ----------------------------- parameter construction (deterministic) -----------------------------
def init_params(key):
    def normal(k, shape, std=0.02, dtype=MM_DT):
        return (std * jax.random.normal(k, shape, jnp.float32)).astype(dtype)

    keys = iter(jax.random.split(key, 16))
    p = {
        # embeddings kept in f32 (gathered outside the kernel)
        "word_emb": normal(next(keys), (VOCAB, H), dtype=ACC_DT),
        "pos_emb": normal(next(keys), (S, H), dtype=ACC_DT),
        "type_emb": normal(next(keys), (1, H), dtype=ACC_DT),
        "emb_ln_g": jnp.ones((1, H), ACC_DT),
        "emb_ln_b": jnp.zeros((1, H), ACC_DT),
        # per-layer weights stacked along the layer axis; matmul weights in bf16
        "wq": normal(next(keys), (NUM_LAYERS, H, H)),
        "wk": normal(next(keys), (NUM_LAYERS, H, H)),
        "wv": normal(next(keys), (NUM_LAYERS, H, H)),
        "wo": normal(next(keys), (NUM_LAYERS, H, H)),
        "bq": jnp.zeros((NUM_LAYERS, 1, H), ACC_DT),
        "bk": jnp.zeros((NUM_LAYERS, 1, H), ACC_DT),
        "bv": jnp.zeros((NUM_LAYERS, 1, H), ACC_DT),
        "bo": jnp.zeros((NUM_LAYERS, 1, H), ACC_DT),
        "ln1_g": jnp.ones((NUM_LAYERS, 1, H), ACC_DT),
        "ln1_b": jnp.zeros((NUM_LAYERS, 1, H), ACC_DT),
        "w1": normal(next(keys), (NUM_LAYERS, H, INTER)),
        "b1": jnp.zeros((NUM_LAYERS, 1, INTER), ACC_DT),
        "w2": normal(next(keys), (NUM_LAYERS, INTER, H)),
        "b2": jnp.zeros((NUM_LAYERS, 1, H), ACC_DT),
        "ln2_g": jnp.ones((NUM_LAYERS, 1, H), ACC_DT),
        "ln2_b": jnp.zeros((NUM_LAYERS, 1, H), ACC_DT),
        # pooler
        "pooler_w": normal(next(keys), (H, H)),
        "pooler_b": jnp.zeros((1, H), ACC_DT),
    }
    # classifier: xavier_uniform_ weight, zero bias (as in _init_classifier),
    # zero-padded along the output dim to a full lane width.
    limit = math.sqrt(6.0 / (H + NUM_LABELS))
    cls_w = jax.random.uniform(next(keys), (H, NUM_LABELS), minval=-limit, maxval=limit)
    p["cls_w"] = jnp.zeros((H, LPAD), jnp.float32).at[:, :NUM_LABELS].set(cls_w).astype(MM_DT)
    p["cls_b"] = jnp.zeros((1, LPAD), ACC_DT)
    return p


# ----------------------------- forward pass -----------------------------
def forward(params, input_ids, attention_mask, labels=None):
    # --- embeddings (glue: gathers in plain JAX) ---
    # TODO(synk): real RoBERTa offsets position ids by padding_idx+1; uses 0..S-1 here.
    word = params["word_emb"][input_ids]                        # (B, S, H)
    pos = params["pos_emb"][jnp.arange(S)][None, :, :]          # (1, S, H)
    tok = params["type_emb"][0][None, None, :]                  # (1, 1, H)
    emb = (word + pos + tok).astype(ACC_DT).reshape(BS, H)      # batch fused into rows

    # additive attention bias, (B, S): 0 for attend, -1e9 for masked (HF convention)
    mask_bias = (1.0 - attention_mask.astype(ACC_DT)) * -1e9

    pooled, logits_pad = encoder_forward(emb, mask_bias, params)
    logits = logits_pad[:, :NUM_LABELS]

    loss = None
    if labels is not None:
        # CrossEntropyLoss (label_smoothing=0.0, focal_loss=False) — tiny, plain JAX
        logp = jax.nn.log_softmax(logits, axis=-1)
        loss = -jnp.mean(jnp.take_along_axis(logp, labels[:, None], axis=1))

    return {"loss": loss, "logits": logits, "hidden_states": pooled}


# ----------------------------- main -----------------------------
if __name__ == "__main__":
    key = jax.random.PRNGKey(0)
    pkey, dkey = jax.random.split(key)
    params = init_params(pkey)

    input_ids = jax.random.randint(dkey, (B, S), 0, VOCAB, dtype=jnp.int32)
    attention_mask = jnp.ones((B, S), dtype=jnp.int32)
    attention_mask = attention_mask.at[1, S - 2:].set(0)        # exercise padding mask
    labels = jnp.array([0, 1], dtype=jnp.int32)

    out = forward(params, input_ids, attention_mask, labels=labels)
    jax.block_until_ready(out["logits"])
    jax.block_until_ready(out["hidden_states"])
    jax.block_until_ready(out["loss"])

    assert out["logits"].shape == (B, NUM_LABELS)
    assert out["hidden_states"].shape == (B, H)
    assert bool(jnp.all(jnp.isfinite(out["logits"])))
    assert bool(jnp.all(jnp.isfinite(out["hidden_states"])))
    assert bool(jnp.isfinite(out["loss"]))
    print("KERNEL_OK")
</pallas_src>

<mosaic_0001>
module attributes {stable_mosaic.version = 11 : i64} {
  func.func @encoder_kernel(%arg0: i32, %arg1: memref<16x128xf32, #tpu.memory_space<vmem>>, %arg2: memref<2x8xf32, #tpu.memory_space<vmem>>, %arg3: memref<1x128xf32, #tpu.memory_space<vmem>>, %arg4: memref<1x128xf32, #tpu.memory_space<vmem>>, %arg5: memref<1x128x128xbf16, #tpu.memory_space<vmem>>, %arg6: memref<1x1x128xf32, #tpu.memory_space<vmem>>, %arg7: memref<1x128x128xbf16, #tpu.memory_space<vmem>>, %arg8: memref<1x1x128xf32, #tpu.memory_space<vmem>>, %arg9: memref<1x128x128xbf16, #tpu.memory_space<vmem>>, %arg10: memref<1x1x128xf32, #tpu.memory_space<vmem>>, %arg11: memref<1x128x128xbf16, #tpu.memory_space<vmem>>, %arg12: memref<1x1x128xf32, #tpu.memory_space<vmem>>, %arg13: memref<1x1x128xf32, #tpu.memory_space<vmem>>, %arg14: memref<1x1x128xf32, #tpu.memory_space<vmem>>, %arg15: memref<1x128x512xbf16, #tpu.memory_space<vmem>>, %arg16: memref<1x1x512xf32, #tpu.memory_space<vmem>>, %arg17: memref<1x512x128xbf16, #tpu.memory_space<vmem>>, %arg18: memref<1x1x128xf32, #tpu.memory_space<vmem>>, %arg19: memref<1x1x128xf32, #tpu.memory_space<vmem>>, %arg20: memref<1x1x128xf32, #tpu.memory_space<vmem>>, %arg21: memref<128x128xbf16, #tpu.memory_space<vmem>>, %arg22: memref<1x128xf32, #tpu.memory_space<vmem>>, %arg23: memref<128x128xbf16, #tpu.memory_space<vmem>>, %arg24: memref<1x128xf32, #tpu.memory_space<vmem>>, %arg25: memref<2x128xf32, #tpu.memory_space<vmem>>, %arg26: memref<2x128xf32, #tpu.memory_space<vmem>>, %arg27: memref<16x128xf32, #tpu.memory_space<vmem>>) attributes {dimension_semantics = [#tpu.dimension_semantics<arbitrary>], iteration_bounds = array<i64: 2>, scalar_prefetch = 0 : i64, scratch_operands = 1 : i64, tpu.core_type = #tpu.core_type<tc>, window_params = [{pipeline_mode = #tpu.pipeline_mode<synchronous>, transform_indices = @transform_0, window_bounds = array<i64: 16, 128>}, {pipeline_mode = #tpu.pipeline_mode<synchronous>, transform_indices = @transform_1, window_bounds = array<i64: 2, 8>}, {pipeline_mode = #tpu.pipeline_mode<synchronous>, transform_indices = @transform_2, window_bounds = array<i64: 1, 128>}, {pipeline_mode = #tpu.pipeline_mode<synchronous>, transform_indices = @transform_3, window_bounds = array<i64: 1, 128>}, {transform_indices = @transform_4, window_bounds = array<i64: 1, 128, 128>}, {transform_indices = @transform_5, window_bounds = array<i64: 1, 1, 128>}, {transform_indices = @transform_6, window_bounds = array<i64: 1, 128, 128>}, {transform_indices = @transform_7, window_bounds = array<i64: 1, 1, 128>}, {transform_indices = @transform_8, window_bounds = array<i64: 1, 128, 128>}, {transform_indices = @transform_9, window_bounds = array<i64: 1, 1, 128>}, {transform_indices = @transform_10, window_bounds = array<i64: 1, 128, 128>}, {transform_indices = @transform_11, window_bounds = array<i64: 1, 1, 128>}, {transform_indices = @transform_12, window_bounds = array<i64: 1, 1, 128>}, {transform_indices = @transform_13, window_bounds = array<i64: 1, 1, 128>}, {transform_indices = @transform_14, window_bounds = array<i64: 1, 128, 512>}, {transform_indices = @transform_15, window_bounds = array<i64: 1, 1, 512>}, {transform_indices = @transform_16, window_bounds = array<i64: 1, 512, 128>}, {transform_indices = @transform_17, window_bounds = array<i64: 1, 1, 128>}, {transform_indices = @transform_18, window_bounds = array<i64: 1, 1, 128>}, {transform_indices = @transform_19, window_bounds = array<i64: 1, 1, 128>}, {pipeline_mode = #tpu.pipeline_mode<synchronous>, transform_indices = @transform_20, window_bounds = array<i64: 128, 128>}, {pipeline_mode = #tpu.pipeline_mode<synchronous>, transform_indices = @transform_21, window_bounds = array<i64: 1, 128>}, {pipeline_mode = #tpu.pipeline_mode<synchronous>, transform_indices = @transform_22, window_bounds = array<i64: 128, 128>}, {pipeline_mode = #tpu.pipeline_mode<synchronous>, transform_indices = @transform_23, window_bounds = array<i64: 1, 128>}, {pipeline_mode = #tpu.pipeline_mode<synchronous>, transform_indices = @transform_24, window_bounds = array<i64: 2, 128>}, {pipeline_mode = #tpu.pipeline_mode<synchronous>, transform_indices = @transform_25, window_bounds = array<i64: 2, 128>}]} {
    %c0_i32 = arith.constant 0 : i32
    %0 = arith.cmpi eq, %arg0, %c0_i32 : i32
    %1 = arith.extui %0 : i1 to i32
    %c0_i32_0 = arith.constant 0 : i32
    %2 = arith.cmpi ne, %1, %c0_i32_0 : i32
    scf.if %2 {
      %c0_94 = arith.constant 0 : index
      %c0_95 = arith.constant 0 : index
      %220 = vector.load %arg1[%c0_94, %c0_95] : memref<16x128xf32, #tpu.memory_space<vmem>>, vector<16x128xf32>
      %c0_96 = arith.constant 0 : index
      %c0_97 = arith.constant 0 : index
      %221 = vector.load %arg3[%c0_96, %c0_97] : memref<1x128xf32, #tpu.memory_space<vmem>>, vector<1x128xf32>
      %c0_98 = arith.constant 0 : index
      %c0_99 = arith.constant 0 : index
      %222 = vector.load %arg4[%c0_98, %c0_99] : memref<1x128xf32, #tpu.memory_space<vmem>>, vector<1x128xf32>
      %cst_100 = arith.constant dense<0.000000e+00> : vector<16xf32>
      %223 = vector.multi_reduction <add>, %220, %cst_100 [1] : vector<16x128xf32> to vector<16xf32>
      %224 = vector.shape_cast %223 : vector<16xf32> to vector<16x1xf32>
      %cst_101 = arith.constant 1.280000e+02 : f32
      %225 = vector.broadcast %cst_101 : f32 to vector<16x1xf32>
      %226 = arith.divf %224, %225 : vector<16x1xf32>
      %227 = vector.broadcast %226 : vector<16x1xf32> to vector<16x128xf32>
      %228 = arith.subf %220, %227 : vector<16x128xf32>
      %229 = arith.mulf %228, %228 : vector<16x128xf32>
      %cst_102 = arith.constant dense<0.000000e+00> : vector<16xf32>
      %230 = vector.multi_reduction <add>, %229, %cst_102 [1] : vector<16x128xf32> to vector<16xf32>
      %231 = vector.shape_cast %230 : vector<16xf32> to vector<16x1xf32>
      %cst_103 = arith.constant 1.280000e+02 : f32
      %232 = vector.broadcast %cst_103 : f32 to vector<16x1xf32>
      %233 = arith.divf %231, %232 : vector<16x1xf32>
      %234 = vector.broadcast %226 : vector<16x1xf32> to vector<16x128xf32>
      %235 = arith.subf %220, %234 : vector<16x128xf32>
      %cst_104 = arith.constant 9.99999974E-6 : f32
      %236 = vector.broadcast %cst_104 : f32 to vector<16x1xf32>
      %237 = arith.addf %233, %236 : vector<16x1xf32>
      %238 = math.rsqrt %237 : vector<16x1xf32>
      %239 = vector.broadcast %238 : vector<16x1xf32> to vector<16x128xf32>
      %240 = arith.mulf %235, %239 : vector<16x128xf32>
      %241 = vector.broadcast %221 : vector<1x128xf32> to vector<16x128xf32>
      %242 = arith.mulf %240, %241 : vector<16x128xf32>
      %243 = vector.broadcast %222 : vector<1x128xf32> to vector<16x128xf32>
      %244 = arith.addf %242, %243 : vector<16x128xf32>
      %c0_105 = arith.constant 0 : index
      %c0_106 = arith.constant 0 : index
      %245 = vector.load %arg27[%c0_105, %c0_106] : memref<16x128xf32, #tpu.memory_space<vmem>>, vector<16x128xf32>
      tpu.vector_store %arg27[%c0_105, %c0_106], %244 {strides = array<i32>} : memref<16x128xf32, #tpu.memory_space<vmem>>, vector<16x128xf32>,
    } else {
    }
    %c0 = arith.constant 0 : index
    %c0_1 = arith.constant 0 : index
    %3 = vector.load %arg27[%c0, %c0_1] : memref<16x128xf32, #tpu.memory_space<vmem>>, vector<16x128xf32>
    %4 = arith.truncf %3 : vector<16x128xf32> to vector<16x128xbf16>
    %c0_2 = arith.constant 0 : index
    %c0_3 = arith.constant 0 : index
    %c0_4 = arith.constant 0 : index
    %5 = vector.load %arg5[%c0_2, %c0_3, %c0_4] : memref<1x128x128xbf16, #tpu.memory_space<vmem>>, vector<1x128x128xbf16>
    %6 = vector.shape_cast %5 : vector<1x128x128xbf16> to vector<128x128xbf16>
    %cst = arith.constant dense<0.000000e+00> : vector<16x128xf32>
    %7 = tpu.matmul %4, %6, %cst {dimension_numbers = #tpu.dot_dimension_numbers<[1], [0], [0], [1], [0, 0, 1, 1], [], []>} : vector<16x128xbf16>, vector<128x128xbf16>, vector<16x128xf32> -> vector<16x128xf32>
    %c0_5 = arith.constant 0 : index
    %c0_6 = arith.constant 0 : index
    %c0_7 = arith.constant 0 : index
    %8 = vector.load %arg6[%c0_5, %c0_6, %c0_7] : memref<1x1x128xf32, #tpu.memory_space<vmem>>, vector<1x1x128xf32>
    %9 = vector.shape_cast %8 : vector<1x1x128xf32> to vector<1x128xf32>
    %10 = vector.broadcast %9 : vector<1x128xf32> to vector<16x128xf32>
    %11 = arith.addf %7, %10 : vector<16x128xf32>
    %c0_8 = arith.constant 0 : index
    %c0_9 = arith.constant 0 : index
    %c0_10 = arith.constant 0 : index
    %12 = vector.load %arg7[%c0_8, %c0_9, %c0_10] : memref<1x128x128xbf16, #tpu.memory_space<vmem>>, vector<1x128x128xbf16>
    %13 = vector.shape_cast %12 : vector<1x128x128xbf16> to vector<128x128xbf16>
    %cst_11 = arith.constant dense<0.000000e+00> : vector<16x128xf32>
    %14 = tpu.matmul %4, %13, %cst_11 {dimension_numbers = #tpu.dot_dimension_numbers<[1], [0], [0], [1], [0, 0, 1, 1], [], []>} : vector<16x128xbf16>, vector<128x128xbf16>, vector<16x128xf32> -> vector<16x128xf32>
    %c0_12 = arith.constant 0 : index
    %c0_13 = arith.constant 0 : index
    %c0_14 = arith.constant 0 : index
    %15 = vector.load %arg8[%c0_12, %c0_13, %c0_14] : memref<1x1x128xf32, #tpu.memory_space<vmem>>, vector<1x1x128xf32>
    %16 = vector.shape_cast %15 : vector<1x1x128xf32> to vector<1x128xf32>
    %17 = vector.broadcast %16 : vector<1x128xf32> to vector<16x128xf32>
    %18 = arith.addf %14, %17 : vector<16x128xf32>
    %c0_15 = arith.constant 0 : index
    %c0_16 = arith.constant 0 : index
    %c0_17 = arith.constant 0 : index
    %19 = vector.load %arg9[%c0_15, %c0_16, %c0_17] : memref<1x128x128xbf16, #tpu.memory_space<vmem>>, vector<1x128x128xbf16>
    %20 = vector.shape_cast %19 : vector<1x128x128xbf16> to vector<128x128xbf16>
    %cst_18 = arith.constant dense<0.000000e+00> : vector<16x128xf32>
    %21 = tpu.matmul %4, %20, %cst_18 {dimension_numbers = #tpu.dot_dimension_numbers<[1], [0], [0], [1], [0, 0, 1, 1], [], []>} : vector<16x128xbf16>, vector<128x128xbf16>, vector<16x128xf32> -> vector<16x128xf32>
    %c0_19 = arith.constant 0 : index
    %c0_20 = arith.constant 0 : index
    %c0_21 = arith.constant 0 : index
    %22 = vector.load %arg10[%c0_19, %c0_20, %c0_21] : memref<1x1x128xf32, #tpu.memory_space<vmem>>, vector<1x1x128xf32>
    %23 = vector.shape_cast %22 : vector<1x1x128xf32> to vector<1x128xf32>
    %24 = vector.broadcast %23 : vector<1x128xf32> to vector<16x128xf32>
    %25 = arith.addf %21, %24 : vector<16x128xf32>
    %26 = vector.shape_cast %11 : vector<16x128xf32> to vector<2x8x128xf32>
    %27 = vector.shape_cast %18 : vector<16x128xf32> to vector<2x8x128xf32>
    %28 = vector.shape_cast %25 : vector<16x128xf32> to vector<2x8x128xf32>
    %c0_22 = arith.constant 0 : index
    %c0_23 = arith.constant 0 : index
    %29 = vector.load %arg2[%c0_22, %c0_23] : memref<2x8xf32, #tpu.memory_space<vmem>>, vector<2x8xf32>
    %30 = vector.shape_cast %29 : vector<2x8xf32> to vector<2x1x8xf32>
    %31 = vector.extract_strided_slice %26 {offsets = [0, 0, 0], sizes = [2, 8, 32], strides = [1, 1, 1]} : vector<2x8x128xf32> to vector<2x8x32xf32>
    %32 = arith.truncf %31 : vector<2x8x32xf32> to vector<2x8x32xbf16>
    %33 = vector.extract_strided_slice %27 {offsets = [0, 0, 0], sizes = [2, 8, 32], strides = [1, 1, 1]} : vector<2x8x128xf32> to vector<2x8x32xf32>
    %34 = arith.truncf %33 : vector<2x8x32xf32> to vector<2x8x32xbf16>
    %35 = vector.extract_strided_slice %28 {offsets = [0, 0, 0], sizes = [2, 8, 32], strides = [1, 1, 1]} : vector<2x8x128xf32> to vector<2x8x32xf32>
    %36 = arith.truncf %35 : vector<2x8x32xf32> to vector<2x8x32xbf16>
    "tpu.trace_start"() <{level = 10 : i32, message = "bqd,bkd->bqk"}> : () -> ()
    %cst_24 = arith.constant dense<0.000000e+00> : vector<2x8x8xf32>
    %37 = tpu.matmul %32, %34, %cst_24 {dimension_numbers = #tpu.dot_dimension_numbers<[2], [2], [1], [1], [0, 0, 0, 1, 1, 1], [0], [0]>} : vector<2x8x32xbf16>, vector<2x8x32xbf16>, vector<2x8x8xf32> -> vector<2x8x8xf32>
    "tpu.trace_stop"() : () -> ()
    %cst_25 = arith.constant 0.176776692 : f32
    %38 = vector.broadcast %cst_25 : f32 to vector<2x8x8xf32>
    %39 = arith.mulf %37, %38 : vector<2x8x8xf32>
    %40 = vector.broadcast %30 : vector<2x1x8xf32> to vector<2x8x8xf32>
    %41 = arith.addf %39, %40 : vector<2x8x8xf32>
    %cst_26 = arith.constant dense<0xFF800000> : vector<2x8xf32>
    %42 = vector.multi_reduction <maximumf>, %41, %cst_26 [2] : vector<2x8x8xf32> to vector<2x8xf32>
    %43 = vector.shape_cast %42 : vector<2x8xf32> to vector<2x8x1xf32>
    %44 = vector.broadcast %43 : vector<2x8x1xf32> to vector<2x8x8xf32>
    %45 = arith.subf %41, %44 : vector<2x8x8xf32>
    %46 = math.exp %45 : vector<2x8x8xf32>
    %cst_27 = arith.constant dense<0.000000e+00> : vector<2x8xf32>
    %47 = vector.multi_reduction <add>, %46, %cst_27 [2] : vector<2x8x8xf32> to vector<2x8xf32>
    %48 = vector.shape_cast %47 : vector<2x8xf32> to vector<2x8x1xf32>
    %49 = tpu.reciprocal %48 {approx = true} : vector<2x8x1xf32> -> vector<2x8x1xf32>
    %50 = vector.broadcast %49 : vector<2x8x1xf32> to vector<2x8x8xf32>
    %51 = arith.mulf %46, %50 : vector<2x8x8xf32>
    %52 = arith.truncf %51 : vector<2x8x8xf32> to vector<2x8x8xbf16>
    "tpu.trace_start"() <{level = 10 : i32, message = "bqk,bkd->bqd"}> : () -> ()
    %cst_28 = arith.constant dense<0.000000e+00> : vector<2x8x32xf32>
    %53 = tpu.matmul %52, %36, %cst_28 {dimension_numbers = #tpu.dot_dimension_numbers<[2], [1], [1], [2], [0, 0, 0, 1, 1, 2], [0], [0]>} : vector<2x8x8xbf16>, vector<2x8x32xbf16>, vector<2x8x32xf32> -> vector<2x8x32xf32>
    "tpu.trace_stop"() : () -> ()
    %54 = vector.extract_strided_slice %26 {offsets = [0, 0, 32], sizes = [2, 8, 32], strides = [1, 1, 1]} : vector<2x8x128xf32> to vector<2x8x32xf32>
    %55 = arith.truncf %54 : vector<2x8x32xf32> to vector<2x8x32xbf16>
    %56 = vector.extract_strided_slice %27 {offsets = [0, 0, 32], sizes = [2, 8, 32], strides = [1, 1, 1]} : vector<2x8x128xf32> to vector<2x8x32xf32>
    %57 = arith.truncf %56 : vector<2x8x32xf32> to vector<2x8x32xbf16>
    %58 = vector.extract_strided_slice %28 {offsets = [0, 0, 32], sizes = [2, 8, 32], strides = [1, 1, 1]} : vector<2x8x128xf32> to vector<2x8x32xf32>
    %59 = arith.truncf %58 : vector<2x8x32xf32> to vector<2x8x32xbf16>
    "tpu.trace_start"() <{level = 10 : i32, message = "bqd,bkd->bqk"}> : () -> ()
    %cst_29 = arith.constant dense<0.000000e+00> : vector<2x8x8xf32>
    %60 = tpu.matmul %55, %57, %cst_29 {dimension_numbers = #tpu.dot_dimension_numbers<[2], [2], [1], [1], [0, 0, 0, 1, 1, 1], [0], [0]>} : vector<2x8x32xbf16>, vector<2x8x32xbf16>, vector<2x8x8xf32> -> vector<2x8x8xf32>
    "tpu.trace_stop"() : () -> ()
    %cst_30 = arith.constant 0.176776692 : f32
    %61 = vector.broadcast %cst_30 : f32 to vector<2x8x8xf32>
    %62 = arith.mulf %60, %61 : vector<2x8x8xf32>
    %63 = vector.broadcast %30 : vector<2x1x8xf32> to vector<2x8x8xf32>
    %64 = arith.addf %62, %63 : vector<2x8x8xf32>
    %cst_31 = arith.constant dense<0xFF800000> : vector<2x8xf32>
    %65 = vector.multi_reduction <maximumf>, %64, %cst_31 [2] : vector<2x8x8xf32> to vector<2x8xf32>
    %66 = vector.shape_cast %65 : vector<2x8xf32> to vector<2x8x1xf32>
    %67 = vector.broadcast %66 : vector<2x8x1xf32> to vector<2x8x8xf32>
    %68 = arith.subf %64, %67 : vector<2x8x8xf32>
    %69 = math.exp %68 : vector<2x8x8xf32>
    %cst_32 = arith.constant dense<0.000000e+00> : vector<2x8xf32>
    %70 = vector.multi_reduction <add>, %69, %cst_32 [2] : vector<2x8x8xf32> to vector<2x8xf32>
    %71 = vector.shape_cast %70 : vector<2x8xf32> to vector<2x8x1xf32>
    %72 = tpu.reciprocal %71 {approx = true} : vector<2x8x1xf32> -> vector<2x8x1xf32>
    %73 = vector.broadcast %72 : vector<2x8x1xf32> to vector<2x8x8xf32>
    %74 = arith.mulf %69, %73 : vector<2x8x8xf32>
    %75 = arith.truncf %74 : vector<2x8x8xf32> to vector<2x8x8xbf16>
    "tpu.trace_start"() <{level = 10 : i32, message = "bqk,bkd->bqd"}> : () -> ()
    %cst_33 = arith.constant dense<0.000000e+00> : vector<2x8x32xf32>
    %76 = tpu.matmul %75, %59, %cst_33 {dimension_numbers = #tpu.dot_dimension_numbers<[2], [1], [1], [2], [0, 0, 0, 1, 1, 2], [0], [0]>} : vector<2x8x8xbf16>, vector<2x8x32xbf16>, vector<2x8x32xf32> -> vector<2x8x32xf32>
    "tpu.trace_stop"() : () -> ()
    %77 = vector.extract_strided_slice %26 {offsets = [0, 0, 64], sizes = [2, 8, 32], strides = [1, 1, 1]} : vector<2x8x128xf32> to vector<2x8x32xf32>
    %78 = arith.truncf %77 : vector<2x8x32xf32> to vector<2x8x32xbf16>
    %79 = vector.extract_strided_slice %27 {offsets = [0, 0, 64], sizes = [2, 8, 32], strides = [1, 1, 1]} : vector<2x8x128xf32> to vector<2x8x32xf32>
    %80 = arith.truncf %79 : vector<2x8x32xf32> to vector<2x8x32xbf16>
    %81 = vector.extract_strided_slice %28 {offsets = [0, 0, 64], sizes = [2, 8, 32], strides = [1, 1, 1]} : vector<2x8x128xf32> to vector<2x8x32xf32>
    %82 = arith.truncf %81 : vector<2x8x32xf32> to vector<2x8x32xbf16>
    "tpu.trace_start"() <{level = 10 : i32, message = "bqd,bkd->bqk"}> : () -> ()
    %cst_34 = arith.constant dense<0.000000e+00> : vector<2x8x8xf32>
    %83 = tpu.matmul %78, %80, %cst_34 {dimension_numbers = #tpu.dot_dimension_numbers<[2], [2], [1], [1], [0, 0, 0, 1, 1, 1], [0], [0]>} : vector<2x8x32xbf16>, vector<2x8x32xbf16>, vector<2x8x8xf32> -> vector<2x8x8xf32>
    "tpu.trace_stop"() : () -> ()
    %cst_35 = arith.constant 0.176776692 : f32
    %84 = vector.broadcast %cst_35 : f32 to vector<2x8x8xf32>
    %85 = arith.mulf %83, %84 : vector<2x8x8xf32>
    %86 = vector.broadcast %30 : vector<2x1x8xf32> to vector<2x8x8xf32>
    %87 = arith.addf %85, %86 : vector<2x8x8xf32>
    %cst_36 = arith.constant dense<0xFF800000> : vector<2x8xf32>
    %88 = vector.multi_reduction <maximumf>, %87, %cst_36 [2] : vector<2x8x8xf32> to vector<2x8xf32>
    %89 = vector.shape_cast %88 : vector<2x8xf32> to vector<2x8x1xf32>
    %90 = vector.broadcast %89 : vector<2x8x1xf32> to vector<2x8x8xf32>
    %91 = arith.subf %87, %90 : vector<2x8x8xf32>
    %92 = math.exp %91 : vector<2x8x8xf32>
    %cst_37 = arith.constant dense<0.000000e+00> : vector<2x8xf32>
    %93 = vector.multi_reduction <add>, %92, %cst_37 [2] : vector<2x8x8xf32> to vector<2x8xf32>
    %94 = vector.shape_cast %93 : vector<2x8xf32> to vector<2x8x1xf32>
    %95 = tpu.reciprocal %94 {approx = true} : vector<2x8x1xf32> -> vector<2x8x1xf32>
    %96 = vector.broadcast %95 : vector<2x8x1xf32> to vector<2x8x8xf32>
    %97 = arith.mulf %92, %96 : vector<2x8x8xf32>
    %98 = arith.truncf %97 : vector<2x8x8xf32> to vector<2x8x8xbf16>
    "tpu.trace_start"() <{level = 10 : i32, message = "bqk,bkd->bqd"}> : () -> ()
    %cst_38 = arith.constant dense<0.000000e+00> : vector<2x8x32xf32>
    %99 = tpu.matmul %98, %82, %cst_38 {dimension_numbers = #tpu.dot_dimension_numbers<[2], [1], [1], [2], [0, 0, 0, 1, 1, 2], [0], [0]>} : vector<2x8x8xbf16>, vector<2x8x32xbf16>, vector<2x8x32xf32> -> vector<2x8x32xf32>
    "tpu.trace_stop"() : () -> ()
    %100 = vector.extract_strided_slice %26 {offsets = [0, 0, 96], sizes = [2, 8, 32], strides = [1, 1, 1]} : vector<2x8x128xf32> to vector<2x8x32xf32>
    %101 = arith.truncf %100 : vector<2x8x32xf32> to vector<2x8x32xbf16>
    %102 = vector.extract_strided_slice %27 {offsets = [0, 0, 96], sizes = [2, 8, 32], strides = [1, 1, 1]} : vector<2x8x128xf32> to vector<2x8x32xf32>
    %103 = arith.truncf %102 : vector<2x8x32xf32> to vector<2x8x32xbf16>
    %104 = vector.extract_strided_slice %28 {offsets = [0, 0, 96], sizes = [2, 8, 32], strides = [1, 1, 1]} : vector<2x8x128xf32> to vector<2x8x32xf32>
    %105 = arith.truncf %104 : vector<2x8x32xf32> to vector<2x8x32xbf16>
    "tpu.trace_start"() <{level = 10 : i32, message = "bqd,bkd->bqk"}> : () -> ()
    %cst_39 = arith.constant dense<0.000000e+00> : vector<2x8x8xf32>
    %106 = tpu.matmul %101, %103, %cst_39 {dimension_numbers = #tpu.dot_dimension_numbers<[2], [2], [1], [1], [0, 0, 0, 1, 1, 1], [0], [0]>} : vector<2x8x32xbf16>, vector<2x8x32xbf16>, vector<2x8x8xf32> -> vector<2x8x8xf32>
    "tpu.trace_stop"() : () -> ()
    %cst_40 = arith.constant 0.176776692 : f32
    %107 = vector.broadcast %cst_40 : f32 to vector<2x8x8xf32>
    %108 = arith.mulf %106, %107 : vector<2x8x8xf32>
    %109 = vector.broadcast %30 : vector<2x1x8xf32> to vector<2x8x8xf32>
    %110 = arith.addf %108, %109 : vector<2x8x8xf32>
    %cst_41 = arith.constant dense<0xFF800000> : vector<2x8xf32>
    %111 = vector.multi_reduction <maximumf>, %110, %cst_41 [2] : vector<2x8x8xf32> to vector<2x8xf32>
    %112 = vector.shape_cast %111 : vector<2x8xf32> to vector<2x8x1xf32>
    %113 = vector.broadcast %112 : vector<2x8x1xf32> to vector<2x8x8xf32>
    %114 = arith.subf %110, %113 : vector<2x8x8xf32>
    %115 = math.exp %114 : vector<2x8x8xf32>
    %cst_42 = arith.constant dense<0.000000e+00> : vector<2x8xf32>
    %116 = vector.multi_reduction <add>, %115, %cst_42 [2] : vector<2x8x8xf32> to vector<2x8xf32>
    %117 = vector.shape_cast %116 : vector<2x8xf32> to vector<2x8x1xf32>
    %118 = tpu.reciprocal %117 {approx = true} : vector<2x8x1xf32> -> vector<2x8x1xf32>
    %119 = vector.broadcast %118 : vector<2x8x1xf32> to vector<2x8x8xf32>
    %120 = arith.mulf %115, %119 : vector<2x8x8xf32>
    %121 = arith.truncf %120 : vector<2x8x8xf32> to vector<2x8x8xbf16>
    "tpu.trace_start"() <{level = 10 : i32, message = "bqk,bkd->bqd"}> : () -> ()
    %cst_43 = arith.constant dense<0.000000e+00> : vector<2x8x32xf32>
    %122 = tpu.matmul %121, %105, %cst_43 {dimension_numbers = #tpu.dot_dimension_numbers<[2], [1], [1], [2], [0, 0, 0, 1, 1, 2], [0], [0]>} : vector<2x8x8xbf16>, vector<2x8x32xbf16>, vector<2x8x32xf32> -> vector<2x8x32xf32>
    "tpu.trace_stop"() : () -> ()
    %123 = tpu.concatenate %53, %76, %99, %122 in 2 : vector<2x8x32xf32>, vector<2x8x32xf32>, vector<2x8x32xf32>, vector<2x8x32xf32> -> vector<2x8x128xf32>
    %124 = vector.shape_cast %123 : vector<2x8x128xf32> to vector<16x128xf32>
    %125 = arith.truncf %124 : vector<16x128xf32> to vector<16x128xbf16>
    %c0_44 = arith.constant 0 : index
    %c0_45 = arith.constant 0 : index
    %c0_46 = arith.constant 0 : index
    %126 = vector.load %arg11[%c0_44, %c0_45, %c0_46] : memref<1x128x128xbf16, #tpu.memory_space<vmem>>, vector<1x128x128xbf16>
    %127 = vector.shape_cast %126 : vector<1x128x128xbf16> to vector<128x128xbf16>
    %cst_47 = arith.constant dense<0.000000e+00> : vector<16x128xf32>
    %128 = tpu.matmul %125, %127, %cst_47 {dimension_numbers = #tpu.dot_dimension_numbers<[1], [0], [0], [1], [0, 0, 1, 1], [], []>} : vector<16x128xbf16>, vector<128x128xbf16>, vector<16x128xf32> -> vector<16x128xf32>
    %c0_48 = arith.constant 0 : index
    %c0_49 = arith.constant 0 : index
    %c0_50 = arith.constant 0 : index
    %129 = vector.load %arg12[%c0_48, %c0_49, %c0_50] : memref<1x1x128xf32, #tpu.memory_space<vmem>>, vector<1x1x128xf32>
    %130 = vector.shape_cast %129 : vector<1x1x128xf32> to vector<1x128xf32>
    %131 = vector.broadcast %130 : vector<1x128xf32> to vector<16x128xf32>
    %132 = arith.addf %128, %131 : vector<16x128xf32>
    %133 = arith.addf %3, %132 : vector<16x128xf32>
    %c0_51 = arith.constant 0 : index
    %c0_52 = arith.constant 0 : index
    %c0_53 = arith.constant 0 : index
    %134 = vector.load %arg13[%c0_51, %c0_52, %c0_53] : memref<1x1x128xf32, #tpu.memory_space<vmem>>, vector<1x1x128xf32>
    %135 = vector.shape_cast %134 : vector<1x1x128xf32> to vector<1x128xf32>
    %c0_54 = arith.constant 0 : index
    %c0_55 = arith.constant 0 : index
    %c0_56 = arith.constant 0 : index
    %136 = vector.load %arg14[%c0_54, %c0_55, %c0_56] : memref<1x1x128xf32, #tpu.memory_space<vmem>>, vector<1x1x128xf32>
    %137 = vector.shape_cast %136 : vector<1x1x128xf32> to vector<1x128xf32>
    %cst_57 = arith.constant dense<0.000000e+00> : vector<16xf32>
    %138 = vector.multi_reduction <add>, %133, %cst_57 [1] : vector<16x128xf32> to vector<16xf32>
    %139 = vector.shape_cast %138 : vector<16xf32> to vector<16x1xf32>
    %cst_58 = arith.constant 1.280000e+02 : f32
    %140 = vector.broadcast %cst_58 : f32 to vector<16x1xf32>
    %141 = arith.divf %139, %140 : vector<16x1xf32>
    %142 = vector.broadcast %141 : vector<16x1xf32> to vector<16x128xf32>
    %143 = arith.subf %133, %142 : vector<16x128xf32>
    %144 = arith.mulf %143, %143 : vector<16x128xf32>
    %cst_59 = arith.constant dense<0.000000e+00> : vector<16xf32>
    %145 = vector.multi_reduction <add>, %144, %cst_59 [1] : vector<16x128xf32> to vector<16xf32>
    %146 = vector.shape_cast %145 : vector<16xf32> to vector<16x1xf32>
    %cst_60 = arith.constant 1.280000e+02 : f32
    %147 = vector.broadcast %cst_60 : f32 to vector<16x1xf32>
    %148 = arith.divf %146, %147 : vector<16x1xf32>
    %149 = vector.broadcast %141 : vector<16x1xf32> to vector<16x128xf32>
    %150 = arith.subf %133, %149 : vector<16x128xf32>
    %cst_61 = arith.constant 9.99999974E-6 : f32
    %151 = vector.broadcast %cst_61 : f32 to vector<16x1xf32>
    %152 = arith.addf %148, %151 : vector<16x1xf32>
    %153 = math.rsqrt %152 : vector<16x1xf32>
    %154 = vector.broadcast %153 : vector<16x1xf32> to vector<16x128xf32>
    %155 = arith.mulf %150, %154 : vector<16x128xf32>
    %156 = vector.broadcast %135 : vector<1x128xf32> to vector<16x128xf32>
    %157 = arith.mulf %155, %156 : vector<16x128xf32>
    %158 = vector.broadcast %137 : vector<1x128xf32> to vector<16x128xf32>
    %159 = arith.addf %157, %158 : vector<16x128xf32>
    %160 = arith.truncf %159 : vector<16x128xf32> to vector<16x128xbf16>
    %c0_62 = arith.constant 0 : index
    %c0_63 = arith.constant 0 : index
    %c0_64 = arith.constant 0 : index
    %161 = vector.load %arg15[%c0_62, %c0_63, %c0_64] : memref<1x128x512xbf16, #tpu.memory_space<vmem>>, vector<1x128x512xbf16>
    %162 = vector.shape_cast %161 : vector<1x128x512xbf16> to vector<128x512xbf16>
    %cst_65 = arith.constant dense<0.000000e+00> : vector<16x512xf32>
    %163 = tpu.matmul %160, %162, %cst_65 {dimension_numbers = #tpu.dot_dimension_numbers<[1], [0], [0], [1], [0, 0, 1, 1], [], []>} : vector<16x128xbf16>, vector<128x512xbf16>, vector<16x512xf32> -> vector<16x512xf32>
    %c0_66 = arith.constant 0 : index
    %c0_67 = arith.constant 0 : index
    %c0_68 = arith.constant 0 : index
    %164 = vector.load %arg16[%c0_66, %c0_67, %c0_68] : memref<1x1x512xf32, #tpu.memory_space<vmem>>, vector<1x1x512xf32>
    %165 = vector.shape_cast %164 : vector<1x1x512xf32> to vector<1x512xf32>
    %166 = vector.broadcast %165 : vector<1x512xf32> to vector<16x512xf32>
    %167 = arith.addf %163, %166 : vector<16x512xf32>
    %168 = arith.mulf %167, %167 : vector<16x512xf32>
    %169 = arith.mulf %167, %168 : vector<16x512xf32>
    %cst_69 = arith.constant 4.471500e-02 : f32
    %170 = vector.broadcast %cst_69 : f32 to vector<16x512xf32>
    %171 = arith.mulf %170, %169 : vector<16x512xf32>
    %172 = arith.addf %167, %171 : vector<16x512xf32>
    %cst_70 = arith.constant 0.797884583 : f32
    %173 = vector.broadcast %cst_70 : f32 to vector<16x512xf32>
    %174 = arith.mulf %173, %172 : vector<16x512xf32>
    %175 = math.tanh %174 : vector<16x512xf32>
    %cst_71 = arith.constant 1.000000e+00 : f32
    %176 = vector.broadcast %cst_71 : f32 to vector<16x512xf32>
    %177 = arith.addf %176, %175 : vector<16x512xf32>
    %cst_72 = arith.constant 5.000000e-01 : f32
    %178 = vector.broadcast %cst_72 : f32 to vector<16x512xf32>
    %179 = arith.mulf %178, %177 : vector<16x512xf32>
    %180 = arith.mulf %167, %179 : vector<16x512xf32>
    %181 = arith.truncf %180 : vector<16x512xf32> to vector<16x512xbf16>
    %c0_73 = arith.constant 0 : index
    %c0_74 = arith.constant 0 : index
    %c0_75 = arith.constant 0 : index
    %182 = vector.load %arg17[%c0_73, %c0_74, %c0_75] : memref<1x512x128xbf16, #tpu.memory_space<vmem>>, vector<1x512x128xbf16>
    %183 = vector.shape_cast %182 : vector<1x512x128xbf16> to vector<512x128xbf16>
    %cst_76 = arith.constant dense<0.000000e+00> : vector<16x128xf32>
    %184 = tpu.matmul %181, %183, %cst_76 {dimension_numbers = #tpu.dot_dimension_numbers<[1], [0], [0], [1], [0, 0, 1, 1], [], []>} : vector<16x512xbf16>, vector<512x128xbf16>, vector<16x128xf32> -> vector<16x128xf32>
    %c0_77 = arith.constant 0 : index
    %c0_78 = arith.constant 0 : index
    %c0_79 = arith.constant 0 : index
    %185 = vector.load %arg18[%c0_77, %c0_78, %c0_79] : memref<1x1x128xf32, #tpu.memory_space<vmem>>, vector<1x1x128xf32>
    %186 = vector.shape_cast %185 : vector<1x1x128xf32> to vector<1x128xf32>
    %187 = vector.broadcast %186 : vector<1x128xf32> to vector<16x128xf32>
    %188 = arith.addf %184, %187 : vector<16x128xf32>
    %189 = arith.addf %159, %188 : vector<16x128xf32>
    %c0_80 = arith.constant 0 : index
    %c0_81 = arith.constant 0 : index
    %c0_82 = arith.constant 0 : index
    %190 = vector.load %arg19[%c0_80, %c0_81, %c0_82] : memref<1x1x128xf32, #tpu.memory_space<vmem>>, vector<1x1x128xf32>
    %191 = vector.shape_cast %190 : vector<1x1x128xf32> to vector<1x128xf32>
    %c0_83 = arith.constant 0 : index
    %c0_84 = arith.constant 0 : index
    %c0_85 = arith.constant 0 : index
    %192 = vector.load %arg20[%c0_83, %c0_84, %c0_85] : memref<1x1x128xf32, #tpu.memory_space<vmem>>, vector<1x1x128xf32>
    %193 = vector.shape_cast %192 : vector<1x1x128xf32> to vector<1x128xf32>
    %cst_86 = arith.constant dense<0.000000e+00> : vector<16xf32>
    %194 = vector.multi_reduction <add>, %189, %cst_86 [1] : vector<16x128xf32> to vector<16xf32>
    %195 = vector.shape_cast %194 : vector<16xf32> to vector<16x1xf32>
    %cst_87 = arith.constant 1.280000e+02 : f32
    %196 = vector.broadcast %cst_87 : f32 to vector<16x1xf32>
    %197 = arith.divf %195, %196 : vector<16x1xf32>
    %198 = vector.broadcast %197 : vector<16x1xf32> to vector<16x128xf32>
    %199 = arith.subf %189, %198 : vector<16x128xf32>
    %200 = arith.mulf %199, %199 : vector<16x128xf32>
    %cst_88 = arith.constant dense<0.000000e+00> : vector<16xf32>
    %201 = vector.multi_reduction <add>, %200, %cst_88 [1] : vector<16x128xf32> to vector<16xf32>
    %202 = vector.shape_cast %201 : vector<16xf32> to vector<16x1xf32>
    %cst_89 = arith.constant 1.280000e+02 : f32
    %203 = vector.broadcast %cst_89 : f32 to vector<16x1xf32>
    %204 = arith.divf %202, %203 : vector<16x1xf32>
    %205 = vector.broadcast %197 : vector<16x1xf32> to vector<16x128xf32>
    %206 = arith.subf %189, %205 : vector<16x128xf32>
    %cst_90 = arith.constant 9.99999974E-6 : f32
    %207 = vector.broadcast %cst_90 : f32 to vector<16x1xf32>
    %208 = arith.addf %204, %207 : vector<16x1xf32>
    %209 = math.rsqrt %208 : vector<16x1xf32>
    %210 = vector.broadcast %209 : vector<16x1xf32> to vector<16x128xf32>
    %211 = arith.mulf %206, %210 : vector<16x128xf32>
    %212 = vector.broadcast %191 : vector<1x128xf32> to vector<16x128xf32>
    %213 = arith.mulf %211, %212 : vector<16x128xf32>
    %214 = vector.broadcast %193 : vector<1x128xf32> to vector<16x128xf32>
    %215 = arith.addf %213, %214 : vector<16x128xf32>
    %c0_91 = arith.constant 0 : index
    %c0_92 = arith.constant 0 : index
    %216 = vector.load %arg27[%c0_91, %c0_92] : memref<16x128xf32, #tpu.memory_space<vmem>>, vector<16x128xf32>
    tpu.vector_store %arg27[%c0_91, %c0_92], %215 {strides = array<i32>} : memref<16x128xf32, #tpu.memory_space<vmem>>, vector<16x128xf32>,
    %c1_i32 = arith.constant 1 : i32
    %217 = arith.cmpi eq, %arg0, %c1_i32 : i32
    %218 = arith.extui %217 : i1 to i32
    %c0_i32_93 = arith.constant 0 : i32
    %219 = arith.cmpi ne, %218, %c0_i32_93 : i32
    scf.if %219 {
      %220 = vector.shape_cast %215 : vector<16x128xf32> to vector<2x8x128xf32>
      %221 = vector.extract_strided_slice %220 {offsets = [0, 0, 0], sizes = [2, 1, 128], strides = [1, 1, 1]} : vector<2x8x128xf32> to vector<2x1x128xf32>
      %222 = vector.shape_cast %221 : vector<2x1x128xf32> to vector<2x128xf32>
      %223 = arith.truncf %222 : vector<2x128xf32> to vector<2x128xbf16>
      %c0_94 = arith.constant 0 : index
      %c0_95 = arith.constant 0 : index
      %224 = vector.load %arg21[%c0_94, %c0_95] : memref<128x128xbf16, #tpu.memory_space<vmem>>, vector<128x128xbf16>
      %cst_96 = arith.constant dense<0.000000e+00> : vector<2x128xf32>
      %225 = tpu.matmul %223, %224, %cst_96 {dimension_numbers = #tpu.dot_dimension_numbers<[1], [0], [0], [1], [0, 0, 1, 1], [], []>} : vector<2x128xbf16>, vector<128x128xbf16>, vector<2x128xf32> -> vector<2x128xf32>
      %c0_97 = arith.constant 0 : index
      %c0_98 = arith.constant 0 : index
      %226 = vector.load %arg22[%c0_97, %c0_98] : memref<1x128xf32, #tpu.memory_space<vmem>>, vector<1x128xf32>
      %227 = vector.broadcast %226 : vector<1x128xf32> to vector<2x128xf32>
      %228 = arith.addf %225, %227 : vector<2x128xf32>
      %229 = math.tanh %228 : vector<2x128xf32>
      %c0_99 = arith.constant 0 : index
      %c0_100 = arith.constant 0 : index
      %230 = vector.load %arg25[%c0_99, %c0_100] : memref<2x128xf32, #tpu.memory_space<vmem>>, vector<2x128xf32>
      tpu.vector_store %arg25[%c0_99, %c0_100], %229 {strides = array<i32>} : memref<2x128xf32, #tpu.memory_space<vmem>>, vector<2x128xf32>,
      %231 = arith.truncf %229 : vector<2x128xf32> to vector<2x128xbf16>
      %c0_101 = arith.constant 0 : index
      %c0_102 = arith.constant 0 : index
      %232 = vector.load %arg23[%c0_101, %c0_102] : memref<128x128xbf16, #tpu.memory_space<vmem>>, vector<128x128xbf16>
      %cst_103 = arith.constant dense<0.000000e+00> : vector<2x128xf32>
      %233 = tpu.matmul %231, %232, %cst_103 {dimension_numbers = #tpu.dot_dimension_numbers<[1], [0], [0], [1], [0, 0, 1, 1], [], []>} : vector<2x128xbf16>, vector<128x128xbf16>, vector<2x128xf32> -> vector<2x128xf32>
      %c0_104 = arith.constant 0 : index
      %c0_105 = arith.constant 0 : index
      %234 = vector.load %arg24[%c0_104, %c0_105] : memref<1x128xf32, #tpu.memory_space<vmem>>, vector<1x128xf32>
      %235 = vector.broadcast %234 : vector<1x128xf32> to vector<2x128xf32>
      %236 = arith.addf %233, %235 : vector<2x128xf32>
      %c0_106 = arith.constant 0 : index
      %c0_107 = arith.constant 0 : index
      %237 = vector.load %arg26[%c0_106, %c0_107] : memref<2x128xf32, #tpu.memory_space<vmem>>, vector<2x128xf32>
      tpu.vector_store %arg26[%c0_106, %c0_107], %236 {strides = array<i32>} : memref<2x128xf32, #tpu.memory_space<vmem>>, vector<2x128xf32>,
    } else {
    }
    return
  }
  func.func @transform_0(%arg0: i32) -> (i32, i32) {
    %c0_i32 = arith.constant 0 : i32
    %c0_i32_0 = arith.constant 0 : i32
    %c0_i32_1 = arith.constant 0 : i32
    return %c0_i32, %c0_i32_0 : i32, i32
  }
  func.func @transform_1(%arg0: i32) -> (i32, i32) {
    %c0_i32 = arith.constant 0 : i32
    %c0_i32_0 = arith.constant 0 : i32
    %c0_i32_1 = arith.constant 0 : i32
    return %c0_i32, %c0_i32_0 : i32, i32
  }
  func.func @transform_2(%arg0: i32) -> (i32, i32) {
    %c0_i32 = arith.constant 0 : i32
    %c0_i32_0 = arith.constant 0 : i32
    %c0_i32_1 = arith.constant 0 : i32
    return %c0_i32, %c0_i32_0 : i32, i32
  }
  func.func @transform_3(%arg0: i32) -> (i32, i32) {
    %c0_i32 = arith.constant 0 : i32
    %c0_i32_0 = arith.constant 0 : i32
    %c0_i32_1 = arith.constant 0 : i32
    return %c0_i32, %c0_i32_0 : i32, i32
  }
  func.func @transform_4(%arg0: i32) -> (i32, i32, i32) {
    %c0_i32 = arith.constant 0 : i32
    %c0_i32_0 = arith.constant 0 : i32
    %c0_i32_1 = arith.constant 0 : i32
    return %arg0, %c0_i32, %c0_i32_0 : i32, i32, i32
  }
  func.func @transform_5(%arg0: i32) -> (i32, i32, i32) {
    %c0_i32 = arith.constant 0 : i32
    %c0_i32_0 = arith.constant 0 : i32
    %c0_i32_1 = arith.constant 0 : i32
    return %arg0, %c0_i32, %c0_i32_0 : i32, i32, i32
  }
  func.func @transform_6(%arg0: i32) -> (i32, i32, i32) {
    %c0_i32 = arith.constant 0 : i32
    %c0_i32_0 = arith.constant 0 : i32
    %c0_i32_1 = arith.constant 0 : i32
    return %arg0, %c0_i32, %c0_i32_0 : i32, i32, i32
  }
  func.func @transform_7(%arg0: i32) -> (i32, i32, i32) {
    %c0_i32 = arith.constant 0 : i32
    %c0_i32_0 = arith.constant 0 : i32
    %c0_i32_1 = arith.constant 0 : i32
    return %arg0, %c0_i32, %c0_i32_0 : i32, i32, i32
  }
  func.func @transform_8(%arg0: i32) -> (i32, i32, i32) {
    %c0_i32 = arith.constant 0 : i32
    %c0_i32_0 = arith.constant 0 : i32
    %c0_i32_1 = arith.constant 0 : i32
    return %arg0, %c0_i32, %c0_i32_0 : i32, i32, i32
  }
  func.func @transform_9(%arg0: i32) -> (i32, i32, i32) {
    %c0_i32 = arith.constant 0 : i32
    %c0_i32_0 = arith.constant 0 : i32
    %c0_i32_1 = arith.constant 0 : i32
    return %arg0, %c0_i32, %c0_i32_0 : i32, i32, i32
  }
  func.func @transform_10(%arg0: i32) -> (i32, i32, i32) {
    %c0_i32 = arith.constant 0 : i32
    %c0_i32_0 = arith.constant 0 : i32
    %c0_i32_1 = arith.constant 0 : i32
    return %arg0, %c0_i32, %c0_i32_0 : i32, i32, i32
  }
  func.func @transform_11(%arg0: i32) -> (i32, i32, i32) {
    %c0_i32 = arith.constant 0 : i32
    %c0_i32_0 = arith.constant 0 : i32
    %c0_i32_1 = arith.constant 0 : i32
    return %arg0, %c0_i32, %c0_i32_0 : i32, i32, i32
  }
  func.func @transform_12(%arg0: i32) -> (i32, i32, i32) {
    %c0_i32 = arith.constant 0 : i32
    %c0_i32_0 = arith.constant 0 : i32
    %c0_i32_1 = arith.constant 0 : i32
    return %arg0, %c0_i32, %c0_i32_0 : i32, i32, i32
  }
  func.func @transform_13(%arg0: i32) -> (i32, i32, i32) {
    %c0_i32 = arith.constant 0 : i32
    %c0_i32_0 = arith.constant 0 : i32
    %c0_i32_1 = arith.constant 0 : i32
    return %arg0, %c0_i32, %c0_i32_0 : i32, i32, i32
  }
  func.func @transform_14(%arg0: i32) -> (i32, i32, i32) {
    %c0_i32 = arith.constant 0 : i32
    %c0_i32_0 = arith.constant 0 : i32
    %c0_i32_1 = arith.constant 0 : i32
    return %arg0, %c0_i32, %c0_i32_0 : i32, i32, i32
  }
  func.func @transform_15(%arg0: i32) -> (i32, i32, i32) {
    %c0_i32 = arith.constant 0 : i32
    %c0_i32_0 = arith.constant 0 : i32
    %c0_i32_1 = arith.constant 0 : i32
    return %arg0, %c0_i32, %c0_i32_0 : i32, i32, i32
  }
  func.func @transform_16(%arg0: i32) -> (i32, i32, i32) {
    %c0_i32 = arith.constant 0 : i32
    %c0_i32_0 = arith.constant 0 : i32
    %c0_i32_1 = arith.constant 0 : i32
    return %arg0, %c0_i32, %c0_i32_0 : i32, i32, i32
  }
  func.func @transform_17(%arg0: i32) -> (i32, i32, i32) {
    %c0_i32 = arith.constant 0 : i32
    %c0_i32_0 = arith.constant 0 : i32
    %c0_i32_1 = arith.constant 0 : i32
    return %arg0, %c0_i32, %c0_i32_0 : i32, i32, i32
  }
  func.func @transform_18(%arg0: i32) -> (i32, i32, i32) {
    %c0_i32 = arith.constant 0 : i32
    %c0_i32_0 = arith.constant 0 : i32
    %c0_i32_1 = arith.constant 0 : i32
    return %arg0, %c0_i32, %c0_i32_0 : i32, i32, i32
  }
  func.func @transform_19(%arg0: i32) -> (i32, i32, i32) {
    %c0_i32 = arith.constant 0 : i32
    %c0_i32_0 = arith.constant 0 : i32
    %c0_i32_1 = arith.constant 0 : i32
    return %arg0, %c0_i32, %c0_i32_0 : i32, i32, i32
  }
  func.func @transform_20(%arg0: i32) -> (i32, i32) {
    %c0_i32 = arith.constant 0 : i32
    %c0_i32_0 = arith.constant 0 : i32
    %c0_i32_1 = arith.constant 0 : i32
    return %c0_i32, %c0_i32_0 : i32, i32
  }
  func.func @transform_21(%arg0: i32) -> (i32, i32) {
    %c0_i32 = arith.constant 0 : i32
    %c0_i32_0 = arith.constant 0 : i32
    %c0_i32_1 = arith.constant 0 : i32
    return %c0_i32, %c0_i32_0 : i32, i32
  }
  func.func @transform_22(%arg0: i32) -> (i32, i32) {
    %c0_i32 = arith.constant 0 : i32
    %c0_i32_0 = arith.constant 0 : i32
    %c0_i32_1 = arith.constant 0 : i32
    return %c0_i32, %c0_i32_0 : i32, i32
  }
  func.func @transform_23(%arg0: i32) -> (i32, i32) {
    %c0_i32 = arith.constant 0 : i32
    %c0_i32_0 = arith.constant 0 : i32
    %c0_i32_1 = arith.constant 0 : i32
    return %c0_i32, %c0_i32_0 : i32, i32
  }
  func.func @transform_24(%arg0: i32) -> (i32, i32) {
    %c0_i32 = arith.constant 0 : i32
    %c0_i32_0 = arith.constant 0 : i32
    %c0_i32_1 = arith.constant 0 : i32
    return %c0_i32, %c0_i32_0 : i32, i32
  }
  func.func @transform_25(%arg0: i32) -> (i32, i32) {
    %c0_i32 = arith.constant 0 : i32
    %c0_i32_0 = arith.constant 0 : i32
    %c0_i32_1 = arith.constant 0 : i32
    return %c0_i32, %c0_i32_0 : i32, i32
  }
}

</mosaic_0001>

<llo_original>
// kernel: tpu_custom_call.1
$region0: #{tpu_custom_call.1}
  #allocation0 [shape = 'u32[]', space=smem, size = 0x4, offset = 0x4, fixed_abs, tag = 'smem constant byte address 0x4 - core index']
  #allocation1 [shape = 'u32[144,128]{1,0:T(1,128)}', space=vmem, size = 0x12000, scoped, tag = 'internal scratch']
  #allocation2 [shape = 'f32[16,128]{1,0:T(8,128)}', space=vmem, size = 0x2000, scoped, tag = 'scratch operand']
  %s0 = inlined_call_operand.hbm [shape: f32[16,128], index: 0, kind: input, shape index: {}]
  %s1 = inlined_call_operand.vmem [shape: f32[2,8], index: 1, kind: input, shape index: {}]
  %s2 = inlined_call_operand.vmem [shape: f32[1,128], index: 2, kind: input, shape index: {}]
  %s3 = inlined_call_operand.hbm [shape: f32[1,128], index: 3, kind: input, shape index: {}]
  %s4 = inlined_call_operand.hbm [shape: bf16[2,128,128], index: 4, kind: input, shape index: {}]
  %s5 = inlined_call_operand.hbm [shape: f32[2,1,128], index: 5, kind: input, shape index: {}]
  %s6 = inlined_call_operand.hbm [shape: bf16[2,128,128], index: 6, kind: input, shape index: {}]
  %s7 = inlined_call_operand.hbm [shape: f32[2,1,128], index: 7, kind: input, shape index: {}]
  %s8 = inlined_call_operand.hbm [shape: bf16[2,128,128], index: 8, kind: input, shape index: {}]
  %s9 = inlined_call_operand.hbm [shape: f32[2,1,128], index: 9, kind: input, shape index: {}]
  %s10 = inlined_call_operand.hbm [shape: bf16[2,128,128], index: 10, kind: input, shape index: {}]
  %s11 = inlined_call_operand.hbm [shape: f32[2,1,128], index: 11, kind: input, shape index: {}]
  %s12 = inlined_call_operand.hbm [shape: f32[2,1,128], index: 12, kind: input, shape index: {}]
  %s13 = inlined_call_operand.hbm [shape: f32[2,1,128], index: 13, kind: input, shape index: {}]
  %s14 = inlined_call_operand.hbm [shape: bf16[2,128,512], index: 14, kind: input, shape index: {}]
  %s15 = inlined_call_operand.vmem [shape: f32[2,1,512], index: 15, kind: input, shape index: {}]
  %s16 = inlined_call_operand.hbm [shape: bf16[2,512,128], index: 16, kind: input, shape index: {}]
  %s17 = inlined_call_operand.hbm [shape: f32[2,1,128], index: 17, kind: input, shape index: {}]
  %s18 = inlined_call_operand.hbm [shape: f32[2,1,128], index: 18, kind: input, shape index: {}]
  %s19 = inlined_call_operand.hbm [shape: f32[2,1,128], index: 19, kind: input, shape index: {}]
  %s20 = inlined_call_operand.vmem [shape: bf16[128,128], index: 20, kind: input, shape index: {}]
  %s21 = inlined_call_operand.vmem [shape: f32[1,128], index: 21, kind: input, shape index: {}]
  %s22 = inlined_call_operand.hbm [shape: bf16[128,128], index: 22, kind: input, shape index: {}]
  %s23 = inlined_call_operand.vmem [shape: f32[1,128], index: 23, kind: input, shape index: {}]
  %s24 = inlined_call_operand.hbm [shape: f32[2,128], index: 24, kind: output, shape index: {0}]
  %s25 = inlined_call_operand.hbm [shape: f32[2,128], index: 25, kind: output, shape index: {1}]
  %26 = xla_tuple %s24, %s25
  %s27 = sld [smem:[#allocation0]]
  $region217: #{tpu_custom_call.1} parent=0
    _
  %s29 = ssub.s32 1, %s27
  %s30 = scalar_select 0, %s29, %s27
  $region1: #{tpu_custom_call.1} parent=0
    #allocation3 [shape = 'u8[8192]{0}', space=vmem, size = 0x2000, scoped, tag = 'input window, operand 0, single buffered']
    #allocation4 [shape = 's32[2]{0}', space=sflag, size = 0x8, scoped, tag = 'scoped memory for tpu_custom_call.1']
    #allocation5 [shape = 's32[2]{0}', space=sflag, size = 0x8, scoped, tag = 'scoped memory for tpu_custom_call.1']
    #allocation6 [shape = 'u8[512]{0}', space=vmem, size = 0x400, scoped, tag = 'input window, operand 3, single buffered']
    #allocation7 [shape = 's32[1]{0}', space=sflag, size = 0x4, scoped, tag = 'scoped memory for tpu_custom_call.1']
    #allocation8 [shape = 'u8[65536]{0}', space=vmem, size = 0x10000, scoped, tag = 'input window, operand 4']
    #allocation9 [shape = 'u8[1024]{0}', space=vmem, size = 0x400, scoped, tag = 'input window, operand 5']
    #allocation10 [shape = 'u8[65536]{0}', space=vmem, size = 0x10000, scoped, tag = 'input window, operand 6']
    #allocation11 [shape = 'u8[1024]{0}', space=vmem, size = 0x400, scoped, tag = 'input window, operand 7']
    #allocation12 [shape = 'u8[65536]{0}', space=vmem, size = 0x10000, scoped, tag = 'input window, operand 8']
    #allocation13 [shape = 'u8[1024]{0}', space=vmem, size = 0x400, scoped, tag = 'input window, operand 9']
    #allocation14 [shape = 'u8[65536]{0}', space=vmem, size = 0x10000, scoped, tag = 'input window, operand 10']
    #allocation15 [shape = 'u8[1024]{0}', space=vmem, size = 0x400, scoped, tag = 'input window, operand 11']
    #allocation16 [shape = 'u8[1024]{0}', space=vmem, size = 0x400, scoped, tag = 'input window, operand 12']
    #allocation17 [shape = 'u8[1024]{0}', space=vmem, size = 0x400, scoped, tag = 'input window, operand 13']
    #allocation18 [shape = 'u8[262144]{0}', space=vmem, size = 0x40000, scoped, tag = 'input window, operand 14']
    #allocation19 [shape = 'u8[262144]{0}', space=vmem, size = 0x40000, scoped, tag = 'input window, operand 16']
    #allocation20 [shape = 'u8[1024]{0}', space=vmem, size = 0x400, scoped, tag = 'input window, operand 17']
    #allocation21 [shape = 'u8[1024]{0}', space=vmem, size = 0x400, scoped, tag = 'input window, operand 18']
    #allocation22 [shape = 'u8[1024]{0}', space=vmem, size = 0x400, scoped, tag = 'input window, operand 19']
    #allocation23 [shape = 'u8[32768]{0}', space=vmem, size = 0x8000, scoped, tag = 'input window, operand 22, single buffered']
    #allocation24 [shape = 'u8[1024]{0}', space=vmem, size = 0x400, scoped, tag = 'output window, operand 0, single buffered']
    #allocation25 [shape = 'u8[1024]{0}', space=vmem, size = 0x400, scoped, tag = 'output window, operand 1, single buffered']
    #allocation26 [shape = 's32[1]{0}', space=sflag, size = 0x4, scoped, tag = 'scoped memory for tpu_custom_call.1']
    %31 = vsyncpa [#allocation4], 0
    %32 = vsyncpa [#allocation7], 0
    %33 = vsyncpa [#allocation5], 0
    %34 = vsyncpa [#allocation26], 0
    loop: start=0, step=1, limit=4
    $region2: #{tpu_custom_call.1} parent=1 // loop_pre_header
      _
    $region3: #{tpu_custom_call.1} parent=1 // loop_header
      %s36 = sphi 0, %s40
      %p37 = scmp.ge.s32.totalorder %s36, 4
      %s44 = sphi 0, %s44
      %s46 = sphi 0, %s44
      %s47 = sphi 0, %s46
      %s61 = sphi 0, %s47
      %s65 = sphi 0, %s65
      %s67 = sphi 0, %s65
      %s68 = sphi 0, %s67
      %s82 = sphi 0, %s68
      %s86 = sphi 0, %s86
      %s88 = sphi 0, %s86
      %s89 = sphi 0, %s88
      %s103 = sphi 0, %s89
      %s107 = sphi 0, %s107
      %s109 = sphi 0, %s107
      %s110 = sphi 0, %s109
      %s124 = sphi 0, %s110
      %s130 = sphi 0, %s132
      %s133 = sphi 0, %s130
      %s134 = sphi 0, %s133
      %s150 = sphi 0, %s134
      %s156 = sphi 0, %s158
      %s159 = sphi 0, %s156
      %s160 = sphi 0, %s159
      %s176 = sphi 0, %s160
      %s182 = sphi 0, %s184
      %s185 = sphi 0, %s182
      %s186 = sphi 0, %s185
      %s202 = sphi 0, %s186
      %s208 = sphi 0, %s210
      %s211 = sphi 0, %s208
      %s212 = sphi 0, %s211
      %s228 = sphi 0, %s212
      %s234 = sphi 0, %s236
      %s237 = sphi 0, %s234
      %s238 = sphi 0, %s237
      %s254 = sphi 0, %s238
      %s260 = sphi 0, %s262
      %s263 = sphi 0, %s260
      %s264 = sphi 0, %s263
      %s280 = sphi 0, %s264
      %s286 = sphi 0, %s288
      %s289 = sphi 0, %s286
      %s290 = sphi 0, %s289
      %s306 = sphi 0, %s290
      %s312 = sphi 0, %s314
      %s315 = sphi 0, %s312
      %s316 = sphi 0, %s315
      %s332 = sphi 0, %s316
      %s338 = sphi 0, %s340
      %s341 = sphi 0, %s338
      %s342 = sphi 0, %s341
      %s358 = sphi 0, %s342
      %s364 = sphi 0, %s366
      %s367 = sphi 0, %s364
      %s368 = sphi 0, %s367
      %s384 = sphi 0, %s368
      %s390 = sphi 0, %s392
      %s393 = sphi 0, %s390
      %s394 = sphi 0, %s393
      %s410 = sphi 0, %s394
      %s416 = sphi 0, %s418
      %s419 = sphi 0, %s416
      %s420 = sphi 0, %s419
      %s436 = sphi 0, %s420
      %s442 = sphi 0, %s444
      %s445 = sphi 0, %s442
      %s446 = sphi 0, %s445
      %s462 = sphi 0, %s446
      %s468 = sphi 0, %s470
      %s471 = sphi 0, %s468
      %s472 = sphi 0, %s471
      %s488 = sphi 0, %s472
      %s494 = sphi 0, %s496
      %s497 = sphi 0, %s494
      %s498 = sphi 0, %s497
      %s514 = sphi 0, %s498
      %s520 = sphi 0, %s522
      %s523 = sphi 0, %s520
      %s524 = sphi 0, %s523
      %s540 = sphi 0, %s524
      %s544 = sphi 0, %s544
      %s546 = sphi 0, %s544
      %s547 = sphi 0, %s546
      %s561 = sphi 0, %s547
      %s565 = sphi 0, %s565
      %s567 = sphi 0, %s565
      %s568 = sphi 0, %s567
      %s582 = sphi 0, %s568
      %s586 = sphi 0, %s586
      %s588 = sphi 0, %s586
      %s589 = sphi 0, %s588
      %s603 = sphi 0, %s589
      %s607 = sphi 0, %s607
      %s609 = sphi 0, %s607
      %s610 = sphi 0, %s609
      %s624 = sphi 0, %s610
      %s628 = sphi 0, %s628
      %s630 = sphi 0, %s628
      %s631 = sphi 0, %s630
      %s645 = sphi 0, %s631
      %s649 = sphi 0, %s649
      %s651 = sphi 0, %s649
      %s652 = sphi 0, %s651
      %s666 = sphi 0, %s652
    $region4: #{tpu_custom_call.1} parent=1 // loop_header_branch
      %39 = sbr.rel (%p37) target = $region8
    $region5: #{tpu_custom_call.1} parent=1 // loop_body
      %s41 = ssub.s32 %s36, 1
      %s42 = ssub.s32 %s36, 2
      %s43 = sadd.s32 %s36, 1
      %s45 = sadd.s32 %s44, 1
      %p48 = scmp.eq.s32.totalorder %s36, 1
      %p49 = scmp.ne.s32.totalorder %s44, %s46
      %p50 = scmp.eq.s32.totalorder %s36, 0
      %p51 = por %p49, %p50
      %p52 = scmp.ne.s32.totalorder %s44, %s46
      %p53 = scmp.eq.s32.totalorder %s41, 1
      %p54 = por %p52, %p53
      %p55 = scmp.ne.s32.totalorder %s46, %s47
      %p56 = scmp.eq.s32.totalorder %s41, 0
      %p57 = por %p55, %p56
      %p58 = scmp.ne.s32.totalorder %s46, %s47
      %p59 = scmp.eq.s32.totalorder %s42, 1
      %p60 = por %p58, %p59
      %p62 = scmp.ne.s32.totalorder %s47, %s61
      %p63 = scmp.eq.s32.totalorder %s42, 0
      %p64 = por %p62, %p63
      %s66 = sadd.s32 %s65, 1
      %p69 = scmp.eq.s32.totalorder %s36, 1
      %p70 = scmp.ne.s32.totalorder %s65, %s67
      %p71 = scmp.eq.s32.totalorder %s36, 0
      %p72 = por %p70, %p71
      %p73 = scmp.ne.s32.totalorder %s65, %s67
      %p74 = scmp.eq.s32.totalorder %s41, 1
      %p75 = por %p73, %p74
      %p76 = scmp.ne.s32.totalorder %s67, %s68
      %p77 = scmp.eq.s32.totalorder %s41, 0
      %p78 = por %p76, %p77
      %p79 = scmp.ne.s32.totalorder %s67, %s68
      %p80 = scmp.eq.s32.totalorder %s42, 1
      %p81 = por %p79, %p80
      %p83 = scmp.ne.s32.totalorder %s68, %s82
      %p84 = scmp.eq.s32.totalorder %s42, 0
      %p85 = por %p83, %p84
      %s87 = sadd.s32 %s86, 1
      %p90 = scmp.eq.s32.totalorder %s36, 1
      %p91 = scmp.ne.s32.totalorder %s86, %s88
      %p92 = scmp.eq.s32.totalorder %s36, 0
      %p93 = por %p91, %p92
      %p94 = scmp.ne.s32.totalorder %s86, %s88
      %p95 = scmp.eq.s32.totalorder %s41, 1
      %p96 = por %p94, %p95
      %p97 = scmp.ne.s32.totalorder %s88, %s89
      %p98 = scmp.eq.s32.totalorder %s41, 0
      %p99 = por %p97, %p98
      %p100 = scmp.ne.s32.totalorder %s88, %s89
      %p101 = scmp.eq.s32.totalorder %s42, 1
      %p102 = por %p100, %p101
      %p104 = scmp.ne.s32.totalorder %s89, %s103
      %p105 = scmp.eq.s32.totalorder %s42, 0
      %p106 = por %p104, %p105
      %s108 = sadd.s32 %s107, 1
      %p111 = scmp.eq.s32.totalorder %s36, 1
      %p112 = scmp.ne.s32.totalorder %s107, %s109
      %p113 = scmp.eq.s32.totalorder %s36, 0
      %p114 = por %p112, %p113
      %p115 = scmp.ne.s32.totalorder %s107, %s109
      %p116 = scmp.eq.s32.totalorder %s41, 1
      %p117 = por %p115, %p116
      %p118 = scmp.ne.s32.totalorder %s109, %s110
      %p119 = scmp.eq.s32.totalorder %s41, 0
      %p120 = por %p118, %p119
      %p121 = scmp.ne.s32.totalorder %s109, %s110
      %p122 = scmp.eq.s32.totalorder %s42, 1
      %p123 = por %p121, %p122
      %p125 = scmp.ne.s32.totalorder %s110, %s124
      %p126 = scmp.eq.s32.totalorder %s42, 0
      %p127 = por %p125, %p126
      %s128 = ssub.s32 %s36, %s43
      %p129 = scmp.eq.s32.totalorder %s128, 0
      %s131 = sadd.s32 %s130, 1
      %s132 = scalar_select %p129, %s130, %s131
      %p135 = pneg %p129
      %p136 = scmp.eq.s32.totalorder %s36, 1
      %p137 = por %p135, %p136
      %p138 = scmp.ne.s32.totalorder %s130, %s133
      %p139 = scmp.eq.s32.totalorder %s36, 0
      %p140 = por %p138, %p139
      %p141 = scmp.ne.s32.totalorder %s130, %s133
      %p142 = scmp.eq.s32.totalorder %s41, 1
      %p143 = por %p141, %p142
      %p144 = scmp.ne.s32.totalorder %s133, %s134
      %p145 = scmp.eq.s32.totalorder %s41, 0
      %p146 = por %p144, %p145
      %p147 = scmp.ne.s32.totalorder %s133, %s134
      %p148 = scmp.eq.s32.totalorder %s42, 1
      %p149 = por %p147, %p148
      %p151 = scmp.ne.s32.totalorder %s134, %s150
      %p152 = scmp.eq.s32.totalorder %s42, 0
      %p153 = por %p151, %p152
      %s154 = ssub.s32 %s36, %s43
      %p155 = scmp.eq.s32.totalorder %s154, 0
      %s157 = sadd.s32 %s156, 1
      %s158 = scalar_select %p155, %s156, %s157
      %p161 = pneg %p155
      %p162 = scmp.eq.s32.totalorder %s36, 1
      %p163 = por %p161, %p162
      %p164 = scmp.ne.s32.totalorder %s156, %s159
      %p165 = scmp.eq.s32.totalorder %s36, 0
      %p166 = por %p164, %p165
      %p167 = scmp.ne.s32.totalorder %s156, %s159
      %p168 = scmp.eq.s32.totalorder %s41, 1
      %p169 = por %p167, %p168
      %p170 = scmp.ne.s32.totalorder %s159, %s160
      %p171 = scmp.eq.s32.totalorder %s41, 0
      %p172 = por %p170, %p171
      %p173 = scmp.ne.s32.totalorder %s159, %s160
      %p174 = scmp.eq.s32.totalorder %s42, 1
      %p175 = por %p173, %p174
      %p177 = scmp.ne.s32.totalorder %s160, %s176
      %p178 = scmp.eq.s32.totalorder %s42, 0
      %p179 = por %p177, %p178
      %s180 = ssub.s32 %s36, %s43
      %p181 = scmp.eq.s32.totalorder %s180, 0
      %s183 = sadd.s32 %s182, 1
      %s184 = scalar_select %p181, %s182, %s183
      %p187 = pneg %p181
      %p188 = scmp.eq.s32.totalorder %s36, 1
      %p189 = por %p187, %p188
      %p190 = scmp.ne.s32.totalorder %s182, %s185
      %p191 = scmp.eq.s32.totalorder %s36, 0
      %p192 = por %p190, %p191
      %p193 = scmp.ne.s32.totalorder %s182, %s185
      %p194 = scmp.eq.s32.totalorder %s41, 1
      %p195 = por %p193, %p194
      %p196 = scmp.ne.s32.totalorder %s185, %s186
      %p197 = scmp.eq.s32.totalorder %s41, 0
      %p198 = por %p196, %p197
      %p199 = scmp.ne.s32.totalorder %s185, %s186
      %p200 = scmp.eq.s32.totalorder %s42, 1
      %p201 = por %p199, %p200
      %p203 = scmp.ne.s32.totalorder %s186, %s202
      %p204 = scmp.eq.s32.totalorder %s42, 0
      %p205 = por %p203, %p204
      %s206 = ssub.s32 %s36, %s43
      %p207 = scmp.eq.s32.totalorder %s206, 0
      %s209 = sadd.s32 %s208, 1
      %s210 = scalar_select %p207, %s208, %s209
      %p213 = pneg %p207
      %p214 = scmp.eq.s32.totalorder %s36, 1
      %p215 = por %p213, %p214
      %p216 = scmp.ne.s32.totalorder %s208, %s211
      %p217 = scmp.eq.s32.totalorder %s36, 0
      %p218 = por %p216, %p217
      %p219 = scmp.ne.s32.totalorder %s208, %s211
      %p220 = scmp.eq.s32.totalorder %s41, 1
      %p221 = por %p219, %p220
      %p222 = scmp.ne.s32.totalorder %s211, %s212
      %p223 = scmp.eq.s32.totalorder %s41, 0
      %p224 = por %p222, %p223
      %p225 = scmp.ne.s32.totalorder %s211, %s212
      %p226 = scmp.eq.s32.totalorder %s42, 1
      %p227 = por %p225, %p226
      %p229 = scmp.ne.s32.totalorder %s212, %s228
      %p230 = scmp.eq.s32.totalorder %s42, 0
      %p231 = por %p229, %p230
      %s232 = ssub.s32 %s36, %s43
      %p233 = scmp.eq.s32.totalorder %s232, 0
      %s235 = sadd.s32 %s234, 1
      %s236 = scalar_select %p233, %s234, %s235
      %p239 = pneg %p233
      %p240 = scmp.eq.s32.totalorder %s36, 1
      %p241 = por %p239, %p240
      %p242 = scmp.ne.s32.totalorder %s234, %s237
      %p243 = scmp.eq.s32.totalorder %s36, 0
      %p244 = por %p242, %p243
      %p245 = scmp.ne.s32.totalorder %s234, %s237
      %p246 = scmp.eq.s32.totalorder %s41, 1
      %p247 = por %p245, %p246
      %p248 = scmp.ne.s32.totalorder %s237, %s238
      %p249 = scmp.eq.s32.totalorder %s41, 0
      %p250 = por %p248, %p249
      %p251 = scmp.ne.s32.totalorder %s237, %s238
      %p252 = scmp.eq.s32.totalorder %s42, 1
      %p253 = por %p251, %p252
      %p255 = scmp.ne.s32.totalorder %s238, %s254
      %p256 = scmp.eq.s32.totalorder %s42, 0
      %p257 = por %p255, %p256
      %s258 = ssub.s32 %s36, %s43
      %p259 = scmp.eq.s32.totalorder %s258, 0
      %s261 = sadd.s32 %s260, 1
      %s262 = scalar_select %p259, %s260, %s261
      %p265 = pneg %p259
      %p266 = scmp.eq.s32.totalorder %s36, 1
      %p267 = por %p265, %p266
      %p268 = scmp.ne.s32.totalorder %s260, %s263
      %p269 = scmp.eq.s32.totalorder %s36, 0
      %p270 = por %p268, %p269
      %p271 = scmp.ne.s32.totalorder %s260, %s263
      %p272 = scmp.eq.s32.totalorder %s41, 1
      %p273 = por %p271, %p272
      %p274 = scmp.ne.s32.totalorder %s263, %s264
      %p275 = scmp.eq.s32.totalorder %s41, 0
      %p276 = por %p274, %p275
      %p277 = scmp.ne.s32.totalorder %s263, %s264
      %p278 = scmp.eq.s32.totalorder %s42, 1
      %p279 = por %p277, %p278
      %p281 = scmp.ne.s32.totalorder %s264, %s280
      %p282 = scmp.eq.s32.totalorder %s42, 0
      %p283 = por %p281, %p282
      %s284 = ssub.s32 %s36, %s43
      %p285 = scmp.eq.s32.totalorder %s284, 0
      %s287 = sadd.s32 %s286, 1
      %s288 = scalar_select %p285, %s286, %s287
      %p291 = pneg %p285
      %p292 = scmp.eq.s32.totalorder %s36, 1
      %p293 = por %p291, %p292
      %p294 = scmp.ne.s32.totalorder %s286, %s289
      %p295 = scmp.eq.s32.totalorder %s36, 0
      %p296 = por %p294, %p295
      %p297 = scmp.ne.s32.totalorder %s286, %s289
      %p298 = scmp.eq.s32.totalorder %s41, 1
      %p299 = por %p297, %p298
      %p300 = scmp.ne.s32.totalorder %s289, %s290
      %p301 = scmp.eq.s32.totalorder %s41, 0
      %p302 = por %p300, %p301
      %p303 = scmp.ne.s32.totalorder %s289, %s290
      %p304 = scmp.eq.s32.totalorder %s42, 1
      %p305 = por %p303, %p304
      %p307 = scmp.ne.s32.totalorder %s290, %s306
      %p308 = scmp.eq.s32.totalorder %s42, 0
      %p309 = por %p307, %p308
      %s310 = ssub.s32 %s36, %s43
      %p311 = scmp.eq.s32.totalorder %s310, 0
      %s313 = sadd.s32 %s312, 1
      %s314 = scalar_select %p311, %s312, %s313
      %p317 = pneg %p311
      %p318 = scmp.eq.s32.totalorder %s36, 1
      %p319 = por %p317, %p318
      %p320 = scmp.ne.s32.totalorder %s312, %s315
      %p321 = scmp.eq.s32.totalorder %s36, 0
      %p322 = por %p320, %p321
      %p323 = scmp.ne.s32.totalorder %s312, %s315
      %p324 = scmp.eq.s32.totalorder %s41, 1
      %p325 = por %p323, %p324
      %p326 = scmp.ne.s32.totalorder %s315, %s316
      %p327 = scmp.eq.s32.totalorder %s41, 0
      %p328 = por %p326, %p327
      %p329 = scmp.ne.s32.totalorder %s315, %s316
      %p330 = scmp.eq.s32.totalorder %s42, 1
      %p331 = por %p329, %p330
      %p333 = scmp.ne.s32.totalorder %s316, %s332
      %p334 = scmp.eq.s32.totalorder %s42, 0
      %p335 = por %p333, %p334
      %s336 = ssub.s32 %s36, %s43
      %p337 = scmp.eq.s32.totalorder %s336, 0
      %s339 = sadd.s32 %s338, 1
      %s340 = scalar_select %p337, %s338, %s339
      %p343 = pneg %p337
      %p344 = scmp.eq.s32.totalorder %s36, 1
      %p345 = por %p343, %p344
      %p346 = scmp.ne.s32.totalorder %s338, %s341
      %p347 = scmp.eq.s32.totalorder %s36, 0
      %p348 = por %p346, %p347
      %p349 = scmp.ne.s32.totalorder %s338, %s341
      %p350 = scmp.eq.s32.totalorder %s41, 1
      %p351 = por %p349, %p350
      %p352 = scmp.ne.s32.totalorder %s341, %s342
      %p353 = scmp.eq.s32.totalorder %s41, 0
      %p354 = por %p352, %p353
      %p355 = scmp.ne.s32.totalorder %s341, %s342
      %p356 = scmp.eq.s32.totalorder %s42, 1
      %p357 = por %p355, %p356
      %p359 = scmp.ne.s32.totalorder %s342, %s358
      %p360 = scmp.eq.s32.totalorder %s42, 0
      %p361 = por %p359, %p360
      %s362 = ssub.s32 %s36, %s43
      %p363 = scmp.eq.s32.totalorder %s362, 0
      %s365 = sadd.s32 %s364, 1
      %s366 = scalar_select %p363, %s364, %s365
      %p369 = pneg %p363
      %p370 = scmp.eq.s32.totalorder %s36, 1
      %p371 = por %p369, %p370
      %p372 = scmp.ne.s32.totalorder %s364, %s367
      %p373 = scmp.eq.s32.totalorder %s36, 0
      %p374 = por %p372, %p373
      %p375 = scmp.ne.s32.totalorder %s364, %s367
      %p376 = scmp.eq.s32.totalorder %s41, 1
      %p377 = por %p375, %p376
      %p378 = scmp.ne.s32.totalorder %s367, %s368
      %p379 = scmp.eq.s32.totalorder %s41, 0
      %p380 = por %p378, %p379
      %p381 = scmp.ne.s32.totalorder %s367, %s368
      %p382 = scmp.eq.s32.totalorder %s42, 1
      %p383 = por %p381, %p382
      %p385 = scmp.ne.s32.totalorder %s368, %s384
      %p386 = scmp.eq.s32.totalorder %s42, 0
      %p387 = por %p385, %p386
      %s388 = ssub.s32 %s36, %s43
      %p389 = scmp.eq.s32.totalorder %s388, 0
      %s391 = sadd.s32 %s390, 1
      %s392 = scalar_select %p389, %s390, %s391
      %p395 = pneg %p389
      %p396 = scmp.eq.s32.totalorder %s36, 1
      %p397 = por %p395, %p396
      %p398 = scmp.ne.s32.totalorder %s390, %s393
      %p399 = scmp.eq.s32.totalorder %s36, 0
      %p400 = por %p398, %p399
      %p401 = scmp.ne.s32.totalorder %s390, %s393
      %p402 = scmp.eq.s32.totalorder %s41, 1
      %p403 = por %p401, %p402
      %p404 = scmp.ne.s32.totalorder %s393, %s394
      %p405 = scmp.eq.s32.totalorder %s41, 0
      %p406 = por %p404, %p405
      %p407 = scmp.ne.s32.totalorder %s393, %s394
      %p408 = scmp.eq.s32.totalorder %s42, 1
      %p409 = por %p407, %p408
      %p411 = scmp.ne.s32.totalorder %s394, %s410
      %p412 = scmp.eq.s32.totalorder %s42, 0
      %p413 = por %p411, %p412
      %s414 = ssub.s32 %s36, %s43
      %p415 = scmp.eq.s32.totalorder %s414, 0
      %s417 = sadd.s32 %s416, 1
      %s418 = scalar_select %p415, %s416, %s417
      %p421 = pneg %p415
      %p422 = scmp.eq.s32.totalorder %s36, 1
      %p423 = por %p421, %p422
      %p424 = scmp.ne.s32.totalorder %s416, %s419
      %p425 = scmp.eq.s32.totalorder %s36, 0
      %p426 = por %p424, %p425
      %p427 = scmp.ne.s32.totalorder %s416, %s419
      %p428 = scmp.eq.s32.totalorder %s41, 1
      %p429 = por %p427, %p428
      %p430 = scmp.ne.s32.totalorder %s419, %s420
      %p431 = scmp.eq.s32.totalorder %s41, 0
      %p432 = por %p430, %p431
      %p433 = scmp.ne.s32.totalorder %s419, %s420
      %p434 = scmp.eq.s32.totalorder %s42, 1
      %p435 = por %p433, %p434
      %p437 = scmp.ne.s32.totalorder %s420, %s436
      %p438 = scmp.eq.s32.totalorder %s42, 0
      %p439 = por %p437, %p438
      %s440 = ssub.s32 %s36, %s43
      %p441 = scmp.eq.s32.totalorder %s440, 0
      %s443 = sadd.s32 %s442, 1
      %s444 = scalar_select %p441, %s442, %s443
      %p447 = pneg %p441
      %p448 = scmp.eq.s32.totalorder %s36, 1
      %p449 = por %p447, %p448
      %p450 = scmp.ne.s32.totalorder %s442, %s445
      %p451 = scmp.eq.s32.totalorder %s36, 0
      %p452 = por %p450, %p451
      %p453 = scmp.ne.s32.totalorder %s442, %s445
      %p454 = scmp.eq.s32.totalorder %s41, 1
      %p455 = por %p453, %p454
      %p456 = scmp.ne.s32.totalorder %s445, %s446
      %p457 = scmp.eq.s32.totalorder %s41, 0
      %p458 = por %p456, %p457
      %p459 = scmp.ne.s32.totalorder %s445, %s446
      %p460 = scmp.eq.s32.totalorder %s42, 1
      %p461 = por %p459, %p460
      %p463 = scmp.ne.s32.totalorder %s446, %s462
      %p464 = scmp.eq.s32.totalorder %s42, 0
      %p465 = por %p463, %p464
      %s466 = ssub.s32 %s36, %s43
      %p467 = scmp.eq.s32.totalorder %s466, 0
      %s469 = sadd.s32 %s468, 1
      %s470 = scalar_select %p467, %s468, %s469
      %p473 = pneg %p467
      %p474 = scmp.eq.s32.totalorder %s36, 1
      %p475 = por %p473, %p474
      %p476 = scmp.ne.s32.totalorder %s468, %s471
      %p477 = scmp.eq.s32.totalorder %s36, 0
      %p478 = por %p476, %p477
      %p479 = scmp.ne.s32.totalorder %s468, %s471
      %p480 = scmp.eq.s32.totalorder %s41, 1
      %p481 = por %p479, %p480
      %p482 = scmp.ne.s32.totalorder %s471, %s472
      %p483 = scmp.eq.s32.totalorder %s41, 0
      %p484 = por %p482, %p483
      %p485 = scmp.ne.s32.totalorder %s471, %s472
      %p486 = scmp.eq.s32.totalorder %s42, 1
      %p487 = por %p485, %p486
      %p489 = scmp.ne.s32.totalorder %s472, %s488
      %p490 = scmp.eq.s32.totalorder %s42, 0
      %p491 = por %p489, %p490
      %s492 = ssub.s32 %s36, %s43
      %p493 = scmp.eq.s32.totalorder %s492, 0
      %s495 = sadd.s32 %s494, 1
      %s496 = scalar_select %p493, %s494, %s495
      %p499 = pneg %p493
      %p500 = scmp.eq.s32.totalorder %s36, 1
      %p501 = por %p499, %p500
      %p502 = scmp.ne.s32.totalorder %s494, %s497
      %p503 = scmp.eq.s32.totalorder %s36, 0
      %p504 = por %p502, %p503
      %p505 = scmp.ne.s32.totalorder %s494, %s497
      %p506 = scmp.eq.s32.totalorder %s41, 1
      %p507 = por %p505, %p506
      %p508 = scmp.ne.s32.totalorder %s497, %s498
      %p509 = scmp.eq.s32.totalorder %s41, 0
      %p510 = por %p508, %p509
      %p511 = scmp.ne.s32.totalorder %s497, %s498
      %p512 = scmp.eq.s32.totalorder %s42, 1
      %p513 = por %p511, %p512
      %p515 = scmp.ne.s32.totalorder %s498, %s514
      %p516 = scmp.eq.s32.totalorder %s42, 0
      %p517 = por %p515, %p516
      %s518 = ssub.s32 %s36, %s43
      %p519 = scmp.eq.s32.totalorder %s518, 0
      %s521 = sadd.s32 %s520, 1
      %s522 = scalar_select %p519, %s520, %s521
      %p525 = pneg %p519
      %p526 = scmp.eq.s32.totalorder %s36, 1
      %p527 = por %p525, %p526
      %p528 = scmp.ne.s32.totalorder %s520, %s523
      %p529 = scmp.eq.s32.totalorder %s36, 0
      %p530 = por %p528, %p529
      %p531 = scmp.ne.s32.totalorder %s520, %s523
      %p532 = scmp.eq.s32.totalorder %s41, 1
      %p533 = por %p531, %p532
      %p534 = scmp.ne.s32.totalorder %s523, %s524
      %p535 = scmp.eq.s32.totalorder %s41, 0
      %p536 = por %p534, %p535
      %p537 = scmp.ne.s32.totalorder %s523, %s524
      %p538 = scmp.eq.s32.totalorder %s42, 1
      %p539 = por %p537, %p538
      %p541 = scmp.ne.s32.totalorder %s524, %s540
      %p542 = scmp.eq.s32.totalorder %s42, 0
      %p543 = por %p541, %p542
      %s545 = sadd.s32 %s544, 1
      %p548 = scmp.eq.s32.totalorder %s36, 1
      %p549 = scmp.ne.s32.totalorder %s544, %s546
      %p550 = scmp.eq.s32.totalorder %s36, 0
      %p551 = por %p549, %p550
      %p552 = scmp.ne.s32.totalorder %s544, %s546
      %p553 = scmp.eq.s32.totalorder %s41, 1
      %p554 = por %p552, %p553
      %p555 = scmp.ne.s32.totalorder %s546, %s547
      %p556 = scmp.eq.s32.totalorder %s41, 0
      %p557 = por %p555, %p556
      %p558 = scmp.ne.s32.totalorder %s546, %s547
      %p559 = scmp.eq.s32.totalorder %s42, 1
      %p560 = por %p558, %p559
      %p562 = scmp.ne.s32.totalorder %s547, %s561
      %p563 = scmp.eq.s32.totalorder %s42, 0
      %p564 = por %p562, %p563
      %s566 = sadd.s32 %s565, 1
      %p569 = scmp.eq.s32.totalorder %s36, 1
      %p570 = scmp.ne.s32.totalorder %s565, %s567
      %p571 = scmp.eq.s32.totalorder %s36, 0
      %p572 = por %p570, %p571
      %p573 = scmp.ne.s32.totalorder %s565, %s567
      %p574 = scmp.eq.s32.totalorder %s41, 1
      %p575 = por %p573, %p574
      %p576 = scmp.ne.s32.totalorder %s567, %s568
      %p577 = scmp.eq.s32.totalorder %s41, 0
      %p578 = por %p576, %p577
      %p579 = scmp.ne.s32.totalorder %s567, %s568
      %p580 = scmp.eq.s32.totalorder %s42, 1
      %p581 = por %p579, %p580
      %p583 = scmp.ne.s32.totalorder %s568, %s582
      %p584 = scmp.eq.s32.totalorder %s42, 0
      %p585 = por %p583, %p584
      %s587 = sadd.s32 %s586, 1
      %p590 = scmp.eq.s32.totalorder %s36, 1
      %p591 = scmp.ne.s32.totalorder %s586, %s588
      %p592 = scmp.eq.s32.totalorder %s36, 0
      %p593 = por %p591, %p592
      %p594 = scmp.ne.s32.totalorder %s586, %s588
      %p595 = scmp.eq.s32.totalorder %s41, 1
      %p596 = por %p594, %p595
      %p597 = scmp.ne.s32.totalorder %s588, %s589
      %p598 = scmp.eq.s32.totalorder %s41, 0
      %p599 = por %p597, %p598
      %p600 = scmp.ne.s32.totalorder %s588, %s589
      %p601 = scmp.eq.s32.totalorder %s42, 1
      %p602 = por %p600, %p601
      %p604 = scmp.ne.s32.totalorder %s589, %s603
      %p605 = scmp.eq.s32.totalorder %s42, 0
      %p606 = por %p604, %p605
      %s608 = sadd.s32 %s607, 1
      %p611 = scmp.eq.s32.totalorder %s36, 1
      %p612 = scmp.ne.s32.totalorder %s607, %s609
      %p613 = scmp.eq.s32.totalorder %s36, 0
      %p614 = por %p612, %p613
      %p615 = scmp.ne.s32.totalorder %s607, %s609
      %p616 = scmp.eq.s32.totalorder %s41, 1
      %p617 = por %p615, %p616
      %p618 = scmp.ne.s32.totalorder %s609, %s610
      %p619 = scmp.eq.s32.totalorder %s41, 0
      %p620 = por %p618, %p619
      %p621 = scmp.ne.s32.totalorder %s609, %s610
      %p622 = scmp.eq.s32.totalorder %s42, 1
      %p623 = por %p621, %p622
      %p625 = scmp.ne.s32.totalorder %s610, %s624
      %p626 = scmp.eq.s32.totalorder %s42, 0
      %p627 = por %p625, %p626
      %s629 = sadd.s32 %s628, 1
      %p632 = scmp.eq.s32.totalorder %s36, 1
      %p633 = scmp.ne.s32.totalorder %s628, %s630
      %p634 = scmp.eq.s32.totalorder %s36, 0
      %p635 = por %p633, %p634
      %p636 = scmp.ne.s32.totalorder %s628, %s630
      %p637 = scmp.eq.s32.totalorder %s41, 1
      %p638 = por %p636, %p637
      %p639 = scmp.ne.s32.totalorder %s630, %s631
      %p640 = scmp.eq.s32.totalorder %s41, 0
      %p641 = por %p639, %p640
      %p642 = scmp.ne.s32.totalorder %s630, %s631
      %p643 = scmp.eq.s32.totalorder %s42, 1
      %p644 = por %p642, %p643
      %p646 = scmp.ne.s32.totalorder %s631, %s645
      %p647 = scmp.eq.s32.totalorder %s42, 0
      %p648 = por %p646, %p647
      %s650 = sadd.s32 %s649, 1
      %p653 = scmp.eq.s32.totalorder %s36, 1
      %p654 = scmp.ne.s32.totalorder %s649, %s651
      %p655 = scmp.eq.s32.totalorder %s36, 0
      %p656 = por %p654, %p655
      %p657 = scmp.ne.s32.totalorder %s649, %s651
      %p658 = scmp.eq.s32.totalorder %s41, 1
      %p659 = por %p657, %p658
      %p660 = scmp.ne.s32.totalorder %s651, %s652
      %p661 = scmp.eq.s32.totalorder %s41, 0
      %p662 = por %p660, %p661
      %p663 = scmp.ne.s32.totalorder %s651, %s652
      %p664 = scmp.eq.s32.totalorder %s42, 1
      %p665 = por %p663, %p664
      %p667 = scmp.ne.s32.totalorder %s652, %s666
      %p668 = scmp.eq.s32.totalorder %s42, 0
      %p669 = por %p667, %p668
      %p670 = scmp.le.s32.totalorder 1, %s36
      %p671 = scmp.lt.s32.totalorder %s36, 3
      %p672 = pnand %p670, %p671
      %p673 = pneg %p672
      // Predicated region
      $region9: #{tpu_custom_call.1} parent=5 // pred_check
        _
      $region10: #{tpu_custom_call.1} parent=5 // pred_check_branch
        %675 = sbr.rel (%p672) target = $region12
      $region11: #{tpu_custom_call.1} parent=5 // pred_region
        %s676 = ssub.s32 %s36, 1
        // Predicated region
        $region13: #{tpu_custom_call.1} parent=11 // pred_check
          %p677 = pneg %p57
        $region14: #{tpu_custom_call.1} parent=11 // pred_check_branch
          %679 = sbr.rel (%p677) target = $region16
        $region15: #{tpu_custom_call.1} parent=11 // pred_region
          %s681 = ssub.s32 256, 256
          %682 = vsyncadd [#allocation4], %s681
          %s683 = sshll.u32 [#allocation3], 4
          %s684 = int_to_ptr.vmem [resolvable:$true] %s683
          %689 = dma.hbm_to_vmem [thread:$0]  %s0, 256, %s684, [#allocation4], 128, 128, 8
        $region16: #{tpu_custom_call.1} parent=11 // pred_fallthru
          _
        // Predicated region
        $region17: #{tpu_custom_call.1} parent=11 // pred_check
          %p690 = pneg %p78
        $region18: #{tpu_custom_call.1} parent=11 // pred_check_branch
          %692 = sbr.rel (%p690) target = $region20
        $region19: #{tpu_custom_call.1} parent=11 // pred_region
          _
        $region20: #{tpu_custom_call.1} parent=11 // pred_fallthru
          _
        // Predicated region
        $region21: #{tpu_custom_call.1} parent=11 // pred_check
          %p693 = pneg %p99
        $region22: #{tpu_custom_call.1} parent=11 // pred_check_branch
          %695 = sbr.rel (%p693) target = $region24
        $region23: #{tpu_custom_call.1} parent=11 // pred_region
          _
        $region24: #{tpu_custom_call.1} parent=11 // pred_fallthru
          _
        // Predicated region
        $region25: #{tpu_custom_call.1} parent=11 // pred_check
          %p696 = pneg %p120
        $region26: #{tpu_custom_call.1} parent=11 // pred_check_branch
          %698 = sbr.rel (%p696) target = $region28
        $region27: #{tpu_custom_call.1} parent=11 // pred_region
          %s700 = ssub.s32 16, 16
          %701 = vsyncadd [#allocation7], %s700
          %s703 = sshll.u32 [#allocation6], 4
          %s704 = int_to_ptr.vmem [resolvable:$true] %s703
          %706 = dma.hbm_to_vmem [thread:$0]  %s3, 16, %s704, [#allocation7]
        $region28: #{tpu_custom_call.1} parent=11 // pred_fallthru
          _
        // Predicated region
        $region29: #{tpu_custom_call.1} parent=11 // pred_check
          %p707 = pneg %p557
        $region30: #{tpu_custom_call.1} parent=11 // pred_check_branch
          %709 = sbr.rel (%p707) target = $region32
        $region31: #{tpu_custom_call.1} parent=11 // pred_region
          _
        $region32: #{tpu_custom_call.1} parent=11 // pred_fallthru
          _
        // Predicated region
        $region33: #{tpu_custom_call.1} parent=11 // pred_check
          %p710 = pneg %p578
        $region34: #{tpu_custom_call.1} parent=11 // pred_check_branch
          %712 = sbr.rel (%p710) target = $region36
        $region35: #{tpu_custom_call.1} parent=11 // pred_region
          _
        $region36: #{tpu_custom_call.1} parent=11 // pred_fallthru
          _
        // Predicated region
        $region37: #{tpu_custom_call.1} parent=11 // pred_check
          %p713 = pneg %p599
        $region38: #{tpu_custom_call.1} parent=11 // pred_check_branch
          %715 = sbr.rel (%p713) target = $region40
        $region39: #{tpu_custom_call.1} parent=11 // pred_region
          %s717 = ssub.s32 1024, 1024
          %718 = vsyncadd [#allocation7], %s717
          %s719 = sshll.u32 [#allocation23], 4
          %s720 = int_to_ptr.vmem [resolvable:$true] %s719
          %725 = dma.hbm_to_vmem [thread:$0]  %s22, 1024, %s720, [#allocation7], 64, 64, 4
        $region40: #{tpu_custom_call.1} parent=11 // pred_fallthru
          _
        // Predicated region
        $region41: #{tpu_custom_call.1} parent=11 // pred_check
          %p726 = pneg %p620
        $region42: #{tpu_custom_call.1} parent=11 // pred_check_branch
          %728 = sbr.rel (%p726) target = $region44
        $region43: #{tpu_custom_call.1} parent=11 // pred_region
          _
        $region44: #{tpu_custom_call.1} parent=11 // pred_fallthru
          _
      $region12: #{tpu_custom_call.1} parent=5 // pred_fallthru
        _
      %p729 = scmp.lt.s32.totalorder %s36, 2
      // Predicated region
      $region45: #{tpu_custom_call.1} parent=5 // pred_check
        %p730 = pneg %p729
      $region46: #{tpu_custom_call.1} parent=5 // pred_check_branch
        %732 = sbr.rel (%p730) target = $region48
      $region47: #{tpu_custom_call.1} parent=5 // pred_region
        // Predicated region
        $region49: #{tpu_custom_call.1} parent=47 // pred_check
          %p733 = pneg %p140
        $region50: #{tpu_custom_call.1} parent=47 // pred_check_branch
          %735 = sbr.rel (%p733) target = $region52
        $region51: #{tpu_custom_call.1} parent=47 // pred_region
          %s736 = sand.u32 %s36, 1
          %s737 = scalar_lea.sflag [#allocation4], %s736
          %s738 = sand.u32 %s130, 1
          %s739 = smul.addr %s738, 64
          %s740 = scalar_lea.vmem [#allocation8], %s739
          %s742 = ssub.s32 1024, 1024
          %743 = vsyncadd %s737, %s742
          %s744 = smul.addr %s36, 16
          %s745 = smul.addr %s744, 64
          %s746 = scalar_lea.hbm %s4, %s745
          %s747 = sshll.u32 %s740, 4
          %s748 = int_to_ptr.vmem [resolvable:$true] %s747
          %753 = dma.hbm_to_vmem [thread:$0]  %s746, 1024, %s748, %s737, 64, 64, 4
        $region52: #{tpu_custom_call.1} parent=47 // pred_fallthru
          _
        // Predicated region
        $region53: #{tpu_custom_call.1} parent=47 // pred_check
          %p754 = pneg %p166
        $region54: #{tpu_custom_call.1} parent=47 // pred_check_branch
          %756 = sbr.rel (%p754) target = $region56
        $region55: #{tpu_custom_call.1} parent=47 // pred_region
          %s757 = sand.u32 %s36, 1
          %s758 = scalar_lea.sflag [#allocation4], %s757
          %s759 = sand.u32 %s156, 1
          %s760 = scalar_lea.vmem [#allocation9], %s759
          %s762 = ssub.s32 16, 16
          %763 = vsyncadd %s758, %s762
          %s764 = smul.addr %s36, 16
          %s765 = scalar_lea.hbm %s5, %s764
          %s767 = sshll.u32 %s760, 4
          %s768 = int_to_ptr.vmem [resolvable:$true] %s767
          %770 = dma.hbm_to_vmem [thread:$0]  %s765, 16, %s768, %s758
        $region56: #{tpu_custom_call.1} parent=47 // pred_fallthru
          _
        // Predicated region
        $region57: #{tpu_custom_call.1} parent=47 // pred_check
          %p771 = pneg %p192
        $region58: #{tpu_custom_call.1} parent=47 // pred_check_branch
          %773 = sbr.rel (%p771) target = $region60
        $region59: #{tpu_custom_call.1} parent=47 // pred_region
          %s774 = sand.u32 %s36, 1
          %s775 = scalar_lea.sflag [#allocation4], %s774
          %s776 = sand.u32 %s182, 1
          %s777 = smul.addr %s776, 64
          %s778 = scalar_lea.vmem [#allocation10], %s777
          %s780 = ssub.s32 1024, 1024
          %781 = vsyncadd %s775, %s780
          %s782 = smul.addr %s36, 16
          %s783 = smul.addr %s782, 64
          %s784 = scalar_lea.hbm %s6, %s783
          %s785 = sshll.u32 %s778, 4
          %s786 = int_to_ptr.vmem [resolvable:$true] %s785
          %791 = dma.hbm_to_vmem [thread:$0]  %s784, 1024, %s786, %s775, 64, 64, 4
        $region60: #{tpu_custom_call.1} parent=47 // pred_fallthru
          _
        // Predicated region
        $region61: #{tpu_custom_call.1} parent=47 // pred_check
          %p792 = pneg %p218
        $region62: #{tpu_custom_call.1} parent=47 // pred_check_branch
          %794 = sbr.rel (%p792) target = $region64
        $region63: #{tpu_custom_call.1} parent=47 // pred_region
          %s795 = sand.u32 %s36, 1
          %s796 = scalar_lea.sflag [#allocation4], %s795
          %s797 = sand.u32 %s208, 1
          %s798 = scalar_lea.vmem [#allocation11], %s797
          %s800 = ssub.s32 16, 16
          %801 = vsyncadd %s796, %s800
          %s802 = smul.addr %s36, 16
          %s803 = scalar_lea.hbm %s7, %s802
          %s805 = sshll.u32 %s798, 4
          %s806 = int_to_ptr.vmem [resolvable:$true] %s805
          %808 = dma.hbm_to_vmem [thread:$0]  %s803, 16, %s806, %s796
        $region64: #{tpu_custom_call.1} parent=47 // pred_fallthru
          _
        // Predicated region
        $region65: #{tpu_custom_call.1} parent=47 // pred_check
          %p809 = pneg %p244
        $region66: #{tpu_custom_call.1} parent=47 // pred_check_branch
          %811 = sbr.rel (%p809) target = $region68
        $region67: #{tpu_custom_call.1} parent=47 // pred_region
          %s812 = sand.u32 %s36, 1
          %s813 = scalar_lea.sflag [#allocation4], %s812
          %s814 = sand.u32 %s234, 1
          %s815 = smul.addr %s814, 64
          %s816 = scalar_lea.vmem [#allocation12], %s815
          %s818 = ssub.s32 1024, 1024
          %819 = vsyncadd %s813, %s818
          %s820 = smul.addr %s36, 16
          %s821 = smul.addr %s820, 64
          %s822 = scalar_lea.hbm %s8, %s821
          %s823 = sshll.u32 %s816, 4
          %s824 = int_to_ptr.vmem [resolvable:$true] %s823
          %829 = dma.hbm_to_vmem [thread:$0]  %s822, 1024, %s824, %s813, 64, 64, 4
        $region68: #{tpu_custom_call.1} parent=47 // pred_fallthru
          _
        // Predicated region
        $region69: #{tpu_custom_call.1} parent=47 // pred_check
          %p830 = pneg %p270
        $region70: #{tpu_custom_call.1} parent=47 // pred_check_branch
          %832 = sbr.rel (%p830) target = $region72
        $region71: #{tpu_custom_call.1} parent=47 // pred_region
          %s833 = sand.u32 %s36, 1
          %s834 = scalar_lea.sflag [#allocation4], %s833
          %s835 = sand.u32 %s260, 1
          %s836 = scalar_lea.vmem [#allocation13], %s835
          %s838 = ssub.s32 16, 16
          %839 = vsyncadd %s834, %s838
          %s840 = smul.addr %s36, 16
          %s841 = scalar_lea.hbm %s9, %s840
          %s843 = sshll.u32 %s836, 4
          %s844 = int_to_ptr.vmem [resolvable:$true] %s843
          %846 = dma.hbm_to_vmem [thread:$0]  %s841, 16, %s844, %s834
        $region72: #{tpu_custom_call.1} parent=47 // pred_fallthru
          _
        // Predicated region
        $region73: #{tpu_custom_call.1} parent=47 // pred_check
          %p847 = pneg %p296
        $region74: #{tpu_custom_call.1} parent=47 // pred_check_branch
          %849 = sbr.rel (%p847) target = $region76
        $region75: #{tpu_custom_call.1} parent=47 // pred_region
          %s850 = sand.u32 %s36, 1
          %s851 = scalar_lea.sflag [#allocation4], %s850
          %s852 = sand.u32 %s286, 1
          %s853 = smul.addr %s852, 64
          %s854 = scalar_lea.vmem [#allocation14], %s853
          %s856 = ssub.s32 1024, 1024
          %857 = vsyncadd %s851, %s856
          %s858 = smul.addr %s36, 16
          %s859 = smul.addr %s858, 64
          %s860 = scalar_lea.hbm %s10, %s859
          %s861 = sshll.u32 %s854, 4
          %s862 = int_to_ptr.vmem [resolvable:$true] %s861
          %867 = dma.hbm_to_vmem [thread:$0]  %s860, 1024, %s862, %s851, 64, 64, 4
        $region76: #{tpu_custom_call.1} parent=47 // pred_fallthru
          _
        // Predicated region
        $region77: #{tpu_custom_call.1} parent=47 // pred_check
          %p868 = pneg %p322
        $region78: #{tpu_custom_call.1} parent=47 // pred_check_branch
          %870 = sbr.rel (%p868) target = $region80
        $region79: #{tpu_custom_call.1} parent=47 // pred_region
          %s871 = sand.u32 %s36, 1
          %s872 = scalar_lea.sflag [#allocation4], %s871
          %s873 = sand.u32 %s312, 1
          %s874 = scalar_lea.vmem [#allocation15], %s873
          %s876 = ssub.s32 16, 16
          %877 = vsyncadd %s872, %s876
          %s878 = smul.addr %s36, 16
          %s879 = scalar_lea.hbm %s11, %s878
          %s881 = sshll.u32 %s874, 4
          %s882 = int_to_ptr.vmem [resolvable:$true] %s881
          %884 = dma.hbm_to_vmem [thread:$0]  %s879, 16, %s882, %s872
        $region80: #{tpu_custom_call.1} parent=47 // pred_fallthru
          _
        // Predicated region
        $region81: #{tpu_custom_call.1} parent=47 // pred_check
          %p885 = pneg %p348
        $region82: #{tpu_custom_call.1} parent=47 // pred_check_branch
          %887 = sbr.rel (%p885) target = $region84
        $region83: #{tpu_custom_call.1} parent=47 // pred_region
          %s888 = sand.u32 %s36, 1
          %s889 = scalar_lea.sflag [#allocation4], %s888
          %s890 = sand.u32 %s338, 1
          %s891 = scalar_lea.vmem [#allocation16], %s890
          %s893 = ssub.s32 16, 16
          %894 = vsyncadd %s889, %s893
          %s895 = smul.addr %s36, 16
          %s896 = scalar_lea.hbm %s12, %s895
          %s898 = sshll.u32 %s891, 4
          %s899 = int_to_ptr.vmem [resolvable:$true] %s898
          %901 = dma.hbm_to_vmem [thread:$0]  %s896, 16, %s899, %s889
        $region84: #{tpu_custom_call.1} parent=47 // pred_fallthru
          _
        // Predicated region
        $region85: #{tpu_custom_call.1} parent=47 // pred_check
          %p902 = pneg %p374
        $region86: #{tpu_custom_call.1} parent=47 // pred_check_branch
          %904 = sbr.rel (%p902) target = $region88
        $region87: #{tpu_custom_call.1} parent=47 // pred_region
          %s905 = sand.u32 %s36, 1
          %s906 = scalar_lea.sflag [#allocation4], %s905
          %s907 = sand.u32 %s364, 1
          %s908 = scalar_lea.vmem [#allocation17], %s907
          %s910 = ssub.s32 16, 16
          %911 = vsyncadd %s906, %s910
          %s912 = smul.addr %s36, 16
          %s913 = scalar_lea.hbm %s13, %s912
          %s915 = sshll.u32 %s908, 4
          %s916 = int_to_ptr.vmem [resolvable:$true] %s915
          %918 = dma.hbm_to_vmem [thread:$0]  %s913, 16, %s916, %s906
        $region88: #{tpu_custom_call.1} parent=47 // pred_fallthru
          _
        // Predicated region
        $region89: #{tpu_custom_call.1} parent=47 // pred_check
          %p919 = pneg %p400
        $region90: #{tpu_custom_call.1} parent=47 // pred_check_branch
          %921 = sbr.rel (%p919) target = $region92
        $region91: #{tpu_custom_call.1} parent=47 // pred_region
          %s922 = sand.u32 %s36, 1
          %s923 = scalar_lea.sflag [#allocation4], %s922
          %s924 = sand.u32 %s390, 1
          %s925 = smul.addr %s924, 256
          %s926 = scalar_lea.vmem [#allocation18], %s925
          %s928 = ssub.s32 4096, 4096
          %929 = vsyncadd %s923, %s928
          %s930 = smul.addr %s36, 64
          %s931 = smul.addr %s930, 64
          %s932 = scalar_lea.hbm %s14, %s931
          %s933 = sshll.u32 %s926, 4
          %s934 = int_to_ptr.vmem [resolvable:$true] %s933
          %939 = dma.hbm_to_vmem [thread:$0]  %s932, 4096, %s934, %s923, 256, 256, 16
        $region92: #{tpu_custom_call.1} parent=47 // pred_fallthru
          _
        // Predicated region
        $region93: #{tpu_custom_call.1} parent=47 // pred_check
          %p940 = pneg %p426
        $region94: #{tpu_custom_call.1} parent=47 // pred_check_branch
          %942 = sbr.rel (%p940) target = $region96
        $region95: #{tpu_custom_call.1} parent=47 // pred_region
          %p943 = scmp.lt.s32.totalorder %s36, 1
          %s944 = scalar_select %p943, %s36, 1
          %s945 = smul.addr %s944, 4
          %s946 = scalar_lea.vmem %s15, %s945
        $region96: #{tpu_custom_call.1} parent=47 // pred_fallthru
          _
        // Predicated region
        $region97: #{tpu_custom_call.1} parent=47 // pred_check
          %p947 = pneg %p452
        $region98: #{tpu_custom_call.1} parent=47 // pred_check_branch
          %949 = sbr.rel (%p947) target = $region100
        $region99: #{tpu_custom_call.1} parent=47 // pred_region
          %s950 = sand.u32 %s36, 1
          %s951 = scalar_lea.sflag [#allocation4], %s950
          %s952 = sand.u32 %s442, 1
          %s953 = smul.addr %s952, 256
          %s954 = scalar_lea.vmem [#allocation19], %s953
          %s956 = ssub.s32 4096, 4096
          %957 = vsyncadd %s951, %s956
          %s958 = smul.addr %s36, 64
          %s959 = smul.addr %s958, 64
          %s960 = scalar_lea.hbm %s16, %s959
          %s961 = sshll.u32 %s954, 4
          %s962 = int_to_ptr.vmem [resolvable:$true] %s961
          %967 = dma.hbm_to_vmem [thread:$0]  %s960, 4096, %s962, %s951, 64, 64, 4
        $region100: #{tpu_custom_call.1} parent=47 // pred_fallthru
          _
        // Predicated region
        $region101: #{tpu_custom_call.1} parent=47 // pred_check
          %p968 = pneg %p478
        $region102: #{tpu_custom_call.1} parent=47 // pred_check_branch
          %970 = sbr.rel (%p968) target = $region104
        $region103: #{tpu_custom_call.1} parent=47 // pred_region
          %s971 = sand.u32 %s36, 1
          %s972 = scalar_lea.sflag [#allocation4], %s971
          %s973 = sand.u32 %s468, 1
          %s974 = scalar_lea.vmem [#allocation20], %s973
          %s976 = ssub.s32 16, 16
          %977 = vsyncadd %s972, %s976
          %s978 = smul.addr %s36, 16
          %s979 = scalar_lea.hbm %s17, %s978
          %s981 = sshll.u32 %s974, 4
          %s982 = int_to_ptr.vmem [resolvable:$true] %s981
          %984 = dma.hbm_to_vmem [thread:$0]  %s979, 16, %s982, %s972
        $region104: #{tpu_custom_call.1} parent=47 // pred_fallthru
          _
        // Predicated region
        $region105: #{tpu_custom_call.1} parent=47 // pred_check
          %p985 = pneg %p504
        $region106: #{tpu_custom_call.1} parent=47 // pred_check_branch
          %987 = sbr.rel (%p985) target = $region108
        $region107: #{tpu_custom_call.1} parent=47 // pred_region
          %s988 = sand.u32 %s36, 1
          %s989 = scalar_lea.sflag [#allocation4], %s988
          %s990 = sand.u32 %s494, 1
          %s991 = scalar_lea.vmem [#allocation21], %s990
          %s993 = ssub.s32 16, 16
          %994 = vsyncadd %s989, %s993
          %s995 = smul.addr %s36, 16
          %s996 = scalar_lea.hbm %s18, %s995
          %s998 = sshll.u32 %s991, 4
          %s999 = int_to_ptr.vmem [resolvable:$true] %s998
          %1001 = dma.hbm_to_vmem [thread:$0]  %s996, 16, %s999, %s989
        $region108: #{tpu_custom_call.1} parent=47 // pred_fallthru
          _
        // Predicated region
        $region109: #{tpu_custom_call.1} parent=47 // pred_check
          %p1002 = pneg %p530
        $region110: #{tpu_custom_call.1} parent=47 // pred_check_branch
          %1004 = sbr.rel (%p1002) target = $region112
        $region111: #{tpu_custom_call.1} parent=47 // pred_region
          %s1005 = sand.u32 %s36, 1
          %s1006 = scalar_lea.sflag [#allocation4], %s1005
          %s1007 = sand.u32 %s520, 1
          %s1008 = scalar_lea.vmem [#allocation22], %s1007
          %s1010 = ssub.s32 16, 16
          %1011 = vsyncadd %s1006, %s1010
          %s1012 = smul.addr %s36, 16
          %s1013 = scalar_lea.hbm %s19, %s1012
          %s1015 = sshll.u32 %s1008, 4
          %s1016 = int_to_ptr.vmem [resolvable:$true] %s1015
          %1018 = dma.hbm_to_vmem [thread:$0]  %s1013, 16, %s1016, %s1006
        $region112: #{tpu_custom_call.1} parent=47 // pred_fallthru
          _
      $region48: #{tpu_custom_call.1} parent=5 // pred_fallthru
        _
      %p1019 = scmp.le.s32.totalorder 1, %s36
      %p1020 = scmp.lt.s32.totalorder %s36, 3
      %p1021 = pnand %p1019, %p1020
      %p1022 = pneg %p1021
      // Predicated region
      $region113: #{tpu_custom_call.1} parent=5 // pred_check
        _
      $region114: #{tpu_custom_call.1} parent=5 // pred_check_branch
        %1024 = sbr.rel (%p1021) target = $region116
      $region115: #{tpu_custom_call.1} parent=5 // pred_region
        %s1025 = ssub.s32 %s36, 1
        // Predicated region
        $region117: #{tpu_custom_call.1} parent=115 // pred_check
          %p1026 = pneg %p57
        $region118: #{tpu_custom_call.1} parent=115 // pred_check_branch
          %1028 = sbr.rel (%p1026) target = $region120
        $region119: #{tpu_custom_call.1} parent=115 // pred_region
          %1029 = dma.done [#allocation4], 256
        $region120: #{tpu_custom_call.1} parent=115 // pred_fallthru
          _
        // Predicated region
        $region121: #{tpu_custom_call.1} parent=115 // pred_check
          %p1030 = pneg %p120
        $region122: #{tpu_custom_call.1} parent=115 // pred_check_branch
          %1032 = sbr.rel (%p1030) target = $region124
        $region123: #{tpu_custom_call.1} parent=115 // pred_region
          %1033 = dma.done [#allocation7], 16
        $region124: #{tpu_custom_call.1} parent=115 // pred_fallthru
          _
        %s1034 = sand.u32 %s41, 1
        %s1035 = scalar_lea.sflag [#allocation4], %s1034
        %s1036 = sand.u32 %s133, 1
        %s1037 = smul.addr %s1036, 64
        %s1038 = scalar_lea.vmem [#allocation8], %s1037
        // Predicated region
        $region125: #{tpu_custom_call.1} parent=115 // pred_check
          %p1039 = pneg %p146
        $region126: #{tpu_custom_call.1} parent=115 // pred_check_branch
          %1041 = sbr.rel (%p1039) target = $region128
        $region127: #{tpu_custom_call.1} parent=115 // pred_region
          %1042 = dma.done %s1035, 1024
        $region128: #{tpu_custom_call.1} parent=115 // pred_fallthru
          _
        %s1043 = sand.u32 %s41, 1
        %s1044 = scalar_lea.sflag [#allocation4], %s1043
        %s1045 = sand.u32 %s159, 1
        %s1046 = scalar_lea.vmem [#allocation9], %s1045
        // Predicated region
        $region129: #{tpu_custom_call.1} parent=115 // pred_check
          %p1047 = pneg %p172
        $region130: #{tpu_custom_call.1} parent=115 // pred_check_branch
          %1049 = sbr.rel (%p1047) target = $region132
        $region131: #{tpu_custom_call.1} parent=115 // pred_region
          %1050 = dma.done %s1044, 16
        $region132: #{tpu_custom_call.1} parent=115 // pred_fallthru
          _
        %s1051 = sand.u32 %s41, 1
        %s1052 = scalar_lea.sflag [#allocation4], %s1051
        %s1053 = sand.u32 %s185, 1
        %s1054 = smul.addr %s1053, 64
        %s1055 = scalar_lea.vmem [#allocation10], %s1054
        // Predicated region
        $region133: #{tpu_custom_call.1} parent=115 // pred_check
          %p1056 = pneg %p198
        $region134: #{tpu_custom_call.1} parent=115 // pred_check_branch
          %1058 = sbr.rel (%p1056) target = $region136
        $region135: #{tpu_custom_call.1} parent=115 // pred_region
          %1059 = dma.done %s1052, 1024
        $region136: #{tpu_custom_call.1} parent=115 // pred_fallthru
          _
        %s1060 = sand.u32 %s41, 1
        %s1061 = scalar_lea.sflag [#allocation4], %s1060
        %s1062 = sand.u32 %s211, 1
        %s1063 = scalar_lea.vmem [#allocation11], %s1062
        // Predicated region
        $region137: #{tpu_custom_call.1} parent=115 // pred_check
          %p1064 = pneg %p224
        $region138: #{tpu_custom_call.1} parent=115 // pred_check_branch
          %1066 = sbr.rel (%p1064) target = $region140
        $region139: #{tpu_custom_call.1} parent=115 // pred_region
          %1067 = dma.done %s1061, 16
        $region140: #{tpu_custom_call.1} parent=115 // pred_fallthru
          _
        %s1068 = sand.u32 %s41, 1
        %s1069 = scalar_lea.sflag [#allocation4], %s1068
        %s1070 = sand.u32 %s237, 1
        %s1071 = smul.addr %s1070, 64
        %s1072 = scalar_lea.vmem [#allocation12], %s1071
        // Predicated region
        $region141: #{tpu_custom_call.1} parent=115 // pred_check
          %p1073 = pneg %p250
        $region142: #{tpu_custom_call.1} parent=115 // pred_check_branch
          %1075 = sbr.rel (%p1073) target = $region144
        $region143: #{tpu_custom_call.1} parent=115 // pred_region
          %1076 = dma.done %s1069, 1024
        $region144: #{tpu_custom_call.1} parent=115 // pred_fallthru
          _
        %s1077 = sand.u32 %s41, 1
        %s1078 = scalar_lea.sflag [#allocation4], %s1077
        %s1079 = sand.u32 %s263, 1
        %s1080 = scalar_lea.vmem [#allocation13], %s1079
        // Predicated region
        $region145: #{tpu_custom_call.1} parent=115 // pred_check
          %p1081 = pneg %p276
        $region146: #{tpu_custom_call.1} parent=115 // pred_check_branch
          %1083 = sbr.rel (%p1081) target = $region148
        $region147: #{tpu_custom_call.1} parent=115 // pred_region
          %1084 = dma.done %s1078, 16
        $region148: #{tpu_custom_call.1} parent=115 // pred_fallthru
          _
        %s1085 = sand.u32 %s41, 1
        %s1086 = scalar_lea.sflag [#allocation4], %s1085
        %s1087 = sand.u32 %s289, 1
        %s1088 = smul.addr %s1087, 64
        %s1089 = scalar_lea.vmem [#allocation14], %s1088
        // Predicated region
        $region149: #{tpu_custom_call.1} parent=115 // pred_check
          %p1090 = pneg %p302
        $region150: #{tpu_custom_call.1} parent=115 // pred_check_branch
          %1092 = sbr.rel (%p1090) target = $region152
        $region151: #{tpu_custom_call.1} parent=115 // pred_region
          %1093 = dma.done %s1086, 1024
        $region152: #{tpu_custom_call.1} parent=115 // pred_fallthru
          _
        %s1094 = sand.u32 %s41, 1
        %s1095 = scalar_lea.sflag [#allocation4], %s1094
        %s1096 = sand.u32 %s315, 1
        %s1097 = scalar_lea.vmem [#allocation15], %s1096
        // Predicated region
        $region153: #{tpu_custom_call.1} parent=115 // pred_check
          %p1098 = pneg %p328
        $region154: #{tpu_custom_call.1} parent=115 // pred_check_branch
          %1100 = sbr.rel (%p1098) target = $region156
        $region155: #{tpu_custom_call.1} parent=115 // pred_region
          %1101 = dma.done %s1095, 16
        $region156: #{tpu_custom_call.1} parent=115 // pred_fallthru
          _
        %s1102 = sand.u32 %s41, 1
        %s1103 = scalar_lea.sflag [#allocation4], %s1102
        %s1104 = sand.u32 %s341, 1
        %s1105 = scalar_lea.vmem [#allocation16], %s1104
        // Predicated region
        $region157: #{tpu_custom_call.1} parent=115 // pred_check
          %p1106 = pneg %p354
        $region158: #{tpu_custom_call.1} parent=115 // pred_check_branch
          %1108 = sbr.rel (%p1106) target = $region160
        $region159: #{tpu_custom_call.1} parent=115 // pred_region
          %1109 = dma.done %s1103, 16
        $region160: #{tpu_custom_call.1} parent=115 // pred_fallthru
          _
        %s1110 = sand.u32 %s41, 1
        %s1111 = scalar_lea.sflag [#allocation4], %s1110
        %s1112 = sand.u32 %s367, 1
        %s1113 = scalar_lea.vmem [#allocation17], %s1112
        // Predicated region
        $region161: #{tpu_custom_call.1} parent=115 // pred_check
          %p1114 = pneg %p380
        $region162: #{tpu_custom_call.1} parent=115 // pred_check_branch
          %1116 = sbr.rel (%p1114) target = $region164
        $region163: #{tpu_custom_call.1} parent=115 // pred_region
          %1117 = dma.done %s1111, 16
        $region164: #{tpu_custom_call.1} parent=115 // pred_fallthru
          _
        %s1118 = sand.u32 %s41, 1
        %s1119 = scalar_lea.sflag [#allocation4], %s1118
        %s1120 = sand.u32 %s393, 1
        %s1121 = smul.addr %s1120, 256
        %s1122 = scalar_lea.vmem [#allocation18], %s1121
        // Predicated region
        $region165: #{tpu_custom_call.1} parent=115 // pred_check
          %p1123 = pneg %p406
        $region166: #{tpu_custom_call.1} parent=115 // pred_check_branch
          %1125 = sbr.rel (%p1123) target = $region168
        $region167: #{tpu_custom_call.1} parent=115 // pred_region
          %1126 = dma.done %s1119, 4096
        $region168: #{tpu_custom_call.1} parent=115 // pred_fallthru
          _
        %s1127 = sand.u32 %s41, 1
        %s1128 = scalar_lea.sflag [#allocation4], %s1127
        %s1129 = sand.u32 %s445, 1
        %s1130 = smul.addr %s1129, 256
        %s1131 = scalar_lea.vmem [#allocation19], %s1130
        // Predicated region
        $region169: #{tpu_custom_call.1} parent=115 // pred_check
          %p1132 = pneg %p458
        $region170: #{tpu_custom_call.1} parent=115 // pred_check_branch
          %1134 = sbr.rel (%p1132) target = $region172
        $region171: #{tpu_custom_call.1} parent=115 // pred_region
          %1135 = dma.done %s1128, 4096
        $region172: #{tpu_custom_call.1} parent=115 // pred_fallthru
          _
        %s1136 = sand.u32 %s41, 1
        %s1137 = scalar_lea.sflag [#allocation4], %s1136
        %s1138 = sand.u32 %s471, 1
        %s1139 = scalar_lea.vmem [#allocation20], %s1138
        // Predicated region
        $region173: #{tpu_custom_call.1} parent=115 // pred_check
          %p1140 = pneg %p484
        $region174: #{tpu_custom_call.1} parent=115 // pred_check_branch
          %1142 = sbr.rel (%p1140) target = $region176
        $region175: #{tpu_custom_call.1} parent=115 // pred_region
          %1143 = dma.done %s1137, 16
        $region176: #{tpu_custom_call.1} parent=115 // pred_fallthru
          _
        %s1144 = sand.u32 %s41, 1
        %s1145 = scalar_lea.sflag [#allocation4], %s1144
        %s1146 = sand.u32 %s497, 1
        %s1147 = scalar_lea.vmem [#allocation21], %s1146
        // Predicated region
        $region177: #{tpu_custom_call.1} parent=115 // pred_check
          %p1148 = pneg %p510
        $region178: #{tpu_custom_call.1} parent=115 // pred_check_branch
          %1150 = sbr.rel (%p1148) target = $region180
        $region179: #{tpu_custom_call.1} parent=115 // pred_region
          %1151 = dma.done %s1145, 16
        $region180: #{tpu_custom_call.1} parent=115 // pred_fallthru
          _
        %s1152 = sand.u32 %s41, 1
        %s1153 = scalar_lea.sflag [#allocation4], %s1152
        %s1154 = sand.u32 %s523, 1
        %s1155 = scalar_lea.vmem [#allocation22], %s1154
        // Predicated region
        $region181: #{tpu_custom_call.1} parent=115 // pred_check
          %p1156 = pneg %p536
        $region182: #{tpu_custom_call.1} parent=115 // pred_check_branch
          %1158 = sbr.rel (%p1156) target = $region184
        $region183: #{tpu_custom_call.1} parent=115 // pred_region
          %1159 = dma.done %s1153, 16
        $region184: #{tpu_custom_call.1} parent=115 // pred_fallthru
          _
        // Predicated region
        $region185: #{tpu_custom_call.1} parent=115 // pred_check
          %p1160 = pneg %p599
        $region186: #{tpu_custom_call.1} parent=115 // pred_check_branch
          %1162 = sbr.rel (%p1160) target = $region188
        $region187: #{tpu_custom_call.1} parent=115 // pred_region
          %1163 = dma.done [#allocation7], 1024
        $region188: #{tpu_custom_call.1} parent=115 // pred_fallthru
          _
        %p1164 = pneg %p57
        %p1165 = pneg %p54
        %p1166 = pneg %p78
        %p1167 = pneg %p75
        %p1168 = pneg %p99
        %p1169 = pneg %p96
        %p1170 = pneg %p120
        %p1171 = pneg %p117
        %s1172 = sand.u32 %s41, 1
        %s1173 = scalar_lea.sflag [#allocation4], %s1172
        %s1174 = sand.u32 %s133, 1
        %s1175 = smul.addr %s1174, 64
        %s1176 = scalar_lea.vmem [#allocation8], %s1175
        %p1177 = pneg %p146
        %p1178 = pneg %p143
        %s1179 = sand.u32 %s41, 1
        %s1180 = scalar_lea.sflag [#allocation4], %s1179
        %s1181 = sand.u32 %s159, 1
        %s1182 = scalar_lea.vmem [#allocation9], %s1181
        %p1183 = pneg %p172
        %p1184 = pneg %p169
        %s1185 = sand.u32 %s41, 1
        %s1186 = scalar_lea.sflag [#allocation4], %s1185
        %s1187 = sand.u32 %s185, 1
        %s1188 = smul.addr %s1187, 64
        %s1189 = scalar_lea.vmem [#allocation10], %s1188
        %p1190 = pneg %p198
        %p1191 = pneg %p195
        %s1192 = sand.u32 %s41, 1
        %s1193 = scalar_lea.sflag [#allocation4], %s1192
        %s1194 = sand.u32 %s211, 1
        %s1195 = scalar_lea.vmem [#allocation11], %s1194
        %p1196 = pneg %p224
        %p1197 = pneg %p221
        %s1198 = sand.u32 %s41, 1
        %s1199 = scalar_lea.sflag [#allocation4], %s1198
        %s1200 = sand.u32 %s237, 1
        %s1201 = smul.addr %s1200, 64
        %s1202 = scalar_lea.vmem [#allocation12], %s1201
        %p1203 = pneg %p250
        %p1204 = pneg %p247
        %s1205 = sand.u32 %s41, 1
        %s1206 = scalar_lea.sflag [#allocation4], %s1205
        %s1207 = sand.u32 %s263, 1
        %s1208 = scalar_lea.vmem [#allocation13], %s1207
        %p1209 = pneg %p276
        %p1210 = pneg %p273
        %s1211 = sand.u32 %s41, 1
        %s1212 = scalar_lea.sflag [#allocation4], %s1211
        %s1213 = sand.u32 %s289, 1
        %s1214 = smul.addr %s1213, 64
        %s1215 = scalar_lea.vmem [#allocation14], %s1214
        %p1216 = pneg %p302
        %p1217 = pneg %p299
        %s1218 = sand.u32 %s41, 1
        %s1219 = scalar_lea.sflag [#allocation4], %s1218
        %s1220 = sand.u32 %s315, 1
        %s1221 = scalar_lea.vmem [#allocation15], %s1220
        %p1222 = pneg %p328
        %p1223 = pneg %p325
        %s1224 = sand.u32 %s41, 1
        %s1225 = scalar_lea.sflag [#allocation4], %s1224
        %s1226 = sand.u32 %s341, 1
        %s1227 = scalar_lea.vmem [#allocation16], %s1226
        %p1228 = pneg %p354
        %p1229 = pneg %p351
        %s1230 = sand.u32 %s41, 1
        %s1231 = scalar_lea.sflag [#allocation4], %s1230
        %s1232 = sand.u32 %s367, 1
        %s1233 = scalar_lea.vmem [#allocation17], %s1232
        %p1234 = pneg %p380
        %p1235 = pneg %p377
        %s1236 = sand.u32 %s41, 1
        %s1237 = scalar_lea.sflag [#allocation4], %s1236
        %s1238 = sand.u32 %s393, 1
        %s1239 = smul.addr %s1238, 256
        %s1240 = scalar_lea.vmem [#allocation18], %s1239
        %p1241 = pneg %p406
        %p1242 = pneg %p403
        %p1243 = scmp.lt.s32.totalorder %s41, 1
        %s1244 = scalar_select %p1243, %s41, 1
        %s1245 = smul.addr %s1244, 4
        %s1246 = scalar_lea.vmem %s15, %s1245
        %p1247 = pneg %p432
        %p1248 = pneg %p429
        %s1249 = sand.u32 %s41, 1
        %s1250 = scalar_lea.sflag [#allocation4], %s1249
        %s1251 = sand.u32 %s445, 1
        %s1252 = smul.addr %s1251, 256
        %s1253 = scalar_lea.vmem [#allocation19], %s1252
        %p1254 = pneg %p458
        %p1255 = pneg %p455
        %s1256 = sand.u32 %s41, 1
        %s1257 = scalar_lea.sflag [#allocation4], %s1256
        %s1258 = sand.u32 %s471, 1
        %s1259 = scalar_lea.vmem [#allocation20], %s1258
        %p1260 = pneg %p484
        %p1261 = pneg %p481
        %s1262 = sand.u32 %s41, 1
        %s1263 = scalar_lea.sflag [#allocation4], %s1262
        %s1264 = sand.u32 %s497, 1
        %s1265 = scalar_lea.vmem [#allocation21], %s1264
        %p1266 = pneg %p510
        %p1267 = pneg %p507
        %s1268 = sand.u32 %s41, 1
        %s1269 = scalar_lea.sflag [#allocation4], %s1268
        %s1270 = sand.u32 %s523, 1
        %s1271 = scalar_lea.vmem [#allocation22], %s1270
        %p1272 = pneg %p536
        %p1273 = pneg %p533
        %p1274 = pneg %p557
        %p1275 = pneg %p554
        %p1276 = pneg %p578
        %p1277 = pneg %p575
        %p1278 = pneg %p599
        %p1279 = pneg %p596
        %p1280 = pneg %p620
        %p1281 = pneg %p617
        %p1282 = pneg %p641
        %p1283 = pneg %p638
        %p1284 = pneg %p662
        %p1285 = pneg %p659
        %p1286 = scmp.lt.s32.totalorder %s41, 1
        %s1287 = scalar_select %p1286, %s41, 1
        %s1288 = smul.addr %s1287, 4
        %s1289 = scalar_lea.vmem %s15, %s1288
        %p1291 = scmp.eq.s32.totalorder %s41, 0
        // Predicated region
        $region189: #{tpu_custom_call.1} parent=115 // pred_check
          %p1292 = pneg %p1291
        $region190: #{tpu_custom_call.1} parent=115 // pred_check_branch
          %1294 = sbr.rel (%p1292) target = $region192
        $region191: #{tpu_custom_call.1} parent=115 // pred_region
          %v1295 = vld [vmem:[#allocation3] sm:$0xff]
          %v1296 = vld [vmem:[#allocation3 + $0x8] sm:$0xff]
          %v1297 = vld [vmem:[%s2] sm:$0x1]
          %v1298 = vld [vmem:[#allocation6] sm:$0x1]
          %1299 = vadd.xlane.f32.xlu0 %v1295
          %v1300 = vpop.xlane.xlu0 %1299
          %1301 = vadd.xlane.f32.xlu0 %v1296
          %v1302 = vpop.xlane.xlu0 %1301
          %v1303 = vrcp.pop 128.0
          %v1304 = vmul.f32 %v1300, %v1303
          %v1305 = vmul.f32 %v1302, %v1303
          %v1306 = vsub.f32 %v1295, %v1304
          %v1307 = vsub.f32 %v1296, %v1305
          %v1308 = vmul.f32 %v1306, %v1306
          %v1309 = vmul.f32 %v1307, %v1307
          %1310 = vadd.xlane.f32.xlu0 %v1308
          %v1311 = vpop.xlane.xlu0 %1310
          %1312 = vadd.xlane.f32.xlu0 %v1309
          %v1313 = vpop.xlane.xlu0 %1312
          %v1314 = vmul.f32 %v1311, %v1303
          %v1315 = vmul.f32 %v1313, %v1303
          %v1316 = vadd.f32 %v1314, 1e-05
          %v1317 = vadd.f32 %v1315, 1e-05
          %v1318 = vrsqrt.pop %v1316
          %v1319 = vrsqrt.pop %v1317
          %v1320 = vmul.f32 %v1306, %v1318
          %v1321 = vmul.f32 %v1307, %v1319
          %v1323 = vlaneseq
          %v1324 = vshrl.u32 %v1323, 7
          %v1325 = vsub.s32 0, %v1324
          %v1326 = vrot.slane %v1297, %v1325
          %v1328 = vmul.f32 %v1320, %v1326
          %v1329 = vmul.f32 %v1321, %v1326
          %v1331 = vlaneseq
          %v1332 = vshrl.u32 %v1331, 7
          %v1333 = vsub.s32 0, %v1332
          %v1334 = vrot.slane %v1298, %v1333
          %v1336 = vadd.f32 %v1328, %v1334
          %v1337 = vadd.f32 %v1329, %v1334
          %1338 = vst [vmem:[#allocation2] sm:$0xff] %v1336
          %1339 = vst [vmem:[#allocation2 + $0x8] sm:$0xff] %v1337
        $region192: #{tpu_custom_call.1} parent=115 // pred_fallthru
          _
        %v1340 = vld [vmem:[#allocation2] sm:$0xff]
        %v1341 = vld [vmem:[#allocation2 + $0x8] sm:$0xff]
        %v1342 = vpack.c.bf16 %v1341, %v1340
        %v1343 = vld [vmem:[%s1038] sm:$0xf]
        %v1344 = vld [vmem:[%s1038 + $0x4] sm:$0xf]
        %v1345 = vld [vmem:[%s1038 + $0x8] sm:$0xf]
        %v1346 = vld [vmem:[%s1038 + $0xc] sm:$0xf]
        %v1347 = vld [vmem:[%s1038 + $0x10] sm:$0xf]
        %v1348 = vld [vmem:[%s1038 + $0x14] sm:$0xf]
        %v1349 = vld [vmem:[%s1038 + $0x18] sm:$0xf]
        %v1350 = vld [vmem:[%s1038 + $0x1c] sm:$0xf]
        %v1351 = vld [vmem:[%s1038 + $0x20] sm:$0xf]
        %v1352 = vld [vmem:[%s1038 + $0x24] sm:$0xf]
        %v1353 = vld [vmem:[%s1038 + $0x28] sm:$0xf]
        %v1354 = vld [vmem:[%s1038 + $0x2c] sm:$0xf]
        %v1355 = vld [vmem:[%s1038 + $0x30] sm:$0xf]
        %v1356 = vld [vmem:[%s1038 + $0x34] sm:$0xf]
        %v1357 = vld [vmem:[%s1038 + $0x38] sm:$0xf]
        %v1358 = vld [vmem:[%s1038 + $0x3c] sm:$0xf]
        %v1359 = vld [vmem:[%s1046] sm:$0x1]
        %v1361 = vlaneseq
        %v1362 = vshrl.u32 %v1361, 7
        %v1363 = vsub.s32 0, %v1362
        %v1364 = vrot.slane %v1359, %v1363
        %v1382 = vunpack.c.l.b16 %v1343
        %v1383 = vunpack.c.l.b16 %v1344
        %v1384 = vunpack.c.l.b16 %v1345
        %v1385 = vunpack.c.l.b16 %v1346
        %v1386 = vunpack.c.l.b16 %v1347
        %v1387 = vunpack.c.l.b16 %v1348
        %v1388 = vunpack.c.l.b16 %v1349
        %v1389 = vunpack.c.l.b16 %v1350
        %v1390 = vunpack.c.l.b16 %v1351
        %v1391 = vunpack.c.l.b16 %v1352
        %v1392 = vunpack.c.l.b16 %v1353
        %v1393 = vunpack.c.l.b16 %v1354
        %v1394 = vunpack.c.l.b16 %v1355
        %v1395 = vunpack.c.l.b16 %v1356
        %v1396 = vunpack.c.l.b16 %v1357
        %v1397 = vunpack.c.l.b16 %v1358
        %v1398 = vpack.c.b16 %v1383, %v1382
        %v1399 = vpack.c.b16 %v1385, %v1384
        %v1400 = vpack.c.b16 %v1387, %v1386
        %v1401 = vpack.c.b16 %v1389, %v1388
        %v1402 = vpack.c.b16 %v1391, %v1390
        %v1403 = vpack.c.b16 %v1393, %v1392
        %v1404 = vpack.c.b16 %v1395, %v1394
        %v1405 = vpack.c.b16 %v1397, %v1396
        %1414 = vmatprep.subr.bf16.mxu0 0
        %1415 = vmatpush1.bf16.msra.mxu0 %v1398
        %1416 = vmatprep.subr.bf16.mxu0 0
        %1417 = vmatpush1.bf16.msra.mxu0 %v1399
        %1418 = vmatprep.subr.bf16.mxu0 0
        %1419 = vmatpush1.bf16.msra.mxu0 %v1400
        %1420 = vmatprep.subr.bf16.mxu0 0
        %1421 = vmatpush1.bf16.msra.mxu0 %v1401
        %1422 = vmatprep.subr.bf16.mxu0 0
        %1423 = vmatpush1.bf16.msra.mxu0 %v1402
        %1424 = vmatprep.subr.bf16.mxu0 0
        %1425 = vmatpush1.bf16.msra.mxu0 %v1403
        %1426 = vmatprep.subr.bf16.mxu0 0
        %1427 = vmatpush1.bf16.msra.mxu0 %v1404
        %1428 = vmatprep.subr.bf16.mxu0 0
        %1429 = vmatpush1.bf16.msra.mxu0 %v1405
        %1430 = vmatprep.subr.bf16.mxu0 0
        %1431 = vmatpush1.bf16.msra.mxu0 0
        %1432 = vmatprep.subr.bf16.mxu0 0
        %1433 = vmatpush1.bf16.msra.mxu0 0
        %1434 = vmatprep.subr.bf16.mxu0 0
        %1435 = vmatpush1.bf16.msra.mxu0 0
        %1436 = vmatprep.subr.bf16.mxu0 0
        %1437 = vmatpush1.bf16.msra.mxu0 0
        %1438 = vmatprep.subr.bf16.mxu0 0
        %1439 = vmatpush1.bf16.msra.mxu0 0
        %1440 = vmatprep.subr.bf16.mxu0 0
        %1441 = vmatpush1.bf16.msra.mxu0 0
        %1442 = vmatprep.subr.bf16.mxu0 0
        %1443 = vmatpush1.bf16.msra.mxu0 0
        %1444 = vmatprep.subr.bf16.mxu0 0
        %1445 = vmatpush1.bf16.msra.mxu0 0
        %1446 = vmatprep.mubr.bf16.mxu0 0
        %1447 = vmatmul.mubr.bf16.gmra.mrb[0].mxu0 %v1342
        %v1448 = vpop.f32.mrb[0].mxu0
        %v1449 = vadd.f32 %v1364, %v1448
        %v1450 = vpop.f32.mrb[0].mxu0
        %v1451 = vpop.f32.mrb[0].mxu0
        %v1452 = vadd.f32 %v1364, %v1451
        %v1453 = vpop.f32.mrb[0].mxu0
        %1454 = vdwg.mxu0
        %v1455 = vld [vmem:[%s1055] sm:$0xf]
        %v1456 = vld [vmem:[%s1055 + $0x4] sm:$0xf]
        %v1457 = vld [vmem:[%s1055 + $0x8] sm:$0xf]
        %v1458 = vld [vmem:[%s1055 + $0xc] sm:$0xf]
        %v1459 = vld [vmem:[%s1055 + $0x10] sm:$0xf]
        %v1460 = vld [vmem:[%s1055 + $0x14] sm:$0xf]
        %v1461 = vld [vmem:[%s1055 + $0x18] sm:$0xf]
        %v1462 = vld [vmem:[%s1055 + $0x1c] sm:$0xf]
        %v1463 = vld [vmem:[%s1055 + $0x20] sm:$0xf]
        %v1464 = vld [vmem:[%s1055 + $0x24] sm:$0xf]
        %v1465 = vld [vmem:[%s1055 + $0x28] sm:$0xf]
        %v1466 = vld [vmem:[%s1055 + $0x2c] sm:$0xf]
        %v1467 = vld [vmem:[%s1055 + $0x30] sm:$0xf]
        %v1468 = vld [vmem:[%s1055 + $0x34] sm:$0xf]
        %v1469 = vld [vmem:[%s1055 + $0x38] sm:$0xf]
        %v1470 = vld [vmem:[%s1055 + $0x3c] sm:$0xf]
        %v1471 = vld [vmem:[%s1063] sm:$0x1]
        %v1473 = vlaneseq
        %v1474 = vshrl.u32 %v1473, 7
        %v1475 = vsub.s32 0, %v1474
        %v1476 = vrot.slane %v1471, %v1475
        %v1494 = vunpack.c.l.b16 %v1455
        %v1495 = vunpack.c.l.b16 %v1456
        %v1496 = vunpack.c.l.b16 %v1457
        %v1497 = vunpack.c.l.b16 %v1458
        %v1498 = vunpack.c.l.b16 %v1459
        %v1499 = vunpack.c.l.b16 %v1460
        %v1500 = vunpack.c.l.b16 %v1461
        %v1501 = vunpack.c.l.b16 %v1462
        %v1502 = vunpack.c.l.b16 %v1463
        %v1503 = vunpack.c.l.b16 %v1464
        %v1504 = vunpack.c.l.b16 %v1465
        %v1505 = vunpack.c.l.b16 %v1466
        %v1506 = vunpack.c.l.b16 %v1467
        %v1507 = vunpack.c.l.b16 %v1468
        %v1508 = vunpack.c.l.b16 %v1469
        %v1509 = vunpack.c.l.b16 %v1470
        %v1510 = vpack.c.b16 %v1495, %v1494
        %v1511 = vpack.c.b16 %v1497, %v1496
        %v1512 = vpack.c.b16 %v1499, %v1498
        %v1513 = vpack.c.b16 %v1501, %v1500
        %v1514 = vpack.c.b16 %v1503, %v1502
        %v1515 = vpack.c.b16 %v1505, %v1504
        %v1516 = vpack.c.b16 %v1507, %v1506
        %v1517 = vpack.c.b16 %v1509, %v1508
        %1526 = vmatprep.subr.bf16.mxu0 0
        %1527 = vmatpush1.bf16.msra.mxu0 %v1510
        %1528 = vmatprep.subr.bf16.mxu0 0
        %1529 = vmatpush1.bf16.msra.mxu0 %v1511
        %1530 = vmatprep.subr.bf16.mxu0 0
        %1531 = vmatpush1.bf16.msra.mxu0 %v1512
        %1532 = vmatprep.subr.bf16.mxu0 0
        %1533 = vmatpush1.bf16.msra.mxu0 %v1513
        %1534 = vmatprep.subr.bf16.mxu0 0
        %1535 = vmatpush1.bf16.msra.mxu0 %v1514
        %1536 = vmatprep.subr.bf16.mxu0 0
        %1537 = vmatpush1.bf16.msra.mxu0 %v1515
        %1538 = vmatprep.subr.bf16.mxu0 0
        %1539 = vmatpush1.bf16.msra.mxu0 %v1516
        %1540 = vmatprep.subr.bf16.mxu0 0
        %1541 = vmatpush1.bf16.msra.mxu0 %v1517
        %1542 = vmatprep.subr.bf16.mxu0 0
        %1543 = vmatpush1.bf16.msra.mxu0 0
        %1544 = vmatprep.subr.bf16.mxu0 0
        %1545 = vmatpush1.bf16.msra.mxu0 0
        %1546 = vmatprep.subr.bf16.mxu0 0
        %1547 = vmatpush1.bf16.msra.mxu0 0
        %1548 = vmatprep.subr.bf16.mxu0 0
        %1549 = vmatpush1.bf16.msra.mxu0 0
        %1550 = vmatprep.subr.bf16.mxu0 0
        %1551 = vmatpush1.bf16.msra.mxu0 0
        %1552 = vmatprep.subr.bf16.mxu0 0
        %1553 = vmatpush1.bf16.msra.mxu0 0
        %1554 = vmatprep.subr.bf16.mxu0 0
        %1555 = vmatpush1.bf16.msra.mxu0 0
        %1556 = vmatprep.subr.bf16.mxu0 0
        %1557 = vmatpush1.bf16.msra.mxu0 0
        %1558 = vmatprep.mubr.bf16.mxu0 0
        %1559 = vmatmul.mubr.bf16.gmra.mrb[0].mxu0 %v1342
        %v1560 = vpop.f32.mrb[0].mxu0
        %v1561 = vadd.f32 %v1476, %v1560
        %v1562 = vpop.f32.mrb[0].mxu0
        %v1563 = vpop.f32.mrb[0].mxu0
        %v1564 = vadd.f32 %v1476, %v1563
        %v1565 = vpop.f32.mrb[0].mxu0
        %1566 = vdwg.mxu0
        %v1567 = vld [vmem:[%s1072] sm:$0xf]
        %v1568 = vld [vmem:[%s1072 + $0x4] sm:$0xf]
        %v1569 = vld [vmem:[%s1072 + $0x8] sm:$0xf]
        %v1570 = vld [vmem:[%s1072 + $0xc] sm:$0xf]
        %v1571 = vld [vmem:[%s1072 + $0x10] sm:$0xf]
        %v1572 = vld [vmem:[%s1072 + $0x14] sm:$0xf]
        %v1573 = vld [vmem:[%s1072 + $0x18] sm:$0xf]
        %v1574 = vld [vmem:[%s1072 + $0x1c] sm:$0xf]
        %v1575 = vld [vmem:[%s1072 + $0x20] sm:$0xf]
        %v1576 = vld [vmem:[%s1072 + $0x24] sm:$0xf]
        %v1577 = vld [vmem:[%s1072 + $0x28] sm:$0xf]
        %v1578 = vld [vmem:[%s1072 + $0x2c] sm:$0xf]
        %v1579 = vld [vmem:[%s1072 + $0x30] sm:$0xf]
        %v1580 = vld [vmem:[%s1072 + $0x34] sm:$0xf]
        %v1581 = vld [vmem:[%s1072 + $0x38] sm:$0xf]
        %v1582 = vld [vmem:[%s1072 + $0x3c] sm:$0xf]
        %v1583 = vld [vmem:[%s1080] sm:$0x1]
        %v1585 = vlaneseq
        %v1586 = vshrl.u32 %v1585, 7
        %v1587 = vsub.s32 0, %v1586
        %v1588 = vrot.slane %v1583, %v1587
        %v1606 = vunpack.c.l.b16 %v1567
        %v1607 = vunpack.c.l.b16 %v1568
        %v1608 = vunpack.c.l.b16 %v1569
        %v1609 = vunpack.c.l.b16 %v1570
        %v1610 = vunpack.c.l.b16 %v1571
        %v1611 = vunpack.c.l.b16 %v1572
        %v1612 = vunpack.c.l.b16 %v1573
        %v1613 = vunpack.c.l.b16 %v1574
        %v1614 = vunpack.c.l.b16 %v1575
        %v1615 = vunpack.c.l.b16 %v1576
        %v1616 = vunpack.c.l.b16 %v1577
        %v1617 = vunpack.c.l.b16 %v1578
        %v1618 = vunpack.c.l.b16 %v1579
        %v1619 = vunpack.c.l.b16 %v1580
        %v1620 = vunpack.c.l.b16 %v1581
        %v1621 = vunpack.c.l.b16 %v1582
        %v1622 = vpack.c.b16 %v1607, %v1606
        %v1623 = vpack.c.b16 %v1609, %v1608
        %v1624 = vpack.c.b16 %v1611, %v1610
        %v1625 = vpack.c.b16 %v1613, %v1612
        %v1626 = vpack.c.b16 %v1615, %v1614
        %v1627 = vpack.c.b16 %v1617, %v1616
        %v1628 = vpack.c.b16 %v1619, %v1618
        %v1629 = vpack.c.b16 %v1621, %v1620
        %1638 = vmatprep.subr.bf16.mxu0 0
        %1639 = vmatpush1.bf16.msra.mxu0 %v1622
        %1640 = vmatprep.subr.bf16.mxu0 0
        %1641 = vmatpush1.bf16.msra.mxu0 %v1623
        %1642 = vmatprep.subr.bf16.mxu0 0
        %1643 = vmatpush1.bf16.msra.mxu0 %v1624
        %1644 = vmatprep.subr.bf16.mxu0 0
        %1645 = vmatpush1.bf16.msra.mxu0 %v1625
        %1646 = vmatprep.subr.bf16.mxu0 0
        %1647 = vmatpush1.bf16.msra.mxu0 %v1626
        %1648 = vmatprep.subr.bf16.mxu0 0
        %1649 = vmatpush1.bf16.msra.mxu0 %v1627
        %1650 = vmatprep.subr.bf16.mxu0 0
        %1651 = vmatpush1.bf16.msra.mxu0 %v1628
        %1652 = vmatprep.subr.bf16.mxu0 0
        %1653 = vmatpush1.bf16.msra.mxu0 %v1629
        %1654 = vmatprep.subr.bf16.mxu0 0
        %1655 = vmatpush1.bf16.msra.mxu0 0
        %1656 = vmatprep.subr.bf16.mxu0 0
        %1657 = vmatpush1.bf16.msra.mxu0 0
        %1658 = vmatprep.subr.bf16.mxu0 0
        %1659 = vmatpush1.bf16.msra.mxu0 0
        %1660 = vmatprep.subr.bf16.mxu0 0
        %1661 = vmatpush1.bf16.msra.mxu0 0
        %1662 = vmatprep.subr.bf16.mxu0 0
        %1663 = vmatpush1.bf16.msra.mxu0 0
        %1664 = vmatprep.subr.bf16.mxu0 0
        %1665 = vmatpush1.bf16.msra.mxu0 0
        %1666 = vmatprep.subr.bf16.mxu0 0
        %1667 = vmatpush1.bf16.msra.mxu0 0
        %1668 = vmatprep.subr.bf16.mxu0 0
        %1669 = vmatpush1.bf16.msra.mxu0 0
        %1670 = vmatprep.mubr.bf16.mxu0 0
        %1671 = vmatmul.mubr.bf16.gmra.mrb[0].mxu0 %v1342
        %v1672 = vpop.f32.mrb[0].mxu0
        %v1673 = vadd.f32 %v1588, %v1672
        %v1674 = vpop.f32.mrb[0].mxu0
        %v1675 = vpop.f32.mrb[0].mxu0
        %v1676 = vadd.f32 %v1588, %v1675
        %v1677 = vpop.f32.mrb[0].mxu0
        %1678 = vdwg.mxu0
        %v1679 = vld [vmem:[%s1] sm:$0x3]
        %v1682 = vunpack.c.l.s4 1966171168
        %v1683 = vunpack.c.0.s8 %v1682
        %v1684 = vlaneseq
        %v1685 = vshrl.u32 %v1684, 7
        %v1686 = vsub.s32 %v1683, %v1685
        %v1687 = vrot.slane %v1679, %v1686
        %v1688 = vcombine.high %v1687, %v1687
        %v1690 = vunpack.c.l.s4 1966171168
        %v1691 = vunpack.c.0.s8 %v1690
        %v1692 = vlaneseq
        %v1693 = vshrl.u32 %v1692, 7
        %v1694 = vsub.s32 %v1691, %v1693
        %v1695 = vrot.slane %v1687, %v1694
        %v1697 = vunpack.c.l.s4 1966171168
        %v1698 = vunpack.c.0.s8 %v1697
        %v1699 = vlaneseq
        %v1700 = vshrl.u32 %v1699, 7
        %v1701 = vsub.s32 %v1698, %v1700
        %v1702 = vrot.slane %v1688, %v1701
        %v1703 = vpack.c.bf16 %v1449, %v1449
        %v1704 = vpack.c.bf16 %v1452, %v1452
        %v1705 = vpack.c.bf16 %v1561, %v1561
        %v1706 = vpack.c.bf16 %v1564, %v1564
        %v1707 = vpack.c.bf16 %v1673, %v1673
        %v1708 = vpack.c.bf16 %v1676, %v1676
        %vm1709 = vcmask 261120
        %v1711 = vsel %vm1709, %v1703, 0
        %v1714 = vsel %vm1709, %v1705, 0
        %1716 = vmatprep.subr.bf16.mxu0 0
        %1717 = vmatpush1.bf16.xpose.msra.mxu0 %v1714
        %1718 = vmatprep.subr.bf16.mxu0 0
        %1719 = vmatpush1.bf16.xpose.msra.mxu0 0
        %1720 = vmatprep.subr.bf16.mxu0 0
        %1721 = vmatpush1.bf16.xpose.msra.mxu0 0
        %1722 = vmatprep.subr.bf16.mxu0 0
        %1723 = vmatpush1.bf16.xpose.msra.mxu0 0
        %1724 = vmatprep.subr.bf16.mxu0 0
        %1725 = vmatpush1.bf16.xpose.msra.mxu0 0
        %1726 = vmatprep.subr.bf16.mxu0 0
        %1727 = vmatpush1.bf16.xpose.msra.mxu0 0
        %1728 = vmatprep.subr.bf16.mxu0 0
        %1729 = vmatpush1.bf16.xpose.msra.mxu0 0
        %1730 = vmatprep.subr.bf16.mxu0 0
        %1731 = vmatpush1.bf16.xpose.msra.mxu0 0
        %1732 = vmatprep.subr.bf16.mxu0 0
        %1733 = vmatpush1.bf16.xpose.msra.mxu0 0
        %1734 = vmatprep.subr.bf16.mxu0 0
        %1735 = vmatpush1.bf16.xpose.msra.mxu0 0
        %1736 = vmatprep.subr.bf16.mxu0 0
        %1737 = vmatpush1.bf16.xpose.msra.mxu0 0
        %1738 = vmatprep.subr.bf16.mxu0 0
        %1739 = vmatpush1.bf16.xpose.msra.mxu0 0
        %1740 = vmatprep.subr.bf16.mxu0 0
        %1741 = vmatpush1.bf16.xpose.msra.mxu0 0
        %1742 = vmatprep.subr.bf16.mxu0 0
        %1743 = vmatpush1.bf16.xpose.msra.mxu0 0
        %1744 = vmatprep.subr.bf16.mxu0 0
        %1745 = vmatpush1.bf16.xpose.msra.mxu0 0
        %1746 = vmatprep.subr.bf16.mxu0 0
        %1747 = vmatpush1.bf16.xpose.msra.mxu0 0
        %1748 = vmatprep.mubr.bf16.mxu0 0
        %1749 = vmatmul.mubr.bf16.gmra.mrb[0].mxu0 %v1711
        %v1750 = vpop.f32.mrb[0].mxu0
        %v1751 = vadd.f32 0.0, %v1750
        %v1752 = vpop.f32.mrb[0].mxu0
        %v1753 = vpop.f32.mrb[0].mxu0
        %v1754 = vpop.f32.mrb[0].mxu0
        %1755 = vdwg.mxu0
        %v1757 = vsel %vm1709, %v1704, 0
        %v1760 = vsel %vm1709, %v1706, 0
        %1762 = vmatprep.subr.bf16.mxu0 0
        %1763 = vmatpush1.bf16.xpose.msra.mxu0 %v1760
        %1764 = vmatprep.subr.bf16.mxu0 0
        %1765 = vmatpush1.bf16.xpose.msra.mxu0 0
        %1766 = vmatprep.subr.bf16.mxu0 0
        %1767 = vmatpush1.bf16.xpose.msra.mxu0 0
        %1768 = vmatprep.subr.bf16.mxu0 0
        %1769 = vmatpush1.bf16.xpose.msra.mxu0 0
        %1770 = vmatprep.subr.bf16.mxu0 0
        %1771 = vmatpush1.bf16.xpose.msra.mxu0 0
        %1772 = vmatprep.subr.bf16.mxu0 0
        %1773 = vmatpush1.bf16.xpose.msra.mxu0 0
        %1774 = vmatprep.subr.bf16.mxu0 0
        %1775 = vmatpush1.bf16.xpose.msra.mxu0 0
        %1776 = vmatprep.subr.bf16.mxu0 0
        %1777 = vmatpush1.bf16.xpose.msra.mxu0 0
        %1778 = vmatprep.subr.bf16.mxu0 0
        %1779 = vmatpush1.bf16.xpose.msra.mxu0 0
        %1780 = vmatprep.subr.bf16.mxu0 0
        %1781 = vmatpush1.bf16.xpose.msra.mxu0 0
        %1782 = vmatprep.subr.bf16.mxu0 0
        %1783 = vmatpush1.bf16.xpose.msra.mxu0 0
        %1784 = vmatprep.subr.bf16.mxu0 0
        %1785 = vmatpush1.bf16.xpose.msra.mxu0 0
        %1786 = vmatprep.subr.bf16.mxu0 0
        %1787 = vmatpush1.bf16.xpose.msra.mxu0 0
        %1788 = vmatprep.subr.bf16.mxu0 0
        %1789 = vmatpush1.bf16.xpose.msra.mxu0 0
        %1790 = vmatprep.subr.bf16.mxu0 0
        %1791 = vmatpush1.bf16.xpose.msra.mxu0 0
        %1792 = vmatprep.subr.bf16.mxu0 0
        %1793 = vmatpush1.bf16.xpose.msra.mxu0 0
        %1794 = vmatprep.mubr.bf16.mxu0 0
        %1795 = vmatmul.mubr.bf16.gmra.mrb[0].mxu0 %v1757
        %v1796 = vpop.f32.mrb[0].mxu0
        %v1797 = vadd.f32 0.0, %v1796
        %v1798 = vpop.f32.mrb[0].mxu0
        %v1799 = vpop.f32.mrb[0].mxu0
        %v1800 = vpop.f32.mrb[0].mxu0
        %1801 = vdwg.mxu0
        %v1802 = vmul.f32 %v1751, 0.17677669
        %v1803 = vmul.f32 %v1797, 0.17677669
        %v1804 = vlaneseq
        %v1805 = vshrl.u32 %v1804, 7
        %v1806 = vsub.s32 0, %v1805
        %v1807 = vrot.slane %v1695, %v1806
        %v1808 = vlaneseq
        %v1809 = vshrl.u32 %v1808, 7
        %v1810 = vsub.s32 0, %v1809
        %v1811 = vrot.slane %v1702, %v1810
        %v1814 = vadd.f32 %v1802, %v1807
        %v1815 = vadd.f32 %v1803, %v1811
        %vm1816 = vcmask 64512
        %v1817 = vsel %vm1816, %v1814, -inf
        %1818 = vmax.xlane.f32.xlu0 %v1817
        %v1819 = vpop.xlane.xlu0 %1818
        %v1820 = vsel %vm1816, %v1815, -inf
        %1821 = vmax.xlane.f32.xlu0 %v1820
        %v1822 = vpop.xlane.xlu0 %1821
        %v1823 = vsub.f32 %v1814, %v1819
        %v1824 = vsub.f32 %v1815, %v1822
        %v1825 = vmul.f32 %v1823, 1.442695
        %v1826 = vpow.pop %v1825
        %v1827 = vmul.f32 %v1824, 1.442695
        %v1828 = vpow.pop %v1827
        %v1829 = vsel %vm1816, %v1826, 0.0
        %1830 = vadd.xlane.f32.xlu0 %v1829
        %v1831 = vpop.xlane.xlu0 %1830
        %v1832 = vsel %vm1816, %v1828, 0.0
        %1833 = vadd.xlane.f32.xlu0 %v1832
        %v1834 = vpop.xlane.xlu0 %1833
        %v1835 = vrcp.pop %v1831
        %v1836 = vrcp.pop %v1834
        %v1837 = vmul.f32 %v1826, %v1835
        %v1838 = vmul.f32 %v1828, %v1836
        %v1839 = vpack.c.bf16 %v1837, %v1837
        %v1840 = vpack.c.bf16 %v1838, %v1838
        %v1842 = vsel %vm1816, %v1839, 0
        %vm1844 = vcmask 1043456
        %v1846 = vsel %vm1844, %v1707, 0
        %1848 = vmatprep.subr.bf16.mxu0 0
        %1849 = vmatpush1.bf16.msra.mxu0 %v1846
        %1850 = vmatprep.subr.bf16.mxu0 0
        %1851 = vmatpush1.bf16.msra.mxu0 0
        %1852 = vmatprep.subr.bf16.mxu0 0
        %1853 = vmatpush1.bf16.msra.mxu0 0
        %1854 = vmatprep.subr.bf16.mxu0 0
        %1855 = vmatpush1.bf16.msra.mxu0 0
        %1856 = vmatprep.subr.bf16.mxu0 0
        %1857 = vmatpush1.bf16.msra.mxu0 0
        %1858 = vmatprep.subr.bf16.mxu0 0
        %1859 = vmatpush1.bf16.msra.mxu0 0
        %1860 = vmatprep.subr.bf16.mxu0 0
        %1861 = vmatpush1.bf16.msra.mxu0 0
        %1862 = vmatprep.subr.bf16.mxu0 0
        %1863 = vmatpush1.bf16.msra.mxu0 0
        %1864 = vmatprep.subr.bf16.mxu0 0
        %1865 = vmatpush1.bf16.msra.mxu0 0
        %1866 = vmatprep.subr.bf16.mxu0 0
        %1867 = vmatpush1.bf16.msra.mxu0 0
        %1868 = vmatprep.subr.bf16.mxu0 0
        %1869 = vmatpush1.bf16.msra.mxu0 0
        %1870 = vmatprep.subr.bf16.mxu0 0
        %1871 = vmatpush1.bf16.msra.mxu0 0
        %1872 = vmatprep.subr.bf16.mxu0 0
        %1873 = vmatpush1.bf16.msra.mxu0 0
        %1874 = vmatprep.subr.bf16.mxu0 0
        %1875 = vmatpush1.bf16.msra.mxu0 0
        %1876 = vmatprep.subr.bf16.mxu0 0
        %1877 = vmatpush1.bf16.msra.mxu0 0
        %1878 = vmatprep.subr.bf16.mxu0 0
        %1879 = vmatpush1.bf16.msra.mxu0 0
        %1880 = vmatprep.mubr.bf16.mxu0 0
        %1881 = vmatmul.mubr.bf16.gmra.mrb[0].mxu0 %v1842
        %v1882 = vpop.f32.mrb[0].mxu0
        %v1883 = vadd.f32 0.0, %v1882
        %v1884 = vpop.f32.mrb[0].mxu0
        %v1885 = vpop.f32.mrb[0].mxu0
        %v1886 = vpop.f32.mrb[0].mxu0
        %1887 = vdwg.mxu0
        %v1889 = vsel %vm1816, %v1840, 0
        %v1892 = vsel %vm1844, %v1708, 0
        %1894 = vmatprep.subr.bf16.mxu0 0
        %1895 = vmatpush1.bf16.msra.mxu0 %v1892
        %1896 = vmatprep.subr.bf16.mxu0 0
        %1897 = vmatpush1.bf16.msra.mxu0 0
        %1898 = vmatprep.subr.bf16.mxu0 0
        %1899 = vmatpush1.bf16.msra.mxu0 0
        %1900 = vmatprep.subr.bf16.mxu0 0
        %1901 = vmatpush1.bf16.msra.mxu0 0
        %1902 = vmatprep.subr.bf16.mxu0 0
        %1903 = vmatpush1.bf16.msra.mxu0 0
        %1904 = vmatprep.subr.bf16.mxu0 0
        %1905 = vmatpush1.bf16.msra.mxu0 0
        %1906 = vmatprep.subr.bf16.mxu0 0
        %1907 = vmatpush1.bf16.msra.mxu0 0
        %1908 = vmatprep.subr.bf16.mxu0 0
        %1909 = vmatpush1.bf16.msra.mxu0 0
        %1910 = vmatprep.subr.bf16.mxu0 0
        %1911 = vmatpush1.bf16.msra.mxu0 0
        %1912 = vmatprep.subr.bf16.mxu0 0
        %1913 = vmatpush1.bf16.msra.mxu0 0
        %1914 = vmatprep.subr.bf16.mxu0 0
        %1915 = vmatpush1.bf16.msra.mxu0 0
        %1916 = vmatprep.subr.bf16.mxu0 0
        %1917 = vmatpush1.bf16.msra.mxu0 0
        %1918 = vmatprep.subr.bf16.mxu0 0
        %1919 = vmatpush1.bf16.msra.mxu0 0
        %1920 = vmatprep.subr.bf16.mxu0 0
        %1921 = vmatpush1.bf16.msra.mxu0 0
        %1922 = vmatprep.subr.bf16.mxu0 0
        %1923 = vmatpush1.bf16.msra.mxu0 0
        %1924 = vmatprep.subr.bf16.mxu0 0
        %1925 = vmatpush1.bf16.msra.mxu0 0
        %1926 = vmatprep.mubr.bf16.mxu0 0
        %1927 = vmatmul.mubr.bf16.gmra.mrb[0].mxu0 %v1889
        %v1928 = vpop.f32.mrb[0].mxu0
        %v1929 = vadd.f32 0.0, %v1928
        %v1930 = vpop.f32.mrb[0].mxu0
        %v1931 = vpop.f32.mrb[0].mxu0
        %v1932 = vpop.f32.mrb[0].mxu0
        %1933 = vdwg.mxu0
        %1935 = vrot.lane.b32.xlu0 %v1703, 96
        %v1936 = vpop.permute.xlu0 %1935
        %1938 = vrot.lane.b32.xlu0 %v1705, 96
        %v1939 = vpop.permute.xlu0 %1938
        %v1941 = vsel %vm1709, %v1936, 0
        %v1944 = vsel %vm1709, %v1939, 0
        %1946 = vmatprep.subr.bf16.mxu0 0
        %1947 = vmatpush1.bf16.xpose.msra.mxu0 %v1944
        %1948 = vmatprep.subr.bf16.mxu0 0
        %1949 = vmatpush1.bf16.xpose.msra.mxu0 0
        %1950 = vmatprep.subr.bf16.mxu0 0
        %1951 = vmatpush1.bf16.xpose.msra.mxu0 0
        %1952 = vmatprep.subr.bf16.mxu0 0
        %1953 = vmatpush1.bf16.xpose.msra.mxu0 0
        %1954 = vmatprep.subr.bf16.mxu0 0
        %1955 = vmatpush1.bf16.xpose.msra.mxu0 0
        %1956 = vmatprep.subr.bf16.mxu0 0
        %1957 = vmatpush1.bf16.xpose.msra.mxu0 0
        %1958 = vmatprep.subr.bf16.mxu0 0
        %1959 = vmatpush1.bf16.xpose.msra.mxu0 0
        %1960 = vmatprep.subr.bf16.mxu0 0
        %1961 = vmatpush1.bf16.xpose.msra.mxu0 0
        %1962 = vmatprep.subr.bf16.mxu0 0
        %1963 = vmatpush1.bf16.xpose.msra.mxu0 0
        %1964 = vmatprep.subr.bf16.mxu0 0
        %1965 = vmatpush1.bf16.xpose.msra.mxu0 0
        %1966 = vmatprep.subr.bf16.mxu0 0
        %1967 = vmatpush1.bf16.xpose.msra.mxu0 0
        %1968 = vmatprep.subr.bf16.mxu0 0
        %1969 = vmatpush1.bf16.xpose.msra.mxu0 0
        %1970 = vmatprep.subr.bf16.mxu0 0
        %1971 = vmatpush1.bf16.xpose.msra.mxu0 0
        %1972 = vmatprep.subr.bf16.mxu0 0
        %1973 = vmatpush1.bf16.xpose.msra.mxu0 0
        %1974 = vmatprep.subr.bf16.mxu0 0
        %1975 = vmatpush1.bf16.xpose.msra.mxu0 0
        %1976 = vmatprep.subr.bf16.mxu0 0
        %1977 = vmatpush1.bf16.xpose.msra.mxu0 0
        %1978 = vmatprep.mubr.bf16.mxu0 0
        %1979 = vmatmul.mubr.bf16.gmra.mrb[0].mxu0 %v1941
        %v1980 = vpop.f32.mrb[0].mxu0
        %v1981 = vadd.f32 0.0, %v1980
        %v1982 = vpop.f32.mrb[0].mxu0
        %v1983 = vpop.f32.mrb[0].mxu0
        %v1984 = vpop.f32.mrb[0].mxu0
        %1985 = vdwg.mxu0
        %1987 = vrot.lane.b32.xlu0 %v1704, 96
        %v1988 = vpop.permute.xlu0 %1987
        %1990 = vrot.lane.b32.xlu0 %v1706, 96
        %v1991 = vpop.permute.xlu0 %1990
        %v1993 = vsel %vm1709, %v1988, 0
        %v1996 = vsel %vm1709, %v1991, 0
        %1998 = vmatprep.subr.bf16.mxu0 0
        %1999 = vmatpush1.bf16.xpose.msra.mxu0 %v1996
        %2000 = vmatprep.subr.bf16.mxu0 0
        %2001 = vmatpush1.bf16.xpose.msra.mxu0 0
        %2002 = vmatprep.subr.bf16.mxu0 0
        %2003 = vmatpush1.bf16.xpose.msra.mxu0 0
        %2004 = vmatprep.subr.bf16.mxu0 0
        %2005 = vmatpush1.bf16.xpose.msra.mxu0 0
        %2006 = vmatprep.subr.bf16.mxu0 0
        %2007 = vmatpush1.bf16.xpose.msra.mxu0 0
        %2008 = vmatprep.subr.bf16.mxu0 0
        %2009 = vmatpush1.bf16.xpose.msra.mxu0 0
        %2010 = vmatprep.subr.bf16.mxu0 0
        %2011 = vmatpush1.bf16.xpose.msra.mxu0 0
        %2012 = vmatprep.subr.bf16.mxu0 0
        %2013 = vmatpush1.bf16.xpose.msra.mxu0 0
        %2014 = vmatprep.subr.bf16.mxu0 0
        %2015 = vmatpush1.bf16.xpose.msra.mxu0 0
        %2016 = vmatprep.subr.bf16.mxu0 0
        %2017 = vmatpush1.bf16.xpose.msra.mxu0 0
        %2018 = vmatprep.subr.bf16.mxu0 0
        %2019 = vmatpush1.bf16.xpose.msra.mxu0 0
        %2020 = vmatprep.subr.bf16.mxu0 0
        %2021 = vmatpush1.bf16.xpose.msra.mxu0 0
        %2022 = vmatprep.subr.bf16.mxu0 0
        %2023 = vmatpush1.bf16.xpose.msra.mxu0 0
        %2024 = vmatprep.subr.bf16.mxu0 0
        %2025 = vmatpush1.bf16.xpose.msra.mxu0 0
        %2026 = vmatprep.subr.bf16.mxu0 0
        %2027 = vmatpush1.bf16.xpose.msra.mxu0 0
        %2028 = vmatprep.subr.bf16.mxu0 0
        %2029 = vmatpush1.bf16.xpose.msra.mxu0 0
        %2030 = vmatprep.mubr.bf16.mxu0 0
        %2031 = vmatmul.mubr.bf16.gmra.mrb[0].mxu0 %v1993
        %v2032 = vpop.f32.mrb[0].mxu0
        %v2033 = vadd.f32 0.0, %v2032
        %v2034 = vpop.f32.mrb[0].mxu0
        %v2035 = vpop.f32.mrb[0].mxu0
        %v2036 = vpop.f32.mrb[0].mxu0
        %2037 = vdwg.mxu0
        %v2038 = vmul.f32 %v1981, 0.17677669
        %v2039 = vmul.f32 %v2033, 0.17677669
        %v2040 = vadd.f32 %v2038, %v1807
        %v2041 = vadd.f32 %v2039, %v1811
        %v2042 = vsel %vm1816, %v2040, -inf
        %2043 = vmax.xlane.f32.xlu0 %v2042
        %v2044 = vpop.xlane.xlu0 %2043
        %v2045 = vsel %vm1816, %v2041, -inf
        %2046 = vmax.xlane.f32.xlu0 %v2045
        %v2047 = vpop.xlane.xlu0 %2046
        %v2048 = vsub.f32 %v2040, %v2044
        %v2049 = vsub.f32 %v2041, %v2047
        %v2050 = vmul.f32 %v2048, 1.442695
        %v2051 = vpow.pop %v2050
        %v2052 = vmul.f32 %v2049, 1.442695
        %v2053 = vpow.pop %v2052
        %v2054 = vsel %vm1816, %v2051, 0.0
        %2055 = vadd.xlane.f32.xlu0 %v2054
        %v2056 = vpop.xlane.xlu0 %2055
        %v2057 = vsel %vm1816, %v2053, 0.0
        %2058 = vadd.xlane.f32.xlu0 %v2057
        %v2059 = vpop.xlane.xlu0 %2058
        %v2060 = vrcp.pop %v2056
        %v2061 = vrcp.pop %v2059
        %v2062 = vmul.f32 %v2051, %v2060
        %v2063 = vmul.f32 %v2053, %v2061
        %v2064 = vpack.c.bf16 %v2062, %v2062
        %v2065 = vpack.c.bf16 %v2063, %v2063
        %2067 = vrot.lane.b32.xlu0 %v1707, 96
        %v2068 = vpop.permute.xlu0 %2067
        %v2070 = vsel %vm1816, %v2064, 0
        %v2073 = vsel %vm1844, %v2068, 0
        %2075 = vmatprep.subr.bf16.mxu0 0
        %2076 = vmatpush1.bf16.msra.mxu0 %v2073
        %2077 = vmatprep.subr.bf16.mxu0 0
        %2078 = vmatpush1.bf16.msra.mxu0 0
        %2079 = vmatprep.subr.bf16.mxu0 0
        %2080 = vmatpush1.bf16.msra.mxu0 0
        %2081 = vmatprep.subr.bf16.mxu0 0
        %2082 = vmatpush1.bf16.msra.mxu0 0
        %2083 = vmatprep.subr.bf16.mxu0 0
        %2084 = vmatpush1.bf16.msra.mxu0 0
        %2085 = vmatprep.subr.bf16.mxu0 0
        %2086 = vmatpush1.bf16.msra.mxu0 0
        %2087 = vmatprep.subr.bf16.mxu0 0
        %2088 = vmatpush1.bf16.msra.mxu0 0
        %2089 = vmatprep.subr.bf16.mxu0 0
        %2090 = vmatpush1.bf16.msra.mxu0 0
        %2091 = vmatprep.subr.bf16.mxu0 0
        %2092 = vmatpush1.bf16.msra.mxu0 0
        %2093 = vmatprep.subr.bf16.mxu0 0
        %2094 = vmatpush1.bf16.msra.mxu0 0
        %2095 = vmatprep.subr.bf16.mxu0 0
        %2096 = vmatpush1.bf16.msra.mxu0 0
        %2097 = vmatprep.subr.bf16.mxu0 0
        %2098 = vmatpush1.bf16.msra.mxu0 0
        %2099 = vmatprep.subr.bf16.mxu0 0
        %2100 = vmatpush1.bf16.msra.mxu0 0
        %2101 = vmatprep.subr.bf16.mxu0 0
        %2102 = vmatpush1.bf16.msra.mxu0 0
        %2103 = vmatprep.subr.bf16.mxu0 0
        %2104 = vmatpush1.bf16.msra.mxu0 0
        %2105 = vmatprep.subr.bf16.mxu0 0
        %2106 = vmatpush1.bf16.msra.mxu0 0
        %2107 = vmatprep.mubr.bf16.mxu0 0
        %2108 = vmatmul.mubr.bf16.gmra.mrb[0].mxu0 %v2070
        %v2109 = vpop.f32.mrb[0].mxu0
        %v2110 = vadd.f32 0.0, %v2109
        %v2111 = vpop.f32.mrb[0].mxu0
        %v2112 = vpop.f32.mrb[0].mxu0
        %v2113 = vpop.f32.mrb[0].mxu0
        %2114 = vdwg.mxu0
        %2116 = vrot.lane.b32.xlu0 %v1708, 96
        %v2117 = vpop.permute.xlu0 %2116
        %v2119 = vsel %vm1816, %v2065, 0
        %v2122 = vsel %vm1844, %v2117, 0
        %2124 = vmatprep.subr.bf16.mxu0 0
        %2125 = vmatpush1.bf16.msra.mxu0 %v2122
        %2126 = vmatprep.subr.bf16.mxu0 0
        %2127 = vmatpush1.bf16.msra.mxu0 0
        %2128 = vmatprep.subr.bf16.mxu0 0
        %2129 = vmatpush1.bf16.msra.mxu0 0
        %2130 = vmatprep.subr.bf16.mxu0 0
        %2131 = vmatpush1.bf16.msra.mxu0 0
        %2132 = vmatprep.subr.bf16.mxu0 0
        %2133 = vmatpush1.bf16.msra.mxu0 0
        %2134 = vmatprep.subr.bf16.mxu0 0
        %2135 = vmatpush1.bf16.msra.mxu0 0
        %2136 = vmatprep.subr.bf16.mxu0 0
        %2137 = vmatpush1.bf16.msra.mxu0 0
        %2138 = vmatprep.subr.bf16.mxu0 0
        %2139 = vmatpush1.bf16.msra.mxu0 0
        %2140 = vmatprep.subr.bf16.mxu0 0
        %2141 = vmatpush1.bf16.msra.mxu0 0
        %2142 = vmatprep.subr.bf16.mxu0 0
        %2143 = vmatpush1.bf16.msra.mxu0 0
        %2144 = vmatprep.subr.bf16.mxu0 0
        %2145 = vmatpush1.bf16.msra.mxu0 0
        %2146 = vmatprep.subr.bf16.mxu0 0
        %2147 = vmatpush1.bf16.msra.mxu0 0
        %2148 = vmatprep.subr.bf16.mxu0 0
        %2149 = vmatpush1.bf16.msra.mxu0 0
        %2150 = vmatprep.subr.bf16.mxu0 0
        %2151 = vmatpush1.bf16.msra.mxu0 0
        %2152 = vmatprep.subr.bf16.mxu0 0
        %2153 = vmatpush1.bf16.msra.mxu0 0
        %2154 = vmatprep.subr.bf16.mxu0 0
        %2155 = vmatpush1.bf16.msra.mxu0 0
        %2156 = vmatprep.mubr.bf16.mxu0 0
        %2157 = vmatmul.mubr.bf16.gmra.mrb[0].mxu0 %v2119
        %v2158 = vpop.f32.mrb[0].mxu0
        %v2159 = vadd.f32 0.0, %v2158
        %v2160 = vpop.f32.mrb[0].mxu0
        %v2161 = vpop.f32.mrb[0].mxu0
        %v2162 = vpop.f32.mrb[0].mxu0
        %2163 = vdwg.mxu0
        %2164 = vrot.lane.b32.xlu0 %v1703, 64
        %v2165 = vpop.permute.xlu0 %2164
        %2166 = vrot.lane.b32.xlu0 %v1705, 64
        %v2167 = vpop.permute.xlu0 %2166
        %v2169 = vsel %vm1709, %v2165, 0
        %v2172 = vsel %vm1709, %v2167, 0
        %2174 = vmatprep.subr.bf16.mxu0 0
        %2175 = vmatpush1.bf16.xpose.msra.mxu0 %v2172
        %2176 = vmatprep.subr.bf16.mxu0 0
        %2177 = vmatpush1.bf16.xpose.msra.mxu0 0
        %2178 = vmatprep.subr.bf16.mxu0 0
        %2179 = vmatpush1.bf16.xpose.msra.mxu0 0
        %2180 = vmatprep.subr.bf16.mxu0 0
        %2181 = vmatpush1.bf16.xpose.msra.mxu0 0
        %2182 = vmatprep.subr.bf16.mxu0 0
        %2183 = vmatpush1.bf16.xpose.msra.mxu0 0
        %2184 = vmatprep.subr.bf16.mxu0 0
        %2185 = vmatpush1.bf16.xpose.msra.mxu0 0
        %2186 = vmatprep.subr.bf16.mxu0 0
        %2187 = vmatpush1.bf16.xpose.msra.mxu0 0
        %2188 = vmatprep.subr.bf16.mxu0 0
        %2189 = vmatpush1.bf16.xpose.msra.mxu0 0
        %2190 = vmatprep.subr.bf16.mxu0 0
        %2191 = vmatpush1.bf16.xpose.msra.mxu0 0
        %2192 = vmatprep.subr.bf16.mxu0 0
        %2193 = vmatpush1.bf16.xpose.msra.mxu0 0
        %2194 = vmatprep.subr.bf16.mxu0 0
        %2195 = vmatpush1.bf16.xpose.msra.mxu0 0
        %2196 = vmatprep.subr.bf16.mxu0 0
        %2197 = vmatpush1.bf16.xpose.msra.mxu0 0
        %2198 = vmatprep.subr.bf16.mxu0 0
        %2199 = vmatpush1.bf16.xpose.msra.mxu0 0
        %2200 = vmatprep.subr.bf16.mxu0 0
        %2201 = vmatpush1.bf16.xpose.msra.mxu0 0
        %2202 = vmatprep.subr.bf16.mxu0 0
        %2203 = vmatpush1.bf16.xpose.msra.mxu0 0
        %2204 = vmatprep.subr.bf16.mxu0 0
        %2205 = vmatpush1.bf16.xpose.msra.mxu0 0
        %2206 = vmatprep.mubr.bf16.mxu0 0
        %2207 = vmatmul.mubr.bf16.gmra.mrb[0].mxu0 %v2169
        %v2208 = vpop.f32.mrb[0].mxu0
        %v2209 = vadd.f32 0.0, %v2208
        %v2210 = vpop.f32.mrb[0].mxu0
        %v2211 = vpop.f32.mrb[0].mxu0
        %v2212 = vpop.f32.mrb[0].mxu0
        %2213 = vdwg.mxu0
        %2214 = vrot.lane.b32.xlu0 %v1704, 64
        %v2215 = vpop.permute.xlu0 %2214
        %2216 = vrot.lane.b32.xlu0 %v1706, 64
        %v2217 = vpop.permute.xlu0 %2216
        %v2219 = vsel %vm1709, %v2215, 0
        %v2222 = vsel %vm1709, %v2217, 0
        %2224 = vmatprep.subr.bf16.mxu0 0
        %2225 = vmatpush1.bf16.xpose.msra.mxu0 %v2222
        %2226 = vmatprep.subr.bf16.mxu0 0
        %2227 = vmatpush1.bf16.xpose.msra.mxu0 0
        %2228 = vmatprep.subr.bf16.mxu0 0
        %2229 = vmatpush1.bf16.xpose.msra.mxu0 0
        %2230 = vmatprep.subr.bf16.mxu0 0
        %2231 = vmatpush1.bf16.xpose.msra.mxu0 0
        %2232 = vmatprep.subr.bf16.mxu0 0
        %2233 = vmatpush1.bf16.xpose.msra.mxu0 0
        %2234 = vmatprep.subr.bf16.mxu0 0
        %2235 = vmatpush1.bf16.xpose.msra.mxu0 0
        %2236 = vmatprep.subr.bf16.mxu0 0
        %2237 = vmatpush1.bf16.xpose.msra.mxu0 0
        %2238 = vmatprep.subr.bf16.mxu0 0
        %2239 = vmatpush1.bf16.xpose.msra.mxu0 0
        %2240 = vmatprep.subr.bf16.mxu0 0
        %2241 = vmatpush1.bf16.xpose.msra.mxu0 0
        %2242 = vmatprep.subr.bf16.mxu0 0
        %2243 = vmatpush1.bf16.xpose.msra.mxu0 0
        %2244 = vmatprep.subr.bf16.mxu0 0
        %2245 = vmatpush1.bf16.xpose.msra.mxu0 0
        %2246 = vmatprep.subr.bf16.mxu0 0
        %2247 = vmatpush1.bf16.xpose.msra.mxu0 0
        %2248 = vmatprep.subr.bf16.mxu0 0
        %2249 = vmatpush1.bf16.xpose.msra.mxu0 0
        %2250 = vmatprep.subr.bf16.mxu0 0
        %2251 = vmatpush1.bf16.xpose.msra.mxu0 0
        %2252 = vmatprep.subr.bf16.mxu0 0
        %2253 = vmatpush1.bf16.xpose.msra.mxu0 0
        %2254 = vmatprep.subr.bf16.mxu0 0
        %2255 = vmatpush1.bf16.xpose.msra.mxu0 0
        %2256 = vmatprep.mubr.bf16.mxu0 0
        %2257 = vmatmul.mubr.bf16.gmra.mrb[0].mxu0 %v2219
        %v2258 = vpop.f32.mrb[0].mxu0
        %v2259 = vadd.f32 0.0, %v2258
        %v2260 = vpop.f32.mrb[0].mxu0
        %v2261 = vpop.f32.mrb[0].mxu0
        %v2262 = vpop.f32.mrb[0].mxu0
        %2263 = vdwg.mxu0
        %v2264 = vmul.f32 %v2209, 0.17677669
        %v2265 = vmul.f32 %v2259, 0.17677669
        %v2266 = vadd.f32 %v2264, %v1807
        %v2267 = vadd.f32 %v2265, %v1811
        %v2268 = vsel %vm1816, %v2266, -inf
        %2269 = vmax.xlane.f32.xlu0 %v2268
        %v2270 = vpop.xlane.xlu0 %2269
        %v2271 = vsel %vm1816, %v2267, -inf
        %2272 = vmax.xlane.f32.xlu0 %v2271
        %v2273 = vpop.xlane.xlu0 %2272
        %v2274 = vsub.f32 %v2266, %v2270
        %v2275 = vsub.f32 %v2267, %v2273
        %v2276 = vmul.f32 %v2274, 1.442695
        %v2277 = vpow.pop %v2276
        %v2278 = vmul.f32 %v2275, 1.442695
        %v2279 = vpow.pop %v2278
        %v2280 = vsel %vm1816, %v2277, 0.0
        %2281 = vadd.xlane.f32.xlu0 %v2280
        %v2282 = vpop.xlane.xlu0 %2281
        %v2283 = vsel %vm1816, %v2279, 0.0
        %2284 = vadd.xlane.f32.xlu0 %v2283
        %v2285 = vpop.xlane.xlu0 %2284
        %v2286 = vrcp.pop %v2282
        %v2287 = vrcp.pop %v2285
        %v2288 = vmul.f32 %v2277, %v2286
        %v2289 = vmul.f32 %v2279, %v2287
        %v2290 = vpack.c.bf16 %v2288, %v2288
        %v2291 = vpack.c.bf16 %v2289, %v2289
        %2292 = vrot.lane.b32.xlu0 %v1707, 64
        %v2293 = vpop.permute.xlu0 %2292
        %v2295 = vsel %vm1816, %v2290, 0
        %v2298 = vsel %vm1844, %v2293, 0
        %2300 = vmatprep.subr.bf16.mxu0 0
        %2301 = vmatpush1.bf16.msra.mxu0 %v2298
        %2302 = vmatprep.subr.bf16.mxu0 0
        %2303 = vmatpush1.bf16.msra.mxu0 0
        %2304 = vmatprep.subr.bf16.mxu0 0
        %2305 = vmatpush1.bf16.msra.mxu0 0
        %2306 = vmatprep.subr.bf16.mxu0 0
        %2307 = vmatpush1.bf16.msra.mxu0 0
        %2308 = vmatprep.subr.bf16.mxu0 0
        %2309 = vmatpush1.bf16.msra.mxu0 0
        %2310 = vmatprep.subr.bf16.mxu0 0
        %2311 = vmatpush1.bf16.msra.mxu0 0
        %2312 = vmatprep.subr.bf16.mxu0 0
        %2313 = vmatpush1.bf16.msra.mxu0 0
        %2314 = vmatprep.subr.bf16.mxu0 0
        %2315 = vmatpush1.bf16.msra.mxu0 0
        %2316 = vmatprep.subr.bf16.mxu0 0
        %2317 = vmatpush1.bf16.msra.mxu0 0
        %2318 = vmatprep.subr.bf16.mxu0 0
        %2319 = vmatpush1.bf16.msra.mxu0 0
        %2320 = vmatprep.subr.bf16.mxu0 0
        %2321 = vmatpush1.bf16.msra.mxu0 0
        %2322 = vmatprep.subr.bf16.mxu0 0
        %2323 = vmatpush1.bf16.msra.mxu0 0
        %2324 = vmatprep.subr.bf16.mxu0 0
        %2325 = vmatpush1.bf16.msra.mxu0 0
        %2326 = vmatprep.subr.bf16.mxu0 0
        %2327 = vmatpush1.bf16.msra.mxu0 0
        %2328 = vmatprep.subr.bf16.mxu0 0
        %2329 = vmatpush1.bf16.msra.mxu0 0
        %2330 = vmatprep.subr.bf16.mxu0 0
        %2331 = vmatpush1.bf16.msra.mxu0 0
        %2332 = vmatprep.mubr.bf16.mxu0 0
        %2333 = vmatmul.mubr.bf16.gmra.mrb[0].mxu0 %v2295
        %v2334 = vpop.f32.mrb[0].mxu0
        %v2335 = vadd.f32 0.0, %v2334
        %v2336 = vpop.f32.mrb[0].mxu0
        %v2337 = vpop.f32.mrb[0].mxu0
        %v2338 = vpop.f32.mrb[0].mxu0
        %2339 = vdwg.mxu0
        %2340 = vrot.lane.b32.xlu0 %v1708, 64
        %v2341 = vpop.permute.xlu0 %2340
        %v2343 = vsel %vm1816, %v2291, 0
        %v2346 = vsel %vm1844, %v2341, 0
        %2348 = vmatprep.subr.bf16.mxu0 0
        %2349 = vmatpush1.bf16.msra.mxu0 %v2346
        %2350 = vmatprep.subr.bf16.mxu0 0
        %2351 = vmatpush1.bf16.msra.mxu0 0
        %2352 = vmatprep.subr.bf16.mxu0 0
        %2353 = vmatpush1.bf16.msra.mxu0 0
        %2354 = vmatprep.subr.bf16.mxu0 0
        %2355 = vmatpush1.bf16.msra.mxu0 0
        %2356 = vmatprep.subr.bf16.mxu0 0
        %2357 = vmatpush1.bf16.msra.mxu0 0
        %2358 = vmatprep.subr.bf16.mxu0 0
        %2359 = vmatpush1.bf16.msra.mxu0 0
        %2360 = vmatprep.subr.bf16.mxu0 0
        %2361 = vmatpush1.bf16.msra.mxu0 0
        %2362 = vmatprep.subr.bf16.mxu0 0
        %2363 = vmatpush1.bf16.msra.mxu0 0
        %2364 = vmatprep.subr.bf16.mxu0 0
        %2365 = vmatpush1.bf16.msra.mxu0 0
        %2366 = vmatprep.subr.bf16.mxu0 0
        %2367 = vmatpush1.bf16.msra.mxu0 0
        %2368 = vmatprep.subr.bf16.mxu0 0
        %2369 = vmatpush1.bf16.msra.mxu0 0
        %2370 = vmatprep.subr.bf16.mxu0 0
        %2371 = vmatpush1.bf16.msra.mxu0 0
        %2372 = vmatprep.subr.bf16.mxu0 0
        %2373 = vmatpush1.bf16.msra.mxu0 0
        %2374 = vmatprep.subr.bf16.mxu0 0
        %2375 = vmatpush1.bf16.msra.mxu0 0
        %2376 = vmatprep.subr.bf16.mxu0 0
        %2377 = vmatpush1.bf16.msra.mxu0 0
        %2378 = vmatprep.subr.bf16.mxu0 0
        %2379 = vmatpush1.bf16.msra.mxu0 0
        %2380 = vmatprep.mubr.bf16.mxu0 0
        %2381 = vmatmul.mubr.bf16.gmra.mrb[0].mxu0 %v2343
        %v2382 = vpop.f32.mrb[0].mxu0
        %v2383 = vadd.f32 0.0, %v2382
        %v2384 = vpop.f32.mrb[0].mxu0
        %v2385 = vpop.f32.mrb[0].mxu0
        %v2386 = vpop.f32.mrb[0].mxu0
        %2387 = vdwg.mxu0
        %2388 = vrot.lane.b32.xlu0 %v1703, 32
        %v2389 = vpop.permute.xlu0 %2388
        %2390 = vrot.lane.b32.xlu0 %v1705, 32
        %v2391 = vpop.permute.xlu0 %2390
        %v2393 = vsel %vm1709, %v2389, 0
        %v2396 = vsel %vm1709, %v2391, 0
        %2398 = vmatprep.subr.bf16.mxu0 0
        %2399 = vmatpush1.bf16.xpose.msra.mxu0 %v2396
        %2400 = vmatprep.subr.bf16.mxu0 0
        %2401 = vmatpush1.bf16.xpose.msra.mxu0 0
        %2402 = vmatprep.subr.bf16.mxu0 0
        %2403 = vmatpush1.bf16.xpose.msra.mxu0 0
        %2404 = vmatprep.subr.bf16.mxu0 0
        %2405 = vmatpush1.bf16.xpose.msra.mxu0 0
        %2406 = vmatprep.subr.bf16.mxu0 0
        %2407 = vmatpush1.bf16.xpose.msra.mxu0 0
        %2408 = vmatprep.subr.bf16.mxu0 0
        %2409 = vmatpush1.bf16.xpose.msra.mxu0 0
        %2410 = vmatprep.subr.bf16.mxu0 0
        %2411 = vmatpush1.bf16.xpose.msra.mxu0 0
        %2412 = vmatprep.subr.bf16.mxu0 0
        %2413 = vmatpush1.bf16.xpose.msra.mxu0 0
        %2414 = vmatprep.subr.bf16.mxu0 0
        %2415 = vmatpush1.bf16.xpose.msra.mxu0 0
        %2416 = vmatprep.subr.bf16.mxu0 0
        %2417 = vmatpush1.bf16.xpose.msra.mxu0 0
        %2418 = vmatprep.subr.bf16.mxu0 0
        %2419 = vmatpush1.bf16.xpose.msra.mxu0 0
        %2420 = vmatprep.subr.bf16.mxu0 0
        %2421 = vmatpush1.bf16.xpose.msra.mxu0 0
        %2422 = vmatprep.subr.bf16.mxu0 0
        %2423 = vmatpush1.bf16.xpose.msra.mxu0 0
        %2424 = vmatprep.subr.bf16.mxu0 0
        %2425 = vmatpush1.bf16.xpose.msra.mxu0 0
        %2426 = vmatprep.subr.bf16.mxu0 0
        %2427 = vmatpush1.bf16.xpose.msra.mxu0 0
        %2428 = vmatprep.subr.bf16.mxu0 0
        %2429 = vmatpush1.bf16.xpose.msra.mxu0 0
        %2430 = vmatprep.mubr.bf16.mxu0 0
        %2431 = vmatmul.mubr.bf16.gmra.mrb[0].mxu0 %v2393
        %v2432 = vpop.f32.mrb[0].mxu0
        %v2433 = vadd.f32 0.0, %v2432
        %v2434 = vpop.f32.mrb[0].mxu0
        %v2435 = vpop.f32.mrb[0].mxu0
        %v2436 = vpop.f32.mrb[0].mxu0
        %2437 = vdwg.mxu0
        %2438 = vrot.lane.b32.xlu0 %v1704, 32
        %v2439 = vpop.permute.xlu0 %2438
        %2440 = vrot.lane.b32.xlu0 %v1706, 32
        %v2441 = vpop.permute.xlu0 %2440
        %v2443 = vsel %vm1709, %v2439, 0
        %v2446 = vsel %vm1709, %v2441, 0
        %2448 = vmatprep.subr.bf16.mxu0 0
        %2449 = vmatpush1.bf16.xpose.msra.mxu0 %v2446
        %2450 = vmatprep.subr.bf16.mxu0 0
        %2451 = vmatpush1.bf16.xpose.msra.mxu0 0
        %2452 = vmatprep.subr.bf16.mxu0 0
        %2453 = vmatpush1.bf16.xpose.msra.mxu0 0
        %2454 = vmatprep.subr.bf16.mxu0 0
        %2455 = vmatpush1.bf16.xpose.msra.mxu0 0
        %2456 = vmatprep.subr.bf16.mxu0 0
        %2457 = vmatpush1.bf16.xpose.msra.mxu0 0
        %2458 = vmatprep.subr.bf16.mxu0 0
        %2459 = vmatpush1.bf16.xpose.msra.mxu0 0
        %2460 = vmatprep.subr.bf16.mxu0 0
        %2461 = vmatpush1.bf16.xpose.msra.mxu0 0
        %2462 = vmatprep.subr.bf16.mxu0 0
        %2463 = vmatpush1.bf16.xpose.msra.mxu0 0
        %2464 = vmatprep.subr.bf16.mxu0 0
        %2465 = vmatpush1.bf16.xpose.msra.mxu0 0
        %2466 = vmatprep.subr.bf16.mxu0 0
        %2467 = vmatpush1.bf16.xpose.msra.mxu0 0
        %2468 = vmatprep.subr.bf16.mxu0 0
        %2469 = vmatpush1.bf16.xpose.msra.mxu0 0
        %2470 = vmatprep.subr.bf16.mxu0 0
        %2471 = vmatpush1.bf16.xpose.msra.mxu0 0
        %2472 = vmatprep.subr.bf16.mxu0 0
        %2473 = vmatpush1.bf16.xpose.msra.mxu0 0
        %2474 = vmatprep.subr.bf16.mxu0 0
        %2475 = vmatpush1.bf16.xpose.msra.mxu0 0
        %2476 = vmatprep.subr.bf16.mxu0 0
        %2477 = vmatpush1.bf16.xpose.msra.mxu0 0
        %2478 = vmatprep.subr.bf16.mxu0 0
        %2479 = vmatpush1.bf16.xpose.msra.mxu0 0
        %2480 = vmatprep.mubr.bf16.mxu0 0
        %2481 = vmatmul.mubr.bf16.gmra.mrb[0].mxu0 %v2443
        %v2482 = vpop.f32.mrb[0].mxu0
        %v2483 = vadd.f32 0.0, %v2482
        %v2484 = vpop.f32.mrb[0].mxu0
        %v2485 = vpop.f32.mrb[0].mxu0
        %v2486 = vpop.f32.mrb[0].mxu0
        %2487 = vdwg.mxu0
        %v2488 = vmul.f32 %v2433, 0.17677669
        %v2489 = vmul.f32 %v2483, 0.17677669
        %v2490 = vadd.f32 %v2488, %v1807
        %v2491 = vadd.f32 %v2489, %v1811
        %v2492 = vsel %vm1816, %v2490, -inf
        %2493 = vmax.xlane.f32.xlu0 %v2492
        %v2494 = vpop.xlane.xlu0 %2493
        %v2495 = vsel %vm1816, %v2491, -inf
        %2496 = vmax.xlane.f32.xlu0 %v2495
        %v2497 = vpop.xlane.xlu0 %2496
        %v2498 = vsub.f32 %v2490, %v2494
        %v2499 = vsub.f32 %v2491, %v2497
        %v2500 = vmul.f32 %v2498, 1.442695
        %v2501 = vpow.pop %v2500
        %v2502 = vmul.f32 %v2499, 1.442695
        %v2503 = vpow.pop %v2502
        %v2504 = vsel %vm1816, %v2501, 0.0
        %2505 = vadd.xlane.f32.xlu0 %v2504
        %v2506 = vpop.xlane.xlu0 %2505
        %v2507 = vsel %vm1816, %v2503, 0.0
        %2508 = vadd.xlane.f32.xlu0 %v2507
        %v2509 = vpop.xlane.xlu0 %2508
        %v2510 = vrcp.pop %v2506
        %v2511 = vrcp.pop %v2509
        %v2512 = vmul.f32 %v2501, %v2510
        %v2513 = vmul.f32 %v2503, %v2511
        %v2514 = vpack.c.bf16 %v2512, %v2512
        %v2515 = vpack.c.bf16 %v2513, %v2513
        %2516 = vrot.lane.b32.xlu0 %v1707, 32
        %v2517 = vpop.permute.xlu0 %2516
        %v2519 = vsel %vm1816, %v2514, 0
        %v2522 = vsel %vm1844, %v2517, 0
        %2524 = vmatprep.subr.bf16.mxu0 0
        %2525 = vmatpush1.bf16.msra.mxu0 %v2522
        %2526 = vmatprep.subr.bf16.mxu0 0
        %2527 = vmatpush1.bf16.msra.mxu0 0
        %2528 = vmatprep.subr.bf16.mxu0 0
        %2529 = vmatpush1.bf16.msra.mxu0 0
        %2530 = vmatprep.subr.bf16.mxu0 0
        %2531 = vmatpush1.bf16.msra.mxu0 0
        %2532 = vmatprep.subr.bf16.mxu0 0
        %2533 = vmatpush1.bf16.msra.mxu0 0
        %2534 = vmatprep.subr.bf16.mxu0 0
        %2535 = vmatpush1.bf16.msra.mxu0 0
        %2536 = vmatprep.subr.bf16.mxu0 0
        %2537 = vmatpush1.bf16.msra.mxu0 0
        %2538 = vmatprep.subr.bf16.mxu0 0
        %2539 = vmatpush1.bf16.msra.mxu0 0
        %2540 = vmatprep.subr.bf16.mxu0 0
        %2541 = vmatpush1.bf16.msra.mxu0 0
        %2542 = vmatprep.subr.bf16.mxu0 0
        %2543 = vmatpush1.bf16.msra.mxu0 0
        %2544 = vmatprep.subr.bf16.mxu0 0
        %2545 = vmatpush1.bf16.msra.mxu0 0
        %2546 = vmatprep.subr.bf16.mxu0 0
        %2547 = vmatpush1.bf16.msra.mxu0 0
        %2548 = vmatprep.subr.bf16.mxu0 0
        %2549 = vmatpush1.bf16.msra.mxu0 0
        %2550 = vmatprep.subr.bf16.mxu0 0
        %2551 = vmatpush1.bf16.msra.mxu0 0
        %2552 = vmatprep.subr.bf16.mxu0 0
        %2553 = vmatpush1.bf16.msra.mxu0 0
        %2554 = vmatprep.subr.bf16.mxu0 0
        %2555 = vmatpush1.bf16.msra.mxu0 0
        %2556 = vmatprep.mubr.bf16.mxu0 0
        %2557 = vmatmul.mubr.bf16.gmra.mrb[0].mxu0 %v2519
        %v2558 = vpop.f32.mrb[0].mxu0
        %v2559 = vadd.f32 0.0, %v2558
        %v2560 = vpop.f32.mrb[0].mxu0
        %v2561 = vpop.f32.mrb[0].mxu0
        %v2562 = vpop.f32.mrb[0].mxu0
        %2563 = vdwg.mxu0
        %2564 = vrot.lane.b32.xlu0 %v1708, 32
        %v2565 = vpop.permute.xlu0 %2564
        %v2567 = vsel %vm1816, %v2515, 0
        %v2570 = vsel %vm1844, %v2565, 0
        %2572 = vmatprep.subr.bf16.mxu0 0
        %2573 = vmatpush1.bf16.msra.mxu0 %v2570
        %2574 = vmatprep.subr.bf16.mxu0 0
        %2575 = vmatpush1.bf16.msra.mxu0 0
        %2576 = vmatprep.subr.bf16.mxu0 0
        %2577 = vmatpush1.bf16.msra.mxu0 0
        %2578 = vmatprep.subr.bf16.mxu0 0
        %2579 = vmatpush1.bf16.msra.mxu0 0
        %2580 = vmatprep.subr.bf16.mxu0 0
        %2581 = vmatpush1.bf16.msra.mxu0 0
        %2582 = vmatprep.subr.bf16.mxu0 0
        %2583 = vmatpush1.bf16.msra.mxu0 0
        %2584 = vmatprep.subr.bf16.mxu0 0
        %2585 = vmatpush1.bf16.msra.mxu0 0
        %2586 = vmatprep.subr.bf16.mxu0 0
        %2587 = vmatpush1.bf16.msra.mxu0 0
        %2588 = vmatprep.subr.bf16.mxu0 0
        %2589 = vmatpush1.bf16.msra.mxu0 0
        %2590 = vmatprep.subr.bf16.mxu0 0
        %2591 = vmatpush1.bf16.msra.mxu0 0
        %2592 = vmatprep.subr.bf16.mxu0 0
        %2593 = vmatpush1.bf16.msra.mxu0 0
        %2594 = vmatprep.subr.bf16.mxu0 0
        %2595 = vmatpush1.bf16.msra.mxu0 0
        %2596 = vmatprep.subr.bf16.mxu0 0
        %2597 = vmatpush1.bf16.msra.mxu0 0
        %2598 = vmatprep.subr.bf16.mxu0 0
        %2599 = vmatpush1.bf16.msra.mxu0 0
        %2600 = vmatprep.subr.bf16.mxu0 0
        %2601 = vmatpush1.bf16.msra.mxu0 0
        %2602 = vmatprep.subr.bf16.mxu0 0
        %2603 = vmatpush1.bf16.msra.mxu0 0
        %2604 = vmatprep.mubr.bf16.mxu0 0
        %2605 = vmatmul.mubr.bf16.gmra.mrb[0].mxu0 %v2567
        %v2606 = vpop.f32.mrb[0].mxu0
        %v2607 = vadd.f32 0.0, %v2606
        %v2608 = vpop.f32.mrb[0].mxu0
        %v2609 = vpop.f32.mrb[0].mxu0
        %v2610 = vpop.f32.mrb[0].mxu0
        %2611 = vdwg.mxu0
        %2614 = vrot.lane.b32.xlu0 %v2110, 32
        %v2615 = vpop.permute.xlu0 %2614
        %2616 = vrot.lane.b32.xlu0 %v2159, 32
        %v2617 = vpop.permute.xlu0 %2616
        %2622 = vrot.lane.b32.xlu0 %v2335, 64
        %v2623 = vpop.permute.xlu0 %2622
        %2624 = vrot.lane.b32.xlu0 %v2383, 64
        %v2625 = vpop.permute.xlu0 %2624
        %2630 = vrot.lane.b32.xlu0 %v2559, 96
        %v2631 = vpop.permute.xlu0 %2630
        %2632 = vrot.lane.b32.xlu0 %v2607, 96
        %v2633 = vpop.permute.xlu0 %2632
        %v2636 = vsel %vm1709, %v1883, %v2615
        %v2637 = vsel %vm1709, %v1929, %v2617
        %vm2638 = vcmask 523264
        %v2639 = vsel %vm2638, %v2636, %v2623
        %v2640 = vsel %vm2638, %v2637, %v2625
        %vm2641 = vcmask 785408
        %v2642 = vsel %vm2641, %v2639, %v2631
        %v2643 = vsel %vm2641, %v2640, %v2633
        %v2644 = vpack.c.bf16 %v2643, %v2642
        %v2645 = vld [vmem:[%s1089] sm:$0xf]
        %v2646 = vld [vmem:[%s1089 + $0x4] sm:$0xf]
        %v2647 = vld [vmem:[%s1089 + $0x8] sm:$0xf]
        %v2648 = vld [vmem:[%s1089 + $0xc] sm:$0xf]
        %v2649 = vld [vmem:[%s1089 + $0x10] sm:$0xf]
        %v2650 = vld [vmem:[%s1089 + $0x14] sm:$0xf]
        %v2651 = vld [vmem:[%s1089 + $0x18] sm:$0xf]
        %v2652 = vld [vmem:[%s1089 + $0x1c] sm:$0xf]
        %v2653 = vld [vmem:[%s1089 + $0x20] sm:$0xf]
        %v2654 = vld [vmem:[%s1089 + $0x24] sm:$0xf]
        %v2655 = vld [vmem:[%s1089 + $0x28] sm:$0xf]
        %v2656 = vld [vmem:[%s1089 + $0x2c] sm:$0xf]
        %v2657 = vld [vmem:[%s1089 + $0x30] sm:$0xf]
        %v2658 = vld [vmem:[%s1089 + $0x34] sm:$0xf]
        %v2659 = vld [vmem:[%s1089 + $0x38] sm:$0xf]
        %v2660 = vld [vmem:[%s1089 + $0x3c] sm:$0xf]
        %v2661 = vld [vmem:[%s1097] sm:$0x1]
        %v2663 = vlaneseq
        %v2664 = vshrl.u32 %v2663, 7
        %v2665 = vsub.s32 0, %v2664
        %v2666 = vrot.slane %v2661, %v2665
        %v2684 = vunpack.c.l.b16 %v2645
        %v2685 = vunpack.c.l.b16 %v2646
        %v2686 = vunpack.c.l.b16 %v2647
        %v2687 = vunpack.c.l.b16 %v2648
        %v2688 = vunpack.c.l.b16 %v2649
        %v2689 = vunpack.c.l.b16 %v2650
        %v2690 = vunpack.c.l.b16 %v2651
        %v2691 = vunpack.c.l.b16 %v2652
        %v2692 = vunpack.c.l.b16 %v2653
        %v2693 = vunpack.c.l.b16 %v2654
        %v2694 = vunpack.c.l.b16 %v2655
        %v2695 = vunpack.c.l.b16 %v2656
        %v2696 = vunpack.c.l.b16 %v2657
        %v2697 = vunpack.c.l.b16 %v2658
        %v2698 = vunpack.c.l.b16 %v2659
        %v2699 = vunpack.c.l.b16 %v2660
        %v2700 = vpack.c.b16 %v2685, %v2684
        %v2701 = vpack.c.b16 %v2687, %v2686
        %v2702 = vpack.c.b16 %v2689, %v2688
        %v2703 = vpack.c.b16 %v2691, %v2690
        %v2704 = vpack.c.b16 %v2693, %v2692
        %v2705 = vpack.c.b16 %v2695, %v2694
        %v2706 = vpack.c.b16 %v2697, %v2696
        %v2707 = vpack.c.b16 %v2699, %v2698
        %2716 = vmatprep.subr.bf16.mxu0 0
        %2717 = vmatpush1.bf16.msra.mxu0 %v2700
        %2718 = vmatprep.subr.bf16.mxu0 0
        %2719 = vmatpush1.bf16.msra.mxu0 %v2701
        %2720 = vmatprep.subr.bf16.mxu0 0
        %2721 = vmatpush1.bf16.msra.mxu0 %v2702
        %2722 = vmatprep.subr.bf16.mxu0 0
        %2723 = vmatpush1.bf16.msra.mxu0 %v2703
        %2724 = vmatprep.subr.bf16.mxu0 0
        %2725 = vmatpush1.bf16.msra.mxu0 %v2704
        %2726 = vmatprep.subr.bf16.mxu0 0
        %2727 = vmatpush1.bf16.msra.mxu0 %v2705
        %2728 = vmatprep.subr.bf16.mxu0 0
        %2729 = vmatpush1.bf16.msra.mxu0 %v2706
        %2730 = vmatprep.subr.bf16.mxu0 0
        %2731 = vmatpush1.bf16.msra.mxu0 %v2707
        %2732 = vmatprep.subr.bf16.mxu0 0
        %2733 = vmatpush1.bf16.msra.mxu0 0
        %2734 = vmatprep.subr.bf16.mxu0 0
        %2735 = vmatpush1.bf16.msra.mxu0 0
        %2736 = vmatprep.subr.bf16.mxu0 0
        %2737 = vmatpush1.bf16.msra.mxu0 0
        %2738 = vmatprep.subr.bf16.mxu0 0
        %2739 = vmatpush1.bf16.msra.mxu0 0
        %2740 = vmatprep.subr.bf16.mxu0 0
        %2741 = vmatpush1.bf16.msra.mxu0 0
        %2742 = vmatprep.subr.bf16.mxu0 0
        %2743 = vmatpush1.bf16.msra.mxu0 0
        %2744 = vmatprep.subr.bf16.mxu0 0
        %2745 = vmatpush1.bf16.msra.mxu0 0
        %2746 = vmatprep.subr.bf16.mxu0 0
        %2747 = vmatpush1.bf16.msra.mxu0 0
        %2748 = vmatprep.mubr.bf16.mxu0 0
        %2749 = vmatmul.mubr.bf16.gmra.mrb[0].mxu0 %v2644
        %v2750 = vpop.f32.mrb[0].mxu0
        %v2751 = vadd.f32 %v2666, %v2750
        %v2752 = vpop.f32.mrb[0].mxu0
        %v2753 = vpop.f32.mrb[0].mxu0
        %v2754 = vadd.f32 %v2666, %v2753
        %v2755 = vpop.f32.mrb[0].mxu0
        %2756 = vdwg.mxu0
        %v2757 = vadd.f32 %v1340, %v2751
        %v2758 = vadd.f32 %v1341, %v2754
        %v2759 = vld [vmem:[%s1105] sm:$0x1]
        %v2760 = vld [vmem:[%s1113] sm:$0x1]
        %2761 = vadd.xlane.f32.xlu0 %v2757
        %v2762 = vpop.xlane.xlu0 %2761
        %2763 = vadd.xlane.f32.xlu0 %v2758
        %v2764 = vpop.xlane.xlu0 %2763
        %v2765 = vrcp.pop 128.0
        %v2766 = vmul.f32 %v2762, %v2765
        %v2767 = vmul.f32 %v2764, %v2765
        %v2768 = vsub.f32 %v2757, %v2766
        %v2769 = vsub.f32 %v2758, %v2767
        %v2770 = vmul.f32 %v2768, %v2768
        %v2771 = vmul.f32 %v2769, %v2769
        %2772 = vadd.xlane.f32.xlu0 %v2770
        %v2773 = vpop.xlane.xlu0 %2772
        %2774 = vadd.xlane.f32.xlu0 %v2771
        %v2775 = vpop.xlane.xlu0 %2774
        %v2776 = vmul.f32 %v2773, %v2765
        %v2777 = vmul.f32 %v2775, %v2765
        %v2778 = vadd.f32 %v2776, 1e-05
        %v2779 = vadd.f32 %v2777, 1e-05
        %v2780 = vrsqrt.pop %v2778
        %v2781 = vrsqrt.pop %v2779
        %v2782 = vmul.f32 %v2768, %v2780
        %v2783 = vmul.f32 %v2769, %v2781
        %v2785 = vlaneseq
        %v2786 = vshrl.u32 %v2785, 7
        %v2787 = vsub.s32 0, %v2786
        %v2788 = vrot.slane %v2759, %v2787
        %v2790 = vmul.f32 %v2782, %v2788
        %v2791 = vmul.f32 %v2783, %v2788
        %v2793 = vlaneseq
        %v2794 = vshrl.u32 %v2793, 7
        %v2795 = vsub.s32 0, %v2794
        %v2796 = vrot.slane %v2760, %v2795
        %v2798 = vadd.f32 %v2790, %v2796
        %v2799 = vadd.f32 %v2791, %v2796
        %v2800 = vpack.c.bf16 %v2799, %v2798
        %v2801 = vld [vmem:[%s1122] sm:$0xff]
        %v2802 = vld [vmem:[%s1122 + $0x8] sm:$0xff]
        %v2803 = vld [vmem:[%s1122 + $0x10] sm:$0xff]
        %v2804 = vld [vmem:[%s1122 + $0x18] sm:$0xff]
        %v2805 = vld [vmem:[%s1122 + $0x20] sm:$0xff]
        %v2806 = vld [vmem:[%s1122 + $0x28] sm:$0xff]
        %v2807 = vld [vmem:[%s1122 + $0x30] sm:$0xff]
        %v2808 = vld [vmem:[%s1122 + $0x38] sm:$0xff]
        %v2809 = vld [vmem:[%s1122 + $0x40] sm:$0xff]
        %v2810 = vld [vmem:[%s1122 + $0x48] sm:$0xff]
        %v2811 = vld [vmem:[%s1122 + $0x50] sm:$0xff]
        %v2812 = vld [vmem:[%s1122 + $0x58] sm:$0xff]
        %v2813 = vld [vmem:[%s1122 + $0x60] sm:$0xff]
        %v2814 = vld [vmem:[%s1122 + $0x68] sm:$0xff]
        %v2815 = vld [vmem:[%s1122 + $0x70] sm:$0xff]
        %v2816 = vld [vmem:[%s1122 + $0x78] sm:$0xff]
        %v2817 = vld [vmem:[%s1122 + $0x80] sm:$0xff]
        %v2818 = vld [vmem:[%s1122 + $0x88] sm:$0xff]
        %v2819 = vld [vmem:[%s1122 + $0x90] sm:$0xff]
        %v2820 = vld [vmem:[%s1122 + $0x98] sm:$0xff]
        %v2821 = vld [vmem:[%s1122 + $0xa0] sm:$0xff]
        %v2822 = vld [vmem:[%s1122 + $0xa8] sm:$0xff]
        %v2823 = vld [vmem:[%s1122 + $0xb0] sm:$0xff]
        %v2824 = vld [vmem:[%s1122 + $0xb8] sm:$0xff]
        %v2825 = vld [vmem:[%s1122 + $0xc0] sm:$0xff]
        %v2826 = vld [vmem:[%s1122 + $0xc8] sm:$0xff]
        %v2827 = vld [vmem:[%s1122 + $0xd0] sm:$0xff]
        %v2828 = vld [vmem:[%s1122 + $0xd8] sm:$0xff]
        %v2829 = vld [vmem:[%s1122 + $0xe0] sm:$0xff]
        %v2830 = vld [vmem:[%s1122 + $0xe8] sm:$0xff]
        %v2831 = vld [vmem:[%s1122 + $0xf0] sm:$0xff]
        %v2832 = vld [vmem:[%s1122 + $0xf8] sm:$0xff]
        %v2833 = vld [vmem:[%s1289] sm:$0xf]
        %v2835 = vlaneseq
        %v2836 = vshrl.u32 %v2835, 7
        %v2837 = vsub.s32 0, %v2836
        %v2838 = vrot.slane %v2833, %v2837
        %v2839 = vlaneseq
        %v2840 = vshrl.u32 %v2839, 7
        %v2841 = vsub.s32 1, %v2840
        %v2842 = vrot.slane %v2833, %v2841
        %v2843 = vlaneseq
        %v2844 = vshrl.u32 %v2843, 7
        %v2845 = vsub.s32 2, %v2844
        %v2846 = vrot.slane %v2833, %v2845
        %v2847 = vlaneseq
        %v2848 = vshrl.u32 %v2847, 7
        %v2849 = vsub.s32 3, %v2848
        %v2850 = vrot.slane %v2833, %v2849
        %v2887 = vunpack.c.l.b16 %v2801
        %v2888 = vunpack.c.h.b16 %v2801
        %v2889 = vunpack.c.l.b16 %v2802
        %v2890 = vunpack.c.h.b16 %v2802
        %v2891 = vunpack.c.l.b16 %v2803
        %v2892 = vunpack.c.h.b16 %v2803
        %v2893 = vunpack.c.l.b16 %v2804
        %v2894 = vunpack.c.h.b16 %v2804
        %v2895 = vunpack.c.l.b16 %v2805
        %v2896 = vunpack.c.h.b16 %v2805
        %v2897 = vunpack.c.l.b16 %v2806
        %v2898 = vunpack.c.h.b16 %v2806
        %v2899 = vunpack.c.l.b16 %v2807
        %v2900 = vunpack.c.h.b16 %v2807
        %v2901 = vunpack.c.l.b16 %v2808
        %v2902 = vunpack.c.h.b16 %v2808
        %v2903 = vunpack.c.l.b16 %v2809
        %v2904 = vunpack.c.h.b16 %v2809
        %v2905 = vunpack.c.l.b16 %v2810
        %v2906 = vunpack.c.h.b16 %v2810
        %v2907 = vunpack.c.l.b16 %v2811
        %v2908 = vunpack.c.h.b16 %v2811
        %v2909 = vunpack.c.l.b16 %v2812
        %v2910 = vunpack.c.h.b16 %v2812
        %v2911 = vunpack.c.l.b16 %v2813
        %v2912 = vunpack.c.h.b16 %v2813
        %v2913 = vunpack.c.l.b16 %v2814
        %v2914 = vunpack.c.h.b16 %v2814
        %v2915 = vunpack.c.l.b16 %v2815
        %v2916 = vunpack.c.h.b16 %v2815
        %v2917 = vunpack.c.l.b16 %v2816
        %v2918 = vunpack.c.h.b16 %v2816
        %v2919 = vunpack.c.l.b16 %v2817
        %v2920 = vunpack.c.h.b16 %v2817
        %v2921 = vunpack.c.l.b16 %v2818
        %v2922 = vunpack.c.h.b16 %v2818
        %v2923 = vunpack.c.l.b16 %v2819
        %v2924 = vunpack.c.h.b16 %v2819
        %v2925 = vunpack.c.l.b16 %v2820
        %v2926 = vunpack.c.h.b16 %v2820
        %v2927 = vunpack.c.l.b16 %v2821
        %v2928 = vunpack.c.h.b16 %v2821
        %v2929 = vunpack.c.l.b16 %v2822
        %v2930 = vunpack.c.h.b16 %v2822
        %v2931 = vunpack.c.l.b16 %v2823
        %v2932 = vunpack.c.h.b16 %v2823
        %v2933 = vunpack.c.l.b16 %v2824
        %v2934 = vunpack.c.h.b16 %v2824
        %v2935 = vunpack.c.l.b16 %v2825
        %v2936 = vunpack.c.h.b16 %v2825
        %v2937 = vunpack.c.l.b16 %v2826
        %v2938 = vunpack.c.h.b16 %v2826
        %v2939 = vunpack.c.l.b16 %v2827
        %v2940 = vunpack.c.h.b16 %v2827
        %v2941 = vunpack.c.l.b16 %v2828
        %v2942 = vunpack.c.h.b16 %v2828
        %v2943 = vunpack.c.l.b16 %v2829
        %v2944 = vunpack.c.h.b16 %v2829
        %v2945 = vunpack.c.l.b16 %v2830
        %v2946 = vunpack.c.h.b16 %v2830
        %v2947 = vunpack.c.l.b16 %v2831
        %v2948 = vunpack.c.h.b16 %v2831
        %v2949 = vunpack.c.l.b16 %v2832
        %v2950 = vunpack.c.h.b16 %v2832
        %v2951 = vpack.c.b16 %v2891, %v2887
        %v2952 = vpack.c.b16 %v2892, %v2888
        %v2953 = vpack.c.b16 %v2893, %v2889
        %v2954 = vpack.c.b16 %v2894, %v2890
        %v2955 = vpack.c.b16 %v2899, %v2895
        %v2956 = vpack.c.b16 %v2900, %v2896
        %v2957 = vpack.c.b16 %v2901, %v2897
        %v2958 = vpack.c.b16 %v2902, %v2898
        %v2959 = vpack.c.b16 %v2907, %v2903
        %v2960 = vpack.c.b16 %v2908, %v2904
        %v2961 = vpack.c.b16 %v2909, %v2905
        %v2962 = vpack.c.b16 %v2910, %v2906
        %v2963 = vpack.c.b16 %v2915, %v2911
        %v2964 = vpack.c.b16 %v2916, %v2912
        %v2965 = vpack.c.b16 %v2917, %v2913
        %v2966 = vpack.c.b16 %v2918, %v2914
        %v2967 = vpack.c.b16 %v2923, %v2919
        %v2968 = vpack.c.b16 %v2924, %v2920
        %v2969 = vpack.c.b16 %v2925, %v2921
        %v2970 = vpack.c.b16 %v2926, %v2922
        %v2971 = vpack.c.b16 %v2931, %v2927
        %v2972 = vpack.c.b16 %v2932, %v2928
        %v2973 = vpack.c.b16 %v2933, %v2929
        %v2974 = vpack.c.b16 %v2934, %v2930
        %v2975 = vpack.c.b16 %v2939, %v2935
        %v2976 = vpack.c.b16 %v2940, %v2936
        %v2977 = vpack.c.b16 %v2941, %v2937
        %v2978 = vpack.c.b16 %v2942, %v2938
        %v2979 = vpack.c.b16 %v2947, %v2943
        %v2980 = vpack.c.b16 %v2948, %v2944
        %v2981 = vpack.c.b16 %v2949, %v2945
        %v2982 = vpack.c.b16 %v2950, %v2946
        %3015 = vmatprep.subr.bf16.mxu0 %v2952
        %3016 = vmatpush1.bf16.msra.mxu0 %v2951
        %3017 = vmatprep.subr.bf16.mxu0 %v2956
        %3018 = vmatpush1.bf16.msra.mxu0 %v2955
        %3019 = vmatprep.subr.bf16.mxu0 %v2960
        %3020 = vmatpush1.bf16.msra.mxu0 %v2959
        %3021 = vmatprep.subr.bf16.mxu0 %v2964
        %3022 = vmatpush1.bf16.msra.mxu0 %v2963
        %3023 = vmatprep.subr.bf16.mxu0 %v2968
        %3024 = vmatpush1.bf16.msra.mxu0 %v2967
        %3025 = vmatprep.subr.bf16.mxu0 %v2972
        %3026 = vmatpush1.bf16.msra.mxu0 %v2971
        %3027 = vmatprep.subr.bf16.mxu0 %v2976
        %3028 = vmatpush1.bf16.msra.mxu0 %v2975
        %3029 = vmatprep.subr.bf16.mxu0 %v2980
        %3030 = vmatpush1.bf16.msra.mxu0 %v2979
        %3031 = vmatprep.subr.bf16.mxu0 0
        %3032 = vmatpush1.bf16.msra.mxu0 0
        %3033 = vmatprep.subr.bf16.mxu0 0
        %3034 = vmatpush1.bf16.msra.mxu0 0
        %3035 = vmatprep.subr.bf16.mxu0 0
        %3036 = vmatpush1.bf16.msra.mxu0 0
        %3037 = vmatprep.subr.bf16.mxu0 0
        %3038 = vmatpush1.bf16.msra.mxu0 0
        %3039 = vmatprep.subr.bf16.mxu0 0
        %3040 = vmatpush1.bf16.msra.mxu0 0
        %3041 = vmatprep.subr.bf16.mxu0 0
        %3042 = vmatpush1.bf16.msra.mxu0 0
        %3043 = vmatprep.subr.bf16.mxu0 0
        %3044 = vmatpush1.bf16.msra.mxu0 0
        %3045 = vmatprep.subr.bf16.mxu0 0
        %3046 = vmatpush1.bf16.msra.mxu0 0
        %3047 = vmatprep.mubr.bf16.mxu0 0
        %3048 = vmatmul.mubr.bf16.gmra.mrb[0].mxu0 %v2800
        %v3049 = vpop.f32.mrb[0].mxu0
        %v3050 = vadd.f32 %v2838, %v3049
        %v3051 = vpop.f32.mrb[0].mxu0
        %v3052 = vadd.f32 %v2842, %v3051
        %v3053 = vpop.f32.mrb[0].mxu0
        %v3054 = vadd.f32 %v2838, %v3053
        %v3055 = vpop.f32.mrb[0].mxu0
        %v3056 = vadd.f32 %v2842, %v3055
        %3057 = vdwg.mxu0
        %3058 = vmatprep.subr.bf16.mxu0 %v2954
        %3059 = vmatpush1.bf16.msra.mxu0 %v2953
        %3060 = vmatprep.subr.bf16.mxu0 %v2958
        %3061 = vmatpush1.bf16.msra.mxu0 %v2957
        %3062 = vmatprep.subr.bf16.mxu0 %v2962
        %3063 = vmatpush1.bf16.msra.mxu0 %v2961
        %3064 = vmatprep.subr.bf16.mxu0 %v2966
        %3065 = vmatpush1.bf16.msra.mxu0 %v2965
        %3066 = vmatprep.subr.bf16.mxu0 %v2970
        %3067 = vmatpush1.bf16.msra.mxu0 %v2969
        %3068 = vmatprep.subr.bf16.mxu0 %v2974
        %3069 = vmatpush1.bf16.msra.mxu0 %v2973
        %3070 = vmatprep.subr.bf16.mxu0 %v2978
        %3071 = vmatpush1.bf16.msra.mxu0 %v2977
        %3072 = vmatprep.subr.bf16.mxu0 %v2982
        %3073 = vmatpush1.bf16.msra.mxu0 %v2981
        %3074 = vmatprep.subr.bf16.mxu0 0
        %3075 = vmatpush1.bf16.msra.mxu0 0
        %3076 = vmatprep.subr.bf16.mxu0 0
        %3077 = vmatpush1.bf16.msra.mxu0 0
        %3078 = vmatprep.subr.bf16.mxu0 0
        %3079 = vmatpush1.bf16.msra.mxu0 0
        %3080 = vmatprep.subr.bf16.mxu0 0
        %3081 = vmatpush1.bf16.msra.mxu0 0
        %3082 = vmatprep.subr.bf16.mxu0 0
        %3083 = vmatpush1.bf16.msra.mxu0 0
        %3084 = vmatprep.subr.bf16.mxu0 0
        %3085 = vmatpush1.bf16.msra.mxu0 0
        %3086 = vmatprep.subr.bf16.mxu0 0
        %3087 = vmatpush1.bf16.msra.mxu0 0
        %3088 = vmatprep.subr.bf16.mxu0 0
        %3089 = vmatpush1.bf16.msra.mxu0 0
        %3090 = vmatprep.mubr.bf16.mxu0 0
        %3091 = vmatmul.mubr.bf16.gmra.mrb[0].mxu0 %v2800
        %v3092 = vpop.f32.mrb[0].mxu0
        %v3093 = vadd.f32 %v2846, %v3092
        %v3094 = vpop.f32.mrb[0].mxu0
        %v3095 = vadd.f32 %v2850, %v3094
        %v3096 = vpop.f32.mrb[0].mxu0
        %v3097 = vadd.f32 %v2846, %v3096
        %v3098 = vpop.f32.mrb[0].mxu0
        %v3099 = vadd.f32 %v2850, %v3098
        %3100 = vdwg.mxu0
        %v3101 = vmul.f32 %v3050, %v3050
        %v3102 = vmul.f32 %v3052, %v3052
        %v3103 = vmul.f32 %v3093, %v3093
        %v3104 = vmul.f32 %v3095, %v3095
        %v3105 = vmul.f32 %v3054, %v3054
        %v3106 = vmul.f32 %v3056, %v3056
        %v3107 = vmul.f32 %v3097, %v3097
        %v3108 = vmul.f32 %v3099, %v3099
        %v3109 = vmul.f32 %v3050, %v3101
        %v3110 = vmul.f32 %v3052, %v3102
        %v3111 = vmul.f32 %v3093, %v3103
        %v3112 = vmul.f32 %v3095, %v3104
        %v3113 = vmul.f32 %v3054, %v3105
        %v3114 = vmul.f32 %v3056, %v3106
        %v3115 = vmul.f32 %v3097, %v3107
        %v3116 = vmul.f32 %v3099, %v3108
        %v3117 = vmul.f32 %v3109, 0.044715
        %v3118 = vmul.f32 %v3110, 0.044715
        %v3119 = vmul.f32 %v3111, 0.044715
        %v3120 = vmul.f32 %v3112, 0.044715
        %v3121 = vmul.f32 %v3113, 0.044715
        %v3122 = vmul.f32 %v3114, 0.044715
        %v3123 = vmul.f32 %v3115, 0.044715
        %v3124 = vmul.f32 %v3116, 0.044715
        %v3125 = vadd.f32 %v3050, %v3117
        %v3126 = vadd.f32 %v3052, %v3118
        %v3127 = vadd.f32 %v3093, %v3119
        %v3128 = vadd.f32 %v3095, %v3120
        %v3129 = vadd.f32 %v3054, %v3121
        %v3130 = vadd.f32 %v3056, %v3122
        %v3131 = vadd.f32 %v3097, %v3123
        %v3132 = vadd.f32 %v3099, %v3124
        %v3133 = vmul.f32 %v3125, 0.7978846
        %v3134 = vmul.f32 %v3126, 0.7978846
        %v3135 = vmul.f32 %v3127, 0.7978846
        %v3136 = vmul.f32 %v3128, 0.7978846
        %v3137 = vmul.f32 %v3129, 0.7978846
        %v3138 = vmul.f32 %v3130, 0.7978846
        %v3139 = vmul.f32 %v3131, 0.7978846
        %v3140 = vmul.f32 %v3132, 0.7978846
        %v3141 = vtanh.pop %v3133
        %v3142 = vtanh.pop %v3134
        %v3143 = vtanh.pop %v3135
        %v3144 = vtanh.pop %v3136
        %v3145 = vtanh.pop %v3137
        %v3146 = vtanh.pop %v3138
        %v3147 = vtanh.pop %v3139
        %v3148 = vtanh.pop %v3140
        %v3149 = vadd.f32 %v3141, 1.0
        %v3150 = vadd.f32 %v3142, 1.0
        %v3151 = vadd.f32 %v3143, 1.0
        %v3152 = vadd.f32 %v3144, 1.0
        %v3153 = vadd.f32 %v3145, 1.0
        %v3154 = vadd.f32 %v3146, 1.0
        %v3155 = vadd.f32 %v3147, 1.0
        %v3156 = vadd.f32 %v3148, 1.0
        %v3157 = vmul.f32 %v3149, 0.5
        %v3158 = vmul.f32 %v3150, 0.5
        %v3159 = vmul.f32 %v3151, 0.5
        %v3160 = vmul.f32 %v3152, 0.5
        %v3161 = vmul.f32 %v3153, 0.5
        %v3162 = vmul.f32 %v3154, 0.5
        %v3163 = vmul.f32 %v3155, 0.5
        %v3164 = vmul.f32 %v3156, 0.5
        %v3165 = vmul.f32 %v3050, %v3157
        %v3166 = vmul.f32 %v3052, %v3158
        %v3167 = vmul.f32 %v3093, %v3159
        %v3168 = vmul.f32 %v3095, %v3160
        %v3169 = vmul.f32 %v3054, %v3161
        %v3170 = vmul.f32 %v3056, %v3162
        %v3171 = vmul.f32 %v3097, %v3163
        %v3172 = vmul.f32 %v3099, %v3164
        %v3173 = vpack.c.bf16 %v3169, %v3165
        %v3174 = vpack.c.bf16 %v3170, %v3166
        %v3175 = vpack.c.bf16 %v3171, %v3167
        %v3176 = vpack.c.bf16 %v3172, %v3168
        %v3177 = vld [vmem:[%s1131] sm:$0xf]
        %v3178 = vld [vmem:[%s1131 + $0x4] sm:$0xf]
        %v3179 = vld [vmem:[%s1131 + $0x8] sm:$0xf]
        %v3180 = vld [vmem:[%s1131 + $0xc] sm:$0xf]
        %v3181 = vld [vmem:[%s1131 + $0x10] sm:$0xf]
        %v3182 = vld [vmem:[%s1131 + $0x14] sm:$0xf]
        %v3183 = vld [vmem:[%s1131 + $0x18] sm:$0xf]
        %v3184 = vld [vmem:[%s1131 + $0x1c] sm:$0xf]
        %v3185 = vld [vmem:[%s1131 + $0x20] sm:$0xf]
        %v3186 = vld [vmem:[%s1131 + $0x24] sm:$0xf]
        %v3187 = vld [vmem:[%s1131 + $0x28] sm:$0xf]
        %v3188 = vld [vmem:[%s1131 + $0x2c] sm:$0xf]
        %v3189 = vld [vmem:[%s1131 + $0x30] sm:$0xf]
        %v3190 = vld [vmem:[%s1131 + $0x34] sm:$0xf]
        %v3191 = vld [vmem:[%s1131 + $0x38] sm:$0xf]
        %v3192 = vld [vmem:[%s1131 + $0x3c] sm:$0xf]
        %v3193 = vld [vmem:[%s1131 + $0x40] sm:$0xf]
        %v3194 = vld [vmem:[%s1131 + $0x44] sm:$0xf]
        %v3195 = vld [vmem:[%s1131 + $0x48] sm:$0xf]
        %v3196 = vld [vmem:[%s1131 + $0x4c] sm:$0xf]
        %v3197 = vld [vmem:[%s1131 + $0x50] sm:$0xf]
        %v3198 = vld [vmem:[%s1131 + $0x54] sm:$0xf]
        %v3199 = vld [vmem:[%s1131 + $0x58] sm:$0xf]
        %v3200 = vld [vmem:[%s1131 + $0x5c] sm:$0xf]
        %v3201 = vld [vmem:[%s1131 + $0x60] sm:$0xf]
        %v3202 = vld [vmem:[%s1131 + $0x64] sm:$0xf]
        %v3203 = vld [vmem:[%s1131 + $0x68] sm:$0xf]
        %v3204 = vld [vmem:[%s1131 + $0x6c] sm:$0xf]
        %v3205 = vld [vmem:[%s1131 + $0x70] sm:$0xf]
        %v3206 = vld [vmem:[%s1131 + $0x74] sm:$0xf]
        %v3207 = vld [vmem:[%s1131 + $0x78] sm:$0xf]
        %v3208 = vld [vmem:[%s1131 + $0x7c] sm:$0xf]
        %v3209 = vld [vmem:[%s1131 + $0x80] sm:$0xf]
        %v3210 = vld [vmem:[%s1131 + $0x84] sm:$0xf]
        %v3211 = vld [vmem:[%s1131 + $0x88] sm:$0xf]
        %v3212 = vld [vmem:[%s1131 + $0x8c] sm:$0xf]
        %v3213 = vld [vmem:[%s1131 + $0x90] sm:$0xf]
        %v3214 = vld [vmem:[%s1131 + $0x94] sm:$0xf]
        %v3215 = vld [vmem:[%s1131 + $0x98] sm:$0xf]
        %v3216 = vld [vmem:[%s1131 + $0x9c] sm:$0xf]
        %v3217 = vld [vmem:[%s1131 + $0xa0] sm:$0xf]
        %v3218 = vld [vmem:[%s1131 + $0xa4] sm:$0xf]
        %v3219 = vld [vmem:[%s1131 + $0xa8] sm:$0xf]
        %v3220 = vld [vmem:[%s1131 + $0xac] sm:$0xf]
        %v3221 = vld [vmem:[%s1131 + $0xb0] sm:$0xf]
        %v3222 = vld [vmem:[%s1131 + $0xb4] sm:$0xf]
        %v3223 = vld [vmem:[%s1131 + $0xb8] sm:$0xf]
        %v3224 = vld [vmem:[%s1131 + $0xbc] sm:$0xf]
        %v3225 = vld [vmem:[%s1131 + $0xc0] sm:$0xf]
        %v3226 = vld [vmem:[%s1131 + $0xc4] sm:$0xf]
        %v3227 = vld [vmem:[%s1131 + $0xc8] sm:$0xf]
        %v3228 = vld [vmem:[%s1131 + $0xcc] sm:$0xf]
        %v3229 = vld [vmem:[%s1131 + $0xd0] sm:$0xf]
        %v3230 = vld [vmem:[%s1131 + $0xd4] sm:$0xf]
        %v3231 = vld [vmem:[%s1131 + $0xd8] sm:$0xf]
        %v3232 = vld [vmem:[%s1131 + $0xdc] sm:$0xf]
        %v3233 = vld [vmem:[%s1131 + $0xe0] sm:$0xf]
        %v3234 = vld [vmem:[%s1131 + $0xe4] sm:$0xf]
        %v3235 = vld [vmem:[%s1131 + $0xe8] sm:$0xf]
        %v3236 = vld [vmem:[%s1131 + $0xec] sm:$0xf]
        %v3237 = vld [vmem:[%s1131 + $0xf0] sm:$0xf]
        %v3238 = vld [vmem:[%s1131 + $0xf4] sm:$0xf]
        %v3239 = vld [vmem:[%s1131 + $0xf8] sm:$0xf]
        %v3240 = vld [vmem:[%s1131 + $0xfc] sm:$0xf]
        %v3241 = vld [vmem:[%s1139] sm:$0x1]
        %v3243 = vlaneseq
        %v3244 = vshrl.u32 %v3243, 7
        %v3245 = vsub.s32 0, %v3244
        %v3246 = vrot.slane %v3241, %v3245
        %v3312 = vunpack.c.l.b16 %v3177
        %v3313 = vunpack.c.l.b16 %v3178
        %v3314 = vunpack.c.l.b16 %v3179
        %v3315 = vunpack.c.l.b16 %v3180
        %v3316 = vunpack.c.l.b16 %v3181
        %v3317 = vunpack.c.l.b16 %v3182
        %v3318 = vunpack.c.l.b16 %v3183
        %v3319 = vunpack.c.l.b16 %v3184
        %v3320 = vunpack.c.l.b16 %v3185
        %v3321 = vunpack.c.l.b16 %v3186
        %v3322 = vunpack.c.l.b16 %v3187
        %v3323 = vunpack.c.l.b16 %v3188
        %v3324 = vunpack.c.l.b16 %v3189
        %v3325 = vunpack.c.l.b16 %v3190
        %v3326 = vunpack.c.l.b16 %v3191
        %v3327 = vunpack.c.l.b16 %v3192
        %v3328 = vunpack.c.l.b16 %v3193
        %v3329 = vunpack.c.l.b16 %v3194
        %v3330 = vunpack.c.l.b16 %v3195
        %v3331 = vunpack.c.l.b16 %v3196
        %v3332 = vunpack.c.l.b16 %v3197
        %v3333 = vunpack.c.l.b16 %v3198
        %v3334 = vunpack.c.l.b16 %v3199
        %v3335 = vunpack.c.l.b16 %v3200
        %v3336 = vunpack.c.l.b16 %v3201
        %v3337 = vunpack.c.l.b16 %v3202
        %v3338 = vunpack.c.l.b16 %v3203
        %v3339 = vunpack.c.l.b16 %v3204
        %v3340 = vunpack.c.l.b16 %v3205
        %v3341 = vunpack.c.l.b16 %v3206
        %v3342 = vunpack.c.l.b16 %v3207
        %v3343 = vunpack.c.l.b16 %v3208
        %v3344 = vunpack.c.l.b16 %v3209
        %v3345 = vunpack.c.l.b16 %v3210
        %v3346 = vunpack.c.l.b16 %v3211
        %v3347 = vunpack.c.l.b16 %v3212
        %v3348 = vunpack.c.l.b16 %v3213
        %v3349 = vunpack.c.l.b16 %v3214
        %v3350 = vunpack.c.l.b16 %v3215
        %v3351 = vunpack.c.l.b16 %v3216
        %v3352 = vunpack.c.l.b16 %v3217
        %v3353 = vunpack.c.l.b16 %v3218
        %v3354 = vunpack.c.l.b16 %v3219
        %v3355 = vunpack.c.l.b16 %v3220
        %v3356 = vunpack.c.l.b16 %v3221
        %v3357 = vunpack.c.l.b16 %v3222
        %v3358 = vunpack.c.l.b16 %v3223
        %v3359 = vunpack.c.l.b16 %v3224
        %v3360 = vunpack.c.l.b16 %v3225
        %v3361 = vunpack.c.l.b16 %v3226
        %v3362 = vunpack.c.l.b16 %v3227
        %v3363 = vunpack.c.l.b16 %v3228
        %v3364 = vunpack.c.l.b16 %v3229
        %v3365 = vunpack.c.l.b16 %v3230
        %v3366 = vunpack.c.l.b16 %v3231
        %v3367 = vunpack.c.l.b16 %v3232
        %v3368 = vunpack.c.l.b16 %v3233
        %v3369 = vunpack.c.l.b16 %v3234
        %v3370 = vunpack.c.l.b16 %v3235
        %v3371 = vunpack.c.l.b16 %v3236
        %v3372 = vunpack.c.l.b16 %v3237
        %v3373 = vunpack.c.l.b16 %v3238
        %v3374 = vunpack.c.l.b16 %v3239
        %v3375 = vunpack.c.l.b16 %v3240
        %v3376 = vpack.c.b16 %v3313, %v3312
        %v3377 = vpack.c.b16 %v3315, %v3314
        %v3378 = vpack.c.b16 %v3317, %v3316
        %v3379 = vpack.c.b16 %v3319, %v3318
        %v3380 = vpack.c.b16 %v3321, %v3320
        %v3381 = vpack.c.b16 %v3323, %v3322
        %v3382 = vpack.c.b16 %v3325, %v3324
        %v3383 = vpack.c.b16 %v3327, %v3326
        %v3384 = vpack.c.b16 %v3329, %v3328
        %v3385 = vpack.c.b16 %v3331, %v3330
        %v3386 = vpack.c.b16 %v3333, %v3332
        %v3387 = vpack.c.b16 %v3335, %v3334
        %v3388 = vpack.c.b16 %v3337, %v3336
        %v3389 = vpack.c.b16 %v3339, %v3338
        %v3390 = vpack.c.b16 %v3341, %v3340
        %v3391 = vpack.c.b16 %v3343, %v3342
        %v3392 = vpack.c.b16 %v3345, %v3344
        %v3393 = vpack.c.b16 %v3347, %v3346
        %v3394 = vpack.c.b16 %v3349, %v3348
        %v3395 = vpack.c.b16 %v3351, %v3350
        %v3396 = vpack.c.b16 %v3353, %v3352
        %v3397 = vpack.c.b16 %v3355, %v3354
        %v3398 = vpack.c.b16 %v3357, %v3356
        %v3399 = vpack.c.b16 %v3359, %v3358
        %v3400 = vpack.c.b16 %v3361, %v3360
        %v3401 = vpack.c.b16 %v3363, %v3362
        %v3402 = vpack.c.b16 %v3365, %v3364
        %v3403 = vpack.c.b16 %v3367, %v3366
        %v3404 = vpack.c.b16 %v3369, %v3368
        %v3405 = vpack.c.b16 %v3371, %v3370
        %v3406 = vpack.c.b16 %v3373, %v3372
        %v3407 = vpack.c.b16 %v3375, %v3374
        %3440 = vmatprep.subr.bf16.mxu0 0
        %3441 = vmatpush1.bf16.msra.mxu0 %v3376
        %3442 = vmatprep.subr.bf16.mxu0 0
        %3443 = vmatpush1.bf16.msra.mxu0 %v3377
        %3444 = vmatprep.subr.bf16.mxu0 0
        %3445 = vmatpush1.bf16.msra.mxu0 %v3378
        %3446 = vmatprep.subr.bf16.mxu0 0
        %3447 = vmatpush1.bf16.msra.mxu0 %v3379
        %3448 = vmatprep.subr.bf16.mxu0 0
        %3449 = vmatpush1.bf16.msra.mxu0 %v3380
        %3450 = vmatprep.subr.bf16.mxu0 0
        %3451 = vmatpush1.bf16.msra.mxu0 %v3381
        %3452 = vmatprep.subr.bf16.mxu0 0
        %3453 = vmatpush1.bf16.msra.mxu0 %v3382
        %3454 = vmatprep.subr.bf16.mxu0 0
        %3455 = vmatpush1.bf16.msra.mxu0 %v3383
        %3456 = vmatprep.subr.bf16.mxu0 0
        %3457 = vmatpush1.bf16.msra.mxu0 %v3384
        %3458 = vmatprep.subr.bf16.mxu0 0
        %3459 = vmatpush1.bf16.msra.mxu0 %v3385
        %3460 = vmatprep.subr.bf16.mxu0 0
        %3461 = vmatpush1.bf16.msra.mxu0 %v3386
        %3462 = vmatprep.subr.bf16.mxu0 0
        %3463 = vmatpush1.bf16.msra.mxu0 %v3387
        %3464 = vmatprep.subr.bf16.mxu0 0
        %3465 = vmatpush1.bf16.msra.mxu0 %v3388
        %3466 = vmatprep.subr.bf16.mxu0 0
        %3467 = vmatpush1.bf16.msra.mxu0 %v3389
        %3468 = vmatprep.subr.bf16.mxu0 0
        %3469 = vmatpush1.bf16.msra.mxu0 %v3390
        %3470 = vmatprep.subr.bf16.mxu0 0
        %3471 = vmatpush1.bf16.msra.mxu0 %v3391
        %3472 = vmatprep.mubr.bf16.mxu0 %v3174
        %3473 = vmatmul.mubr.bf16.gmra.mrb[0].mxu0 %v3173
        %v3474 = vpop.f32.mrb[0].mxu0
        %v3475 = vadd.f32 %v3246, %v3474
        %v3476 = vpop.f32.mrb[0].mxu0
        %v3477 = vpop.f32.mrb[0].mxu0
        %v3478 = vadd.f32 %v3246, %v3477
        %v3479 = vpop.f32.mrb[0].mxu0
        %3480 = vdwg.mxu0
        %3481 = vmatprep.subr.bf16.mxu0 0
        %3482 = vmatpush1.bf16.msra.mxu0 %v3392
        %3483 = vmatprep.subr.bf16.mxu0 0
        %3484 = vmatpush1.bf16.msra.mxu0 %v3393
        %3485 = vmatprep.subr.bf16.mxu0 0
        %3486 = vmatpush1.bf16.msra.mxu0 %v3394
        %3487 = vmatprep.subr.bf16.mxu0 0
        %3488 = vmatpush1.bf16.msra.mxu0 %v3395
        %3489 = vmatprep.subr.bf16.mxu0 0
        %3490 = vmatpush1.bf16.msra.mxu0 %v3396
        %3491 = vmatprep.subr.bf16.mxu0 0
        %3492 = vmatpush1.bf16.msra.mxu0 %v3397
        %3493 = vmatprep.subr.bf16.mxu0 0
        %3494 = vmatpush1.bf16.msra.mxu0 %v3398
        %3495 = vmatprep.subr.bf16.mxu0 0
        %3496 = vmatpush1.bf16.msra.mxu0 %v3399
        %3497 = vmatprep.subr.bf16.mxu0 0
        %3498 = vmatpush1.bf16.msra.mxu0 %v3400
        %3499 = vmatprep.subr.bf16.mxu0 0
        %3500 = vmatpush1.bf16.msra.mxu0 %v3401
        %3501 = vmatprep.subr.bf16.mxu0 0
        %3502 = vmatpush1.bf16.msra.mxu0 %v3402
        %3503 = vmatprep.subr.bf16.mxu0 0
        %3504 = vmatpush1.bf16.msra.mxu0 %v3403
        %3505 = vmatprep.subr.bf16.mxu0 0
        %3506 = vmatpush1.bf16.msra.mxu0 %v3404
        %3507 = vmatprep.subr.bf16.mxu0 0
        %3508 = vmatpush1.bf16.msra.mxu0 %v3405
        %3509 = vmatprep.subr.bf16.mxu0 0
        %3510 = vmatpush1.bf16.msra.mxu0 %v3406
        %3511 = vmatprep.subr.bf16.mxu0 0
        %3512 = vmatpush1.bf16.msra.mxu0 %v3407
        %3513 = vmatprep.mubr.bf16.mxu0 %v3176
        %3514 = vmatmul.mubr.bf16.gmra.mrb[0].mxu0 %v3175
        %v3515 = vpop.f32.mrb[0].mxu0
        %v3516 = vadd.f32 %v3475, %v3515
        %v3517 = vpop.f32.mrb[0].mxu0
        %v3518 = vpop.f32.mrb[0].mxu0
        %v3519 = vadd.f32 %v3478, %v3518
        %v3520 = vpop.f32.mrb[0].mxu0
        %3521 = vdwg.mxu0
        %v3522 = vadd.f32 %v2798, %v3516
        %v3523 = vadd.f32 %v2799, %v3519
        %v3524 = vld [vmem:[%s1147] sm:$0x1]
        %v3525 = vld [vmem:[%s1155] sm:$0x1]
        %3526 = vadd.xlane.f32.xlu0 %v3522
        %v3527 = vpop.xlane.xlu0 %3526
        %3528 = vadd.xlane.f32.xlu0 %v3523
        %v3529 = vpop.xlane.xlu0 %3528
        %v3530 = vmul.f32 %v3527, %v2765
        %v3531 = vmul.f32 %v3529, %v2765
        %v3532 = vsub.f32 %v3522, %v3530
        %v3533 = vsub.f32 %v3523, %v3531
        %v3534 = vmul.f32 %v3532, %v3532
        %v3535 = vmul.f32 %v3533, %v3533
        %3536 = vadd.xlane.f32.xlu0 %v3534
        %v3537 = vpop.xlane.xlu0 %3536
        %3538 = vadd.xlane.f32.xlu0 %v3535
        %v3539 = vpop.xlane.xlu0 %3538
        %v3540 = vmul.f32 %v3537, %v2765
        %v3541 = vmul.f32 %v3539, %v2765
        %v3542 = vadd.f32 %v3540, 1e-05
        %v3543 = vadd.f32 %v3541, 1e-05
        %v3544 = vrsqrt.pop %v3542
        %v3545 = vrsqrt.pop %v3543
        %v3546 = vmul.f32 %v3532, %v3544
        %v3547 = vmul.f32 %v3533, %v3545
        %v3549 = vlaneseq
        %v3550 = vshrl.u32 %v3549, 7
        %v3551 = vsub.s32 0, %v3550
        %v3552 = vrot.slane %v3524, %v3551
        %v3554 = vmul.f32 %v3546, %v3552
        %v3555 = vmul.f32 %v3547, %v3552
        %v3557 = vlaneseq
        %v3558 = vshrl.u32 %v3557, 7
        %v3559 = vsub.s32 0, %v3558
        %v3560 = vrot.slane %v3525, %v3559
        %v3562 = vadd.f32 %v3554, %v3560
        %v3563 = vadd.f32 %v3555, %v3560
        %3564 = vst [vmem:[#allocation2] sm:$0xff] %v3562
        %3565 = vst [vmem:[#allocation2 + $0x8] sm:$0xff] %v3563
        %p3566 = scmp.eq.s32.totalorder %s41, 1
        // Predicated region
        $region193: #{tpu_custom_call.1} parent=115 // pred_check
          %p3567 = pneg %p3566
        $region194: #{tpu_custom_call.1} parent=115 // pred_check_branch
          %3569 = sbr.rel (%p3567) target = $region196
        $region195: #{tpu_custom_call.1} parent=115 // pred_region
          %v3570 = vpack.c.bf16 %v3562, %v3562
          %v3571 = vpack.c.bf16 %v3563, %v3563
          %v3572 = vld [vmem:[%s20] sm:$0xf]
          %v3573 = vld [vmem:[%s20 + $0x4] sm:$0xf]
          %v3574 = vld [vmem:[%s20 + $0x8] sm:$0xf]
          %v3575 = vld [vmem:[%s20 + $0xc] sm:$0xf]
          %v3576 = vld [vmem:[%s20 + $0x10] sm:$0xf]
          %v3577 = vld [vmem:[%s20 + $0x14] sm:$0xf]
          %v3578 = vld [vmem:[%s20 + $0x18] sm:$0xf]
          %v3579 = vld [vmem:[%s20 + $0x1c] sm:$0xf]
          %v3580 = vld [vmem:[%s20 + $0x20] sm:$0xf]
          %v3581 = vld [vmem:[%s20 + $0x24] sm:$0xf]
          %v3582 = vld [vmem:[%s20 + $0x28] sm:$0xf]
          %v3583 = vld [vmem:[%s20 + $0x2c] sm:$0xf]
          %v3584 = vld [vmem:[%s20 + $0x30] sm:$0xf]
          %v3585 = vld [vmem:[%s20 + $0x34] sm:$0xf]
          %v3586 = vld [vmem:[%s20 + $0x38] sm:$0xf]
          %v3587 = vld [vmem:[%s20 + $0x3c] sm:$0xf]
          %v3588 = vld [vmem:[%s21] sm:$0x1]
          %v3590 = vlaneseq
          %v3591 = vshrl.u32 %v3590, 7
          %v3592 = vsub.s32 0, %v3591
          %v3593 = vrot.slane %v3588, %v3592
          %v3597 = vunpack.c.l.b16 %v3570
          %v3598 = vunpack.c.l.b16 %v3571
          %v3599 = vrot.slane %v3598, 7
          %vm3600 = vcmask 1041409
          %v3601 = vsel %vm3600, %v3599, %v3597
          %v3602 = vpack.c.b16 %v3601, %v3601
          %v3620 = vunpack.c.l.b16 %v3572
          %v3621 = vunpack.c.l.b16 %v3573
          %v3622 = vunpack.c.l.b16 %v3574
          %v3623 = vunpack.c.l.b16 %v3575
          %v3624 = vunpack.c.l.b16 %v3576
          %v3625 = vunpack.c.l.b16 %v3577
          %v3626 = vunpack.c.l.b16 %v3578
          %v3627 = vunpack.c.l.b16 %v3579
          %v3628 = vunpack.c.l.b16 %v3580
          %v3629 = vunpack.c.l.b16 %v3581
          %v3630 = vunpack.c.l.b16 %v3582
          %v3631 = vunpack.c.l.b16 %v3583
          %v3632 = vunpack.c.l.b16 %v3584
          %v3633 = vunpack.c.l.b16 %v3585
          %v3634 = vunpack.c.l.b16 %v3586
          %v3635 = vunpack.c.l.b16 %v3587
          %v3636 = vpack.c.b16 %v3621, %v3620
          %v3637 = vpack.c.b16 %v3623, %v3622
          %v3638 = vpack.c.b16 %v3625, %v3624
          %v3639 = vpack.c.b16 %v3627, %v3626
          %v3640 = vpack.c.b16 %v3629, %v3628
          %v3641 = vpack.c.b16 %v3631, %v3630
          %v3642 = vpack.c.b16 %v3633, %v3632
          %v3643 = vpack.c.b16 %v3635, %v3634
          %3652 = vmatprep.subr.bf16.mxu0 0
          %3653 = vmatpush1.bf16.msra.mxu0 %v3636
          %3654 = vmatprep.subr.bf16.mxu0 0
          %3655 = vmatpush1.bf16.msra.mxu0 %v3637
          %3656 = vmatprep.subr.bf16.mxu0 0
          %3657 = vmatpush1.bf16.msra.mxu0 %v3638
          %3658 = vmatprep.subr.bf16.mxu0 0
          %3659 = vmatpush1.bf16.msra.mxu0 %v3639
          %3660 = vmatprep.subr.bf16.mxu0 0
          %3661 = vmatpush1.bf16.msra.mxu0 %v3640
          %3662 = vmatprep.subr.bf16.mxu0 0
          %3663 = vmatpush1.bf16.msra.mxu0 %v3641
          %3664 = vmatprep.subr.bf16.mxu0 0
          %3665 = vmatpush1.bf16.msra.mxu0 %v3642
          %3666 = vmatprep.subr.bf16.mxu0 0
          %3667 = vmatpush1.bf16.msra.mxu0 %v3643
          %3668 = vmatprep.subr.bf16.mxu0 0
          %3669 = vmatpush1.bf16.msra.mxu0 0
          %3670 = vmatprep.subr.bf16.mxu0 0
          %3671 = vmatpush1.bf16.msra.mxu0 0
          %3672 = vmatprep.subr.bf16.mxu0 0
          %3673 = vmatpush1.bf16.msra.mxu0 0
          %3674 = vmatprep.subr.bf16.mxu0 0
          %3675 = vmatpush1.bf16.msra.mxu0 0
          %3676 = vmatprep.subr.bf16.mxu0 0
          %3677 = vmatpush1.bf16.msra.mxu0 0
          %3678 = vmatprep.subr.bf16.mxu0 0
          %3679 = vmatpush1.bf16.msra.mxu0 0
          %3680 = vmatprep.subr.bf16.mxu0 0
          %3681 = vmatpush1.bf16.msra.mxu0 0
          %3682 = vmatprep.subr.bf16.mxu0 0
          %3683 = vmatpush1.bf16.msra.mxu0 0
          %3684 = vmatprep.mubr.bf16.mxu0 0
          %3685 = vmatmul.mubr.bf16.gmra.mrb[0].mxu0 %v3602
          %v3686 = vpop.f32.mrb[0].mxu0
          %v3687 = vadd.f32 %v3593, %v3686
          %v3688 = vpop.f32.mrb[0].mxu0
          %v3689 = vpop.f32.mrb[0].mxu0
          %v3690 = vpop.f32.mrb[0].mxu0
          %3691 = vdwg.mxu0
          %v3692 = vtanh.pop %v3687
          %3693 = vst [vmem:[#allocation24] sm:$0x3] %v3692
          %v3694 = vpack.c.bf16 %v3692, %v3692
          %v3695 = vld [vmem:[#allocation23] sm:$0xf]
          %v3696 = vld [vmem:[#allocation23 + $0x4] sm:$0xf]
          %v3697 = vld [vmem:[#allocation23 + $0x8] sm:$0xf]
          %v3698 = vld [vmem:[#allocation23 + $0xc] sm:$0xf]
          %v3699 = vld [vmem:[#allocation23 + $0x10] sm:$0xf]
          %v3700 = vld [vmem:[#allocation23 + $0x14] sm:$0xf]
          %v3701 = vld [vmem:[#allocation23 + $0x18] sm:$0xf]
          %v3702 = vld [vmem:[#allocation23 + $0x1c] sm:$0xf]
          %v3703 = vld [vmem:[#allocation23 + $0x20] sm:$0xf]
          %v3704 = vld [vmem:[#allocation23 + $0x24] sm:$0xf]
          %v3705 = vld [vmem:[#allocation23 + $0x28] sm:$0xf]
          %v3706 = vld [vmem:[#allocation23 + $0x2c] sm:$0xf]
          %v3707 = vld [vmem:[#allocation23 + $0x30] sm:$0xf]
          %v3708 = vld [vmem:[#allocation23 + $0x34] sm:$0xf]
          %v3709 = vld [vmem:[#allocation23 + $0x38] sm:$0xf]
          %v3710 = vld [vmem:[#allocation23 + $0x3c] sm:$0xf]
          %v3711 = vld [vmem:[%s23] sm:$0x1]
          %v3713 = vlaneseq
          %v3714 = vshrl.u32 %v3713, 7
          %v3715 = vsub.s32 0, %v3714
          %v3716 = vrot.slane %v3711, %v3715
          %v3734 = vunpack.c.l.b16 %v3695
          %v3735 = vunpack.c.l.b16 %v3696
          %v3736 = vunpack.c.l.b16 %v3697
          %v3737 = vunpack.c.l.b16 %v3698
          %v3738 = vunpack.c.l.b16 %v3699
          %v3739 = vunpack.c.l.b16 %v3700
          %v3740 = vunpack.c.l.b16 %v3701
          %v3741 = vunpack.c.l.b16 %v3702
          %v3742 = vunpack.c.l.b16 %v3703
          %v3743 = vunpack.c.l.b16 %v3704
          %v3744 = vunpack.c.l.b16 %v3705
          %v3745 = vunpack.c.l.b16 %v3706
          %v3746 = vunpack.c.l.b16 %v3707
          %v3747 = vunpack.c.l.b16 %v3708
          %v3748 = vunpack.c.l.b16 %v3709
          %v3749 = vunpack.c.l.b16 %v3710
          %v3750 = vpack.c.b16 %v3735, %v3734
          %v3751 = vpack.c.b16 %v3737, %v3736
          %v3752 = vpack.c.b16 %v3739, %v3738
          %v3753 = vpack.c.b16 %v3741, %v3740
          %v3754 = vpack.c.b16 %v3743, %v3742
          %v3755 = vpack.c.b16 %v3745, %v3744
          %v3756 = vpack.c.b16 %v3747, %v3746
          %v3757 = vpack.c.b16 %v3749, %v3748
          %3766 = vmatprep.subr.bf16.mxu0 0
          %3767 = vmatpush1.bf16.msra.mxu0 %v3750
          %3768 = vmatprep.subr.bf16.mxu0 0
          %3769 = vmatpush1.bf16.msra.mxu0 %v3751
          %3770 = vmatprep.subr.bf16.mxu0 0
          %3771 = vmatpush1.bf16.msra.mxu0 %v3752
          %3772 = vmatprep.subr.bf16.mxu0 0
          %3773 = vmatpush1.bf16.msra.mxu0 %v3753
          %3774 = vmatprep.subr.bf16.mxu0 0
          %3775 = vmatpush1.bf16.msra.mxu0 %v3754
          %3776 = vmatprep.subr.bf16.mxu0 0
          %3777 = vmatpush1.bf16.msra.mxu0 %v3755
          %3778 = vmatprep.subr.bf16.mxu0 0
          %3779 = vmatpush1.bf16.msra.mxu0 %v3756
          %3780 = vmatprep.subr.bf16.mxu0 0
          %3781 = vmatpush1.bf16.msra.mxu0 %v3757
          %3782 = vmatprep.subr.bf16.mxu0 0
          %3783 = vmatpush1.bf16.msra.mxu0 0
          %3784 = vmatprep.subr.bf16.mxu0 0
          %3785 = vmatpush1.bf16.msra.mxu0 0
          %3786 = vmatprep.subr.bf16.mxu0 0
          %3787 = vmatpush1.bf16.msra.mxu0 0
          %3788 = vmatprep.subr.bf16.mxu0 0
          %3789 = vmatpush1.bf16.msra.mxu0 0
          %3790 = vmatprep.subr.bf16.mxu0 0
          %3791 = vmatpush1.bf16.msra.mxu0 0
          %3792 = vmatprep.subr.bf16.mxu0 0
          %3793 = vmatpush1.bf16.msra.mxu0 0
          %3794 = vmatprep.subr.bf16.mxu0 0
          %3795 = vmatpush1.bf16.msra.mxu0 0
          %3796 = vmatprep.subr.bf16.mxu0 0
          %3797 = vmatpush1.bf16.msra.mxu0 0
          %3798 = vmatprep.mubr.bf16.mxu0 0
          %3799 = vmatmul.mubr.bf16.gmra.mrb[0].mxu0 %v3694
          %v3800 = vpop.f32.mrb[0].mxu0
          %v3801 = vadd.f32 %v3716, %v3800
          %v3802 = vpop.f32.mrb[0].mxu0
          %v3803 = vpop.f32.mrb[0].mxu0
          %v3804 = vpop.f32.mrb[0].mxu0
          %3805 = vdwg.mxu0
          %3806 = vst [vmem:[#allocation25] sm:$0x3] %v3801
        $region196: #{tpu_custom_call.1} parent=115 // pred_fallthru
          _
        // Predicated region
        $region197: #{tpu_custom_call.1} parent=115 // pred_check
          %p3807 = pneg %p638
        $region198: #{tpu_custom_call.1} parent=115 // pred_check_branch
          %3809 = sbr.rel (%p3807) target = $region200
        $region199: #{tpu_custom_call.1} parent=115 // pred_region
          %s3811 = ssub.s32 32, 32
          %3812 = vsyncadd [#allocation5], %s3811
          %s3814 = sshll.u32 [#allocation24], 4
          %s3815 = int_to_ptr.vmem [resolvable:$true] %s3814
          %3817 = dma.vmem_to_hbm [thread:$0]  %s3815, 32, %s24, [#allocation5]
        $region200: #{tpu_custom_call.1} parent=115 // pred_fallthru
          _
        // Predicated region
        $region201: #{tpu_custom_call.1} parent=115 // pred_check
          %p3818 = pneg %p659
        $region202: #{tpu_custom_call.1} parent=115 // pred_check_branch
          %3820 = sbr.rel (%p3818) target = $region204
        $region203: #{tpu_custom_call.1} parent=115 // pred_region
          %s3822 = ssub.s32 32, 32
          %3823 = vsyncadd [#allocation26], %s3822
          %s3825 = sshll.u32 [#allocation25], 4
          %s3826 = int_to_ptr.vmem [resolvable:$true] %s3825
          %3828 = dma.vmem_to_hbm [thread:$0]  %s3826, 32, %s25, [#allocation26]
        $region204: #{tpu_custom_call.1} parent=115 // pred_fallthru
          _
        // Predicated region
        $region205: #{tpu_custom_call.1} parent=115 // pred_check
          %p3829 = pneg %p638
        $region206: #{tpu_custom_call.1} parent=115 // pred_check_branch
          %3831 = sbr.rel (%p3829) target = $region208
        $region207: #{tpu_custom_call.1} parent=115 // pred_region
          %3832 = dma.done [#allocation5], 32
        $region208: #{tpu_custom_call.1} parent=115 // pred_fallthru
          _
        // Predicated region
        $region209: #{tpu_custom_call.1} parent=115 // pred_check
          %p3833 = pneg %p659
        $region210: #{tpu_custom_call.1} parent=115 // pred_check_branch
          %3835 = sbr.rel (%p3833) target = $region212
        $region211: #{tpu_custom_call.1} parent=115 // pred_region
          %3836 = dma.done [#allocation26], 32
        $region212: #{tpu_custom_call.1} parent=115 // pred_fallthru
          _
      $region116: #{tpu_custom_call.1} parent=5 // pred_fallthru
        _
      %p3837 = scmp.le.s32.totalorder 2, %s36
      // Predicated region
      $region213: #{tpu_custom_call.1} parent=5 // pred_check
        %p3838 = pneg %p3837
      $region214: #{tpu_custom_call.1} parent=5 // pred_check_branch
        %3840 = sbr.rel (%p3838) target = $region216
      $region215: #{tpu_custom_call.1} parent=5 // pred_region
        %s3841 = ssub.s32 %s36, 2
      $region216: #{tpu_custom_call.1} parent=5 // pred_fallthru
        _
    $region6: #{tpu_custom_call.1} parent=1 // loop_footer
      %s40 = sadd.s32 1, %s36
    $region7: #{tpu_custom_call.1} parent=1 // loop_footer_branch
      %35 = sbr.rel target = $region3
    $region8: #{tpu_custom_call.1} parent=1 // loop_exit
      _
    %3842 = vsyncpa [#allocation4], 1
    %s3843 = scalar_lea.sflag [#allocation4], 1
    %3844 = vsyncpa %s3843, 1
    %3845 = vsyncpa [#allocation7], 1
    %3846 = vsyncpa [#allocation5], 1
    %s3847 = scalar_lea.sflag [#allocation5], 1
    %3848 = vsyncpa %s3847, 1
    %3849 = vsyncpa [#allocation26], 1

</llo_original>
